<compile_context>
chip_gen: v7x
topology: tpu7x:2x2x1
jax: 0.10.0
libtpu: 0.0.40
codegen_flags: <defaults>
</compile_context>

<pallas_src>
import functools

import jax
import jax.numpy as jnp
from jax.experimental import pallas as pl
from jax.experimental.pallas import tpu as pltpu


def _round_up(n, m):
    return ((n + m - 1) // m) * m


def _snn_kernel(x_ref, w1_ref, b1_ref, w2_ref, b2_ref,
                spk_ref, mem_ref,
                spk1_buf, cur2_buf,
                *, beta, threshold, num_steps, chunk):
    """Whole SNN forward for one batch tile (all shapes lane/sublane padded).

    snntorch Leaky (defaults, reset_mechanism="subtract") per step:
        reset   = heaviside(mem_prev - threshold)  == spk_{t-1}
        mem_new = beta * mem_prev + input - reset * threshold
        spk     = heaviside(mem_new - threshold)
    """
    f32 = jnp.float32
    thr = f32(threshold)
    bta = f32(beta)
    one = f32(1.0)
    zero = f32(0.0)

    x = x_ref[...]                                             # (Bt, Ip)
    w1 = w1_ref[...]                                           # (Ip, Hp)
    b1 = b1_ref[...]                                           # (1, Hp)
    w2 = w2_ref[...]                                           # (Hp, Op)
    b2 = b2_ref[...]                                           # (1, Op)

    Bt = x.shape[0]
    Hp = w1.shape[1]
    Op = w2.shape[1]

    # fc1(x) is loop-invariant (same x every step) -> one MXU matmul.
    cur1 = jnp.dot(x, w1, preferred_element_type=f32) + b1     # (Bt, Hp)

    def reset_of(spk_prev):
        # spk_{t-1} IS the reset term; skip the multiply when threshold == 1.
        return spk_prev if threshold == 1.0 else spk_prev * thr

    n_chunks = -(-num_steps // chunk)

    def chunk_steps(c):
        return min(chunk, num_steps - c * chunk)

    def lif1_chunk(c, mem1, spk1):
        """lif1 recurrence for chunk c (pure VPU); records spikes into slot c & 1."""
        buf = spk1_buf.at[c & 1]                               # (chunk*Bt, Hp) view
        for tt in range(chunk_steps(c)):
            mem1 = bta * mem1 + cur1 - reset_of(spk1)
            spk1 = jnp.where(mem1 > thr, one, zero)
            buf[pl.ds(tt * Bt, Bt), :] = spk1                  # static, sublane-aligned
        return mem1, spk1

    mem1 = jnp.zeros((Bt, Hp), f32)
    spk1 = jnp.zeros((Bt, Hp), f32)
    mem2 = jnp.zeros((Bt, Op), f32)
    spk2 = jnp.zeros((Bt, Op), f32)

    # Prime the software pipeline with chunk 0's spikes.
    # (T=25 is small, so the time loops are Python-unrolled into one basic block;
    #  this is what lets the scheduler interleave the chunks below.)
    mem1, spk1 = lif1_chunk(0, mem1, spk1)

    for c in range(n_chunks):
        slot = c & 1
        rows = chunk_steps(c) * Bt
        s1 = spk1_buf.at[slot]
        c2 = cur2_buf.at[slot]

        # fc2 for chunk c (MXU, vector-extended slot).  Result goes to a
        # double-buffered VMEM scratch so its live range stays ref-backed.
        c2[pl.ds(0, rows), :] = (
            jnp.dot(s1[pl.ds(0, rows), :], w2, preferred_element_type=f32) + b2)

        # lif1 for chunk c+1 (pure VPU) -- data-independent of the matmul above,
        # writes the OTHER slot, so it can run while the MXU drains chunk c.
        if c + 1 < n_chunks:
            mem1, spk1 = lif1_chunk(c + 1, mem1, spk1)

        # lif2 for chunk c over the precomputed currents; lane-dense (Bt, Op) stores.
        for tt in range(chunk_steps(c)):
            t = c * chunk + tt
            cur2 = c2[pl.ds(tt * Bt, Bt), :]
            mem2 = bta * mem2 + cur2 - reset_of(spk2)
            spk2 = jnp.where(mem2 > thr, one, zero)
            spk_ref[t] = spk2                                  # full 128-lane vst
            mem_ref[t] = mem2


def pad_params(w1, b1, w2, b2):
    """Pad & cast the network parameters ONCE (outside the per-call path)."""
    I, H = w1.shape
    O = w2.shape[1]
    Ip = _round_up(I, 128)
    Hp = _round_up(H, 128)
    Op = _round_up(O, 128)
    f32 = jnp.float32
    return {
        "w1": jnp.zeros((Ip, Hp), f32).at[:I, :H].set(w1.astype(f32)),
        "b1": jnp.zeros((1, Hp), f32).at[0, :H].set(b1.astype(f32)),
        "w2": jnp.zeros((Hp, Op), f32).at[:H, :O].set(w2.astype(f32)),
        "b2": jnp.zeros((1, Op), f32).at[0, :O].set(b2.astype(f32)),
        "dims": (I, H, O),
    }


def snn_forward(params, x, *, beta=0.9, threshold=1.0, num_steps=25, time_chunk=5):
    """x: (B, I) f32; params from pad_params.

    Returns (spk2_rec, mem2_rec), each (num_steps, B, O) f32.
    """
    I, H, O = params["dims"]
    w1_p, b1_p, w2_p, b2_p = params["w1"], params["b1"], params["w2"], params["b2"]
    Ip, Hp = w1_p.shape
    Op = w2_p.shape[1]

    B = x.shape[0]
    assert x.shape[1] == I

    # Batch tiling: pad to sublane granularity, tile at <=128 rows per program so
    # independent batch tiles can be sharded across TensorCores ("parallel").
    Bp0 = max(8, _round_up(B, 8))
    b_tile = Bp0 if Bp0 <= 128 else 128
    Bp = _round_up(Bp0, b_tile)
    n_btiles = Bp // b_tile

    chunk = max(1, min(int(time_chunk), int(num_steps)))

    f32 = jnp.float32
    x_p = jnp.zeros((Bp, Ip), f32).at[:B, :I].set(x.astype(f32))

    kernel = functools.partial(
        _snn_kernel, beta=float(beta), threshold=float(threshold),
        num_steps=int(num_steps), chunk=chunk)

    spk_rec_p, mem_rec_p = pl.pallas_call(
        kernel,
        out_shape=(
            jax.ShapeDtypeStruct((num_steps, Bp, Op), f32),
            jax.ShapeDtypeStruct((num_steps, Bp, Op), f32),
        ),
        grid_spec=pltpu.PrefetchScalarGridSpec(
            num_scalar_prefetch=0,
            grid=(n_btiles,),
            in_specs=[
                pl.BlockSpec((b_tile, Ip), lambda b: (b, 0)),   # x (per batch tile)
                pl.BlockSpec((Ip, Hp), lambda b: (0, 0)),       # w1 (resident)
                pl.BlockSpec((1, Hp), lambda b: (0, 0)),        # b1
                pl.BlockSpec((Hp, Op), lambda b: (0, 0)),       # w2 (resident)
                pl.BlockSpec((1, Op), lambda b: (0, 0)),        # b2
            ],
            out_specs=(
                pl.BlockSpec((num_steps, b_tile, Op), lambda b: (0, b, 0)),
                pl.BlockSpec((num_steps, b_tile, Op), lambda b: (0, b, 0)),
            ),
            scratch_shapes=[
                pltpu.VMEM((2, chunk * b_tile, Hp), f32),       # spk1 chunk (2 slots)
                pltpu.VMEM((2, chunk * b_tile, Op), f32),       # cur2 chunk (2 slots)
            ],
        ),
        compiler_params=pltpu.CompilerParams(
            dimension_semantics=("parallel",),
            vmem_limit_bytes=32 << 20),
    )(x_p, w1_p, b1_p, w2_p, b2_p)

    # Strip lane / sublane padding in the wrapper.
    return spk_rec_p[:, :B, :O], mem_rec_p[:, :B, :O]


def _reference(x, w1, b1, w2, b2, *, beta=0.9, threshold=1.0, num_steps=25):
    """Pure-JAX reference mirroring the PyTorch/snntorch forward."""
    cur1 = x @ w1 + b1
    mem1 = jnp.zeros_like(cur1)
    mem2 = jnp.zeros((x.shape[0], w2.shape[1]), jnp.float32)
    spks, mems = [], []
    for _ in range(num_steps):
        r1 = (mem1 > threshold).astype(jnp.float32)
        mem1 = beta * mem1 + cur1 - r1 * threshold
        spk1 = (mem1 > threshold).astype(jnp.float32)
        cur2 = spk1 @ w2 + b2
        r2 = (mem2 > threshold).astype(jnp.float32)
        mem2 = beta * mem2 + cur2 - r2 * threshold
        spk2 = (mem2 > threshold).astype(jnp.float32)
        spks.append(spk2)
        mems.append(mem2)
    return jnp.stack(spks, 0), jnp.stack(mems, 0)


if __name__ == "__main__":
    # Small, forward-consistent shapes.
    batch = 2
    number_inputs = 256
    number_hidden = 128
    number_outputs = 10
    beta = 0.9
    num_steps = 25

    key = jax.random.PRNGKey(0)
    kx, k1, kb1, k2, kb2 = jax.random.split(key, 5)

    # Deterministic init mimicking nn.Linear's U(-1/sqrt(fan_in), 1/sqrt(fan_in)).
    bound1 = 1.0 / (number_inputs ** 0.5)
    bound2 = 1.0 / (number_hidden ** 0.5)
    x = jax.random.normal(kx, (batch, number_inputs), jnp.float32)
    w1 = jax.random.uniform(k1, (number_inputs, number_hidden), jnp.float32,
                            -bound1, bound1)
    b1 = jax.random.uniform(kb1, (number_hidden,), jnp.float32, -bound1, bound1)
    w2 = jax.random.uniform(k2, (number_hidden, number_outputs), jnp.float32,
                            -bound2, bound2)
    b2 = jax.random.uniform(kb2, (number_outputs,), jnp.float32, -bound2, bound2)

    params = pad_params(w1, b1, w2, b2)   # padded/cast once, outside the hot path

    spk_rec, mem_rec = snn_forward(params, x, beta=beta, num_steps=num_steps)
    jax.block_until_ready((spk_rec, mem_rec))

    # Sanity check against pure-JAX reference.
    spk_ref, mem_ref = _reference(x, w1, b1, w2, b2, beta=beta,
                                  num_steps=num_steps)
    assert spk_rec.shape == (num_steps, batch, number_outputs)
    assert mem_rec.shape == (num_steps, batch, number_outputs)
    assert jnp.allclose(spk_rec, spk_ref, atol=1e-5)
    assert jnp.allclose(mem_rec, mem_ref, atol=1e-5)

    print("KERNEL_OK")
</pallas_src>

<mosaic_0001>
module attributes {stable_mosaic.version = 11 : i64} {
  func.func @_snn_kernel(%arg0: i32, %arg1: memref<8x256xf32, #tpu.memory_space<vmem>>, %arg2: memref<256x128xf32, #tpu.memory_space<vmem>>, %arg3: memref<1x128xf32, #tpu.memory_space<vmem>>, %arg4: memref<128x128xf32, #tpu.memory_space<vmem>>, %arg5: memref<1x128xf32, #tpu.memory_space<vmem>>, %arg6: memref<25x8x128xf32, #tpu.memory_space<vmem>>, %arg7: memref<25x8x128xf32, #tpu.memory_space<vmem>>, %arg8: memref<2x40x128xf32, #tpu.memory_space<vmem>>, %arg9: memref<2x40x128xf32, #tpu.memory_space<vmem>>) attributes {dimension_semantics = [#tpu.dimension_semantics<parallel>], iteration_bounds = array<i64: 1>, scalar_prefetch = 0 : i64, scratch_operands = 2 : i64, tpu.core_type = #tpu.core_type<tc>, window_params = [{transform_indices = @transform_0, window_bounds = array<i64: 8, 256>}, {pipeline_mode = #tpu.pipeline_mode<synchronous>, transform_indices = @transform_1, window_bounds = array<i64: 256, 128>}, {pipeline_mode = #tpu.pipeline_mode<synchronous>, transform_indices = @transform_2, window_bounds = array<i64: 1, 128>}, {pipeline_mode = #tpu.pipeline_mode<synchronous>, transform_indices = @transform_3, window_bounds = array<i64: 128, 128>}, {pipeline_mode = #tpu.pipeline_mode<synchronous>, transform_indices = @transform_4, window_bounds = array<i64: 1, 128>}, {transform_indices = @transform_5, window_bounds = array<i64: 25, 8, 128>}, {transform_indices = @transform_6, window_bounds = array<i64: 25, 8, 128>}]} {
    %c0 = arith.constant 0 : index
    %c0_0 = arith.constant 0 : index
    %0 = vector.load %arg1[%c0, %c0_0] : memref<8x256xf32, #tpu.memory_space<vmem>>, vector<8x256xf32>
    %c0_1 = arith.constant 0 : index
    %c0_2 = arith.constant 0 : index
    %1 = vector.load %arg2[%c0_1, %c0_2] : memref<256x128xf32, #tpu.memory_space<vmem>>, vector<256x128xf32>
    %c0_3 = arith.constant 0 : index
    %c0_4 = arith.constant 0 : index
    %2 = vector.load %arg3[%c0_3, %c0_4] : memref<1x128xf32, #tpu.memory_space<vmem>>, vector<1x128xf32>
    %c0_5 = arith.constant 0 : index
    %c0_6 = arith.constant 0 : index
    %3 = vector.load %arg4[%c0_5, %c0_6] : memref<128x128xf32, #tpu.memory_space<vmem>>, vector<128x128xf32>
    %c0_7 = arith.constant 0 : index
    %c0_8 = arith.constant 0 : index
    %4 = vector.load %arg5[%c0_7, %c0_8] : memref<1x128xf32, #tpu.memory_space<vmem>>, vector<1x128xf32>
    %cst = arith.constant dense<0.000000e+00> : vector<8x128xf32>
    %5 = tpu.matmul %0, %1, %cst {dimension_numbers = #tpu.dot_dimension_numbers<[1], [0], [0], [1], [0, 0, 1, 1], [], []>} : vector<8x256xf32>, vector<256x128xf32>, vector<8x128xf32> -> vector<8x128xf32>
    %6 = vector.broadcast %2 : vector<1x128xf32> to vector<8x128xf32>
    %7 = arith.addf %5, %6 : vector<8x128xf32>
    %cst_9 = arith.constant 0.000000e+00 : f32
    %8 = vector.broadcast %cst_9 : f32 to vector<8x128xf32>
    %cst_10 = arith.constant 0.000000e+00 : f32
    %9 = vector.broadcast %cst_10 : f32 to vector<8x128xf32>
    %cst_11 = arith.constant 0.000000e+00 : f32
    %10 = vector.broadcast %cst_11 : f32 to vector<8x128xf32>
    %cst_12 = arith.constant 0.000000e+00 : f32
    %11 = vector.broadcast %cst_12 : f32 to vector<8x128xf32>
    %cst_13 = arith.constant 0.899999976 : f32
    %12 = vector.broadcast %cst_13 : f32 to vector<8x128xf32>
    %13 = arith.mulf %12, %8 : vector<8x128xf32>
    %14 = arith.addf %13, %7 : vector<8x128xf32>
    %15 = arith.subf %14, %9 : vector<8x128xf32>
    %cst_14 = arith.constant 1.000000e+00 : f32
    %16 = vector.broadcast %cst_14 : f32 to vector<8x128xf32>
    %17 = arith.cmpf ogt, %15, %16 : vector<8x128xf32>
    %cst_15 = arith.constant 1.000000e+00 : f32
    %cst_16 = arith.constant 0.000000e+00 : f32
    %18 = vector.broadcast %cst_15 : f32 to vector<8x128xf32>
    %19 = vector.broadcast %cst_16 : f32 to vector<8x128xf32>
    %20 = arith.select %17, %18, %19 : vector<8x128xi1>, vector<8x128xf32>
    %c0_i32 = arith.constant 0 : i32
    %c0_i32_17 = arith.constant 0 : i32
    %c0_i32_18 = arith.constant 0 : i32
    %21 = tpu.memref_slice %arg8[%c0_i32, %c0_i32_17, %c0_i32_18] : memref<2x40x128xf32, #tpu.memory_space<vmem>> -> memref<1x40x128xf32, #tpu.memory_space<vmem>>
    %22 = tpu.memref_squeeze %21 : memref<1x40x128xf32, #tpu.memory_space<vmem>> -> memref<40x128xf32, #tpu.memory_space<vmem>>
    %c0_19 = arith.constant 0 : index
    %c0_20 = arith.constant 0 : index
    %23 = vector.load %22[%c0_19, %c0_20] : memref<40x128xf32, #tpu.memory_space<vmem>>, vector<8x128xf32>
    tpu.vector_store %22[%c0_19, %c0_20], %20 {strides = array<i32>} : memref<40x128xf32, #tpu.memory_space<vmem>>, vector<8x128xf32>,
    %cst_21 = arith.constant 0.899999976 : f32
    %24 = vector.broadcast %cst_21 : f32 to vector<8x128xf32>
    %25 = arith.mulf %24, %15 : vector<8x128xf32>
    %26 = arith.addf %25, %7 : vector<8x128xf32>
    %27 = arith.subf %26, %20 : vector<8x128xf32>
    %cst_22 = arith.constant 1.000000e+00 : f32
    %28 = vector.broadcast %cst_22 : f32 to vector<8x128xf32>
    %29 = arith.cmpf ogt, %27, %28 : vector<8x128xf32>
    %cst_23 = arith.constant 1.000000e+00 : f32
    %cst_24 = arith.constant 0.000000e+00 : f32
    %30 = vector.broadcast %cst_23 : f32 to vector<8x128xf32>
    %31 = vector.broadcast %cst_24 : f32 to vector<8x128xf32>
    %32 = arith.select %29, %30, %31 : vector<8x128xi1>, vector<8x128xf32>
    %c0_i32_25 = arith.constant 0 : i32
    %c0_i32_26 = arith.constant 0 : i32
    %c0_i32_27 = arith.constant 0 : i32
    %33 = tpu.memref_slice %arg8[%c0_i32_25, %c0_i32_26, %c0_i32_27] : memref<2x40x128xf32, #tpu.memory_space<vmem>> -> memref<1x40x128xf32, #tpu.memory_space<vmem>>
    %34 = tpu.memref_squeeze %33 : memref<1x40x128xf32, #tpu.memory_space<vmem>> -> memref<40x128xf32, #tpu.memory_space<vmem>>
    %c8 = arith.constant 8 : index
    %c0_28 = arith.constant 0 : index
    %35 = vector.load %34[%c8, %c0_28] : memref<40x128xf32, #tpu.memory_space<vmem>>, vector<8x128xf32>
    tpu.vector_store %34[%c8, %c0_28], %32 {strides = array<i32>} : memref<40x128xf32, #tpu.memory_space<vmem>>, vector<8x128xf32>,
    %cst_29 = arith.constant 0.899999976 : f32
    %36 = vector.broadcast %cst_29 : f32 to vector<8x128xf32>
    %37 = arith.mulf %36, %27 : vector<8x128xf32>
    %38 = arith.addf %37, %7 : vector<8x128xf32>
    %39 = arith.subf %38, %32 : vector<8x128xf32>
    %cst_30 = arith.constant 1.000000e+00 : f32
    %40 = vector.broadcast %cst_30 : f32 to vector<8x128xf32>
    %41 = arith.cmpf ogt, %39, %40 : vector<8x128xf32>
    %cst_31 = arith.constant 1.000000e+00 : f32
    %cst_32 = arith.constant 0.000000e+00 : f32
    %42 = vector.broadcast %cst_31 : f32 to vector<8x128xf32>
    %43 = vector.broadcast %cst_32 : f32 to vector<8x128xf32>
    %44 = arith.select %41, %42, %43 : vector<8x128xi1>, vector<8x128xf32>
    %c0_i32_33 = arith.constant 0 : i32
    %c0_i32_34 = arith.constant 0 : i32
    %c0_i32_35 = arith.constant 0 : i32
    %45 = tpu.memref_slice %arg8[%c0_i32_33, %c0_i32_34, %c0_i32_35] : memref<2x40x128xf32, #tpu.memory_space<vmem>> -> memref<1x40x128xf32, #tpu.memory_space<vmem>>
    %46 = tpu.memref_squeeze %45 : memref<1x40x128xf32, #tpu.memory_space<vmem>> -> memref<40x128xf32, #tpu.memory_space<vmem>>
    %c16 = arith.constant 16 : index
    %c0_36 = arith.constant 0 : index
    %47 = vector.load %46[%c16, %c0_36] : memref<40x128xf32, #tpu.memory_space<vmem>>, vector<8x128xf32>
    tpu.vector_store %46[%c16, %c0_36], %44 {strides = array<i32>} : memref<40x128xf32, #tpu.memory_space<vmem>>, vector<8x128xf32>,
    %cst_37 = arith.constant 0.899999976 : f32
    %48 = vector.broadcast %cst_37 : f32 to vector<8x128xf32>
    %49 = arith.mulf %48, %39 : vector<8x128xf32>
    %50 = arith.addf %49, %7 : vector<8x128xf32>
    %51 = arith.subf %50, %44 : vector<8x128xf32>
    %cst_38 = arith.constant 1.000000e+00 : f32
    %52 = vector.broadcast %cst_38 : f32 to vector<8x128xf32>
    %53 = arith.cmpf ogt, %51, %52 : vector<8x128xf32>
    %cst_39 = arith.constant 1.000000e+00 : f32
    %cst_40 = arith.constant 0.000000e+00 : f32
    %54 = vector.broadcast %cst_39 : f32 to vector<8x128xf32>
    %55 = vector.broadcast %cst_40 : f32 to vector<8x128xf32>
    %56 = arith.select %53, %54, %55 : vector<8x128xi1>, vector<8x128xf32>
    %c0_i32_41 = arith.constant 0 : i32
    %c0_i32_42 = arith.constant 0 : i32
    %c0_i32_43 = arith.constant 0 : i32
    %57 = tpu.memref_slice %arg8[%c0_i32_41, %c0_i32_42, %c0_i32_43] : memref<2x40x128xf32, #tpu.memory_space<vmem>> -> memref<1x40x128xf32, #tpu.memory_space<vmem>>
    %58 = tpu.memref_squeeze %57 : memref<1x40x128xf32, #tpu.memory_space<vmem>> -> memref<40x128xf32, #tpu.memory_space<vmem>>
    %c24 = arith.constant 24 : index
    %c0_44 = arith.constant 0 : index
    %59 = vector.load %58[%c24, %c0_44] : memref<40x128xf32, #tpu.memory_space<vmem>>, vector<8x128xf32>
    tpu.vector_store %58[%c24, %c0_44], %56 {strides = array<i32>} : memref<40x128xf32, #tpu.memory_space<vmem>>, vector<8x128xf32>,
    %cst_45 = arith.constant 0.899999976 : f32
    %60 = vector.broadcast %cst_45 : f32 to vector<8x128xf32>
    %61 = arith.mulf %60, %51 : vector<8x128xf32>
    %62 = arith.addf %61, %7 : vector<8x128xf32>
    %63 = arith.subf %62, %56 : vector<8x128xf32>
    %cst_46 = arith.constant 1.000000e+00 : f32
    %64 = vector.broadcast %cst_46 : f32 to vector<8x128xf32>
    %65 = arith.cmpf ogt, %63, %64 : vector<8x128xf32>
    %cst_47 = arith.constant 1.000000e+00 : f32
    %cst_48 = arith.constant 0.000000e+00 : f32
    %66 = vector.broadcast %cst_47 : f32 to vector<8x128xf32>
    %67 = vector.broadcast %cst_48 : f32 to vector<8x128xf32>
    %68 = arith.select %65, %66, %67 : vector<8x128xi1>, vector<8x128xf32>
    %c0_i32_49 = arith.constant 0 : i32
    %c0_i32_50 = arith.constant 0 : i32
    %c0_i32_51 = arith.constant 0 : i32
    %69 = tpu.memref_slice %arg8[%c0_i32_49, %c0_i32_50, %c0_i32_51] : memref<2x40x128xf32, #tpu.memory_space<vmem>> -> memref<1x40x128xf32, #tpu.memory_space<vmem>>
    %70 = tpu.memref_squeeze %69 : memref<1x40x128xf32, #tpu.memory_space<vmem>> -> memref<40x128xf32, #tpu.memory_space<vmem>>
    %c32 = arith.constant 32 : index
    %c0_52 = arith.constant 0 : index
    %71 = vector.load %70[%c32, %c0_52] : memref<40x128xf32, #tpu.memory_space<vmem>>, vector<8x128xf32>
    tpu.vector_store %70[%c32, %c0_52], %68 {strides = array<i32>} : memref<40x128xf32, #tpu.memory_space<vmem>>, vector<8x128xf32>,
    %c0_i32_53 = arith.constant 0 : i32
    %c0_i32_54 = arith.constant 0 : i32
    %c0_i32_55 = arith.constant 0 : i32
    %72 = tpu.memref_slice %arg8[%c0_i32_53, %c0_i32_54, %c0_i32_55] : memref<2x40x128xf32, #tpu.memory_space<vmem>> -> memref<1x40x128xf32, #tpu.memory_space<vmem>>
    %73 = tpu.memref_squeeze %72 : memref<1x40x128xf32, #tpu.memory_space<vmem>> -> memref<40x128xf32, #tpu.memory_space<vmem>>
    %c0_56 = arith.constant 0 : index
    %c0_57 = arith.constant 0 : index
    %74 = vector.load %73[%c0_56, %c0_57] : memref<40x128xf32, #tpu.memory_space<vmem>>, vector<40x128xf32>
    %cst_58 = arith.constant dense<0.000000e+00> : vector<40x128xf32>
    %75 = tpu.matmul %74, %3, %cst_58 {dimension_numbers = #tpu.dot_dimension_numbers<[1], [0], [0], [1], [0, 0, 1, 1], [], []>} : vector<40x128xf32>, vector<128x128xf32>, vector<40x128xf32> -> vector<40x128xf32>
    %76 = vector.broadcast %4 : vector<1x128xf32> to vector<40x128xf32>
    %77 = arith.addf %75, %76 : vector<40x128xf32>
    %c0_i32_59 = arith.constant 0 : i32
    %c0_i32_60 = arith.constant 0 : i32
    %c0_i32_61 = arith.constant 0 : i32
    %78 = tpu.memref_slice %arg9[%c0_i32_59, %c0_i32_60, %c0_i32_61] : memref<2x40x128xf32, #tpu.memory_space<vmem>> -> memref<1x40x128xf32, #tpu.memory_space<vmem>>
    %79 = tpu.memref_squeeze %78 : memref<1x40x128xf32, #tpu.memory_space<vmem>> -> memref<40x128xf32, #tpu.memory_space<vmem>>
    %c0_62 = arith.constant 0 : index
    %c0_63 = arith.constant 0 : index
    %80 = vector.load %79[%c0_62, %c0_63] : memref<40x128xf32, #tpu.memory_space<vmem>>, vector<40x128xf32>
    tpu.vector_store %79[%c0_62, %c0_63], %77 {strides = array<i32>} : memref<40x128xf32, #tpu.memory_space<vmem>>, vector<40x128xf32>,
    %cst_64 = arith.constant 0.899999976 : f32
    %81 = vector.broadcast %cst_64 : f32 to vector<8x128xf32>
    %82 = arith.mulf %81, %63 : vector<8x128xf32>
    %83 = arith.addf %82, %7 : vector<8x128xf32>
    %84 = arith.subf %83, %68 : vector<8x128xf32>
    %cst_65 = arith.constant 1.000000e+00 : f32
    %85 = vector.broadcast %cst_65 : f32 to vector<8x128xf32>
    %86 = arith.cmpf ogt, %84, %85 : vector<8x128xf32>
    %cst_66 = arith.constant 1.000000e+00 : f32
    %cst_67 = arith.constant 0.000000e+00 : f32
    %87 = vector.broadcast %cst_66 : f32 to vector<8x128xf32>
    %88 = vector.broadcast %cst_67 : f32 to vector<8x128xf32>
    %89 = arith.select %86, %87, %88 : vector<8x128xi1>, vector<8x128xf32>
    %c1_i32 = arith.constant 1 : i32
    %c0_i32_68 = arith.constant 0 : i32
    %c0_i32_69 = arith.constant 0 : i32
    %90 = tpu.memref_slice %arg8[%c1_i32, %c0_i32_68, %c0_i32_69] : memref<2x40x128xf32, #tpu.memory_space<vmem>> -> memref<1x40x128xf32, #tpu.memory_space<vmem>>
    %91 = tpu.memref_squeeze %90 : memref<1x40x128xf32, #tpu.memory_space<vmem>> -> memref<40x128xf32, #tpu.memory_space<vmem>>
    %c0_70 = arith.constant 0 : index
    %c0_71 = arith.constant 0 : index
    %92 = vector.load %91[%c0_70, %c0_71] : memref<40x128xf32, #tpu.memory_space<vmem>>, vector<8x128xf32>
    tpu.vector_store %91[%c0_70, %c0_71], %89 {strides = array<i32>} : memref<40x128xf32, #tpu.memory_space<vmem>>, vector<8x128xf32>,
    %cst_72 = arith.constant 0.899999976 : f32
    %93 = vector.broadcast %cst_72 : f32 to vector<8x128xf32>
    %94 = arith.mulf %93, %84 : vector<8x128xf32>
    %95 = arith.addf %94, %7 : vector<8x128xf32>
    %96 = arith.subf %95, %89 : vector<8x128xf32>
    %cst_73 = arith.constant 1.000000e+00 : f32
    %97 = vector.broadcast %cst_73 : f32 to vector<8x128xf32>
    %98 = arith.cmpf ogt, %96, %97 : vector<8x128xf32>
    %cst_74 = arith.constant 1.000000e+00 : f32
    %cst_75 = arith.constant 0.000000e+00 : f32
    %99 = vector.broadcast %cst_74 : f32 to vector<8x128xf32>
    %100 = vector.broadcast %cst_75 : f32 to vector<8x128xf32>
    %101 = arith.select %98, %99, %100 : vector<8x128xi1>, vector<8x128xf32>
    %c1_i32_76 = arith.constant 1 : i32
    %c0_i32_77 = arith.constant 0 : i32
    %c0_i32_78 = arith.constant 0 : i32
    %102 = tpu.memref_slice %arg8[%c1_i32_76, %c0_i32_77, %c0_i32_78] : memref<2x40x128xf32, #tpu.memory_space<vmem>> -> memref<1x40x128xf32, #tpu.memory_space<vmem>>
    %103 = tpu.memref_squeeze %102 : memref<1x40x128xf32, #tpu.memory_space<vmem>> -> memref<40x128xf32, #tpu.memory_space<vmem>>
    %c8_79 = arith.constant 8 : index
    %c0_80 = arith.constant 0 : index
    %104 = vector.load %103[%c8_79, %c0_80] : memref<40x128xf32, #tpu.memory_space<vmem>>, vector<8x128xf32>
    tpu.vector_store %103[%c8_79, %c0_80], %101 {strides = array<i32>} : memref<40x128xf32, #tpu.memory_space<vmem>>, vector<8x128xf32>,
    %cst_81 = arith.constant 0.899999976 : f32
    %105 = vector.broadcast %cst_81 : f32 to vector<8x128xf32>
    %106 = arith.mulf %105, %96 : vector<8x128xf32>
    %107 = arith.addf %106, %7 : vector<8x128xf32>
    %108 = arith.subf %107, %101 : vector<8x128xf32>
    %cst_82 = arith.constant 1.000000e+00 : f32
    %109 = vector.broadcast %cst_82 : f32 to vector<8x128xf32>
    %110 = arith.cmpf ogt, %108, %109 : vector<8x128xf32>
    %cst_83 = arith.constant 1.000000e+00 : f32
    %cst_84 = arith.constant 0.000000e+00 : f32
    %111 = vector.broadcast %cst_83 : f32 to vector<8x128xf32>
    %112 = vector.broadcast %cst_84 : f32 to vector<8x128xf32>
    %113 = arith.select %110, %111, %112 : vector<8x128xi1>, vector<8x128xf32>
    %c1_i32_85 = arith.constant 1 : i32
    %c0_i32_86 = arith.constant 0 : i32
    %c0_i32_87 = arith.constant 0 : i32
    %114 = tpu.memref_slice %arg8[%c1_i32_85, %c0_i32_86, %c0_i32_87] : memref<2x40x128xf32, #tpu.memory_space<vmem>> -> memref<1x40x128xf32, #tpu.memory_space<vmem>>
    %115 = tpu.memref_squeeze %114 : memref<1x40x128xf32, #tpu.memory_space<vmem>> -> memref<40x128xf32, #tpu.memory_space<vmem>>
    %c16_88 = arith.constant 16 : index
    %c0_89 = arith.constant 0 : index
    %116 = vector.load %115[%c16_88, %c0_89] : memref<40x128xf32, #tpu.memory_space<vmem>>, vector<8x128xf32>
    tpu.vector_store %115[%c16_88, %c0_89], %113 {strides = array<i32>} : memref<40x128xf32, #tpu.memory_space<vmem>>, vector<8x128xf32>,
    %cst_90 = arith.constant 0.899999976 : f32
    %117 = vector.broadcast %cst_90 : f32 to vector<8x128xf32>
    %118 = arith.mulf %117, %108 : vector<8x128xf32>
    %119 = arith.addf %118, %7 : vector<8x128xf32>
    %120 = arith.subf %119, %113 : vector<8x128xf32>
    %cst_91 = arith.constant 1.000000e+00 : f32
    %121 = vector.broadcast %cst_91 : f32 to vector<8x128xf32>
    %122 = arith.cmpf ogt, %120, %121 : vector<8x128xf32>
    %cst_92 = arith.constant 1.000000e+00 : f32
    %cst_93 = arith.constant 0.000000e+00 : f32
    %123 = vector.broadcast %cst_92 : f32 to vector<8x128xf32>
    %124 = vector.broadcast %cst_93 : f32 to vector<8x128xf32>
    %125 = arith.select %122, %123, %124 : vector<8x128xi1>, vector<8x128xf32>
    %c1_i32_94 = arith.constant 1 : i32
    %c0_i32_95 = arith.constant 0 : i32
    %c0_i32_96 = arith.constant 0 : i32
    %126 = tpu.memref_slice %arg8[%c1_i32_94, %c0_i32_95, %c0_i32_96] : memref<2x40x128xf32, #tpu.memory_space<vmem>> -> memref<1x40x128xf32, #tpu.memory_space<vmem>>
    %127 = tpu.memref_squeeze %126 : memref<1x40x128xf32, #tpu.memory_space<vmem>> -> memref<40x128xf32, #tpu.memory_space<vmem>>
    %c24_97 = arith.constant 24 : index
    %c0_98 = arith.constant 0 : index
    %128 = vector.load %127[%c24_97, %c0_98] : memref<40x128xf32, #tpu.memory_space<vmem>>, vector<8x128xf32>
    tpu.vector_store %127[%c24_97, %c0_98], %125 {strides = array<i32>} : memref<40x128xf32, #tpu.memory_space<vmem>>, vector<8x128xf32>,
    %cst_99 = arith.constant 0.899999976 : f32
    %129 = vector.broadcast %cst_99 : f32 to vector<8x128xf32>
    %130 = arith.mulf %129, %120 : vector<8x128xf32>
    %131 = arith.addf %130, %7 : vector<8x128xf32>
    %132 = arith.subf %131, %125 : vector<8x128xf32>
    %cst_100 = arith.constant 1.000000e+00 : f32
    %133 = vector.broadcast %cst_100 : f32 to vector<8x128xf32>
    %134 = arith.cmpf ogt, %132, %133 : vector<8x128xf32>
    %cst_101 = arith.constant 1.000000e+00 : f32
    %cst_102 = arith.constant 0.000000e+00 : f32
    %135 = vector.broadcast %cst_101 : f32 to vector<8x128xf32>
    %136 = vector.broadcast %cst_102 : f32 to vector<8x128xf32>
    %137 = arith.select %134, %135, %136 : vector<8x128xi1>, vector<8x128xf32>
    %c1_i32_103 = arith.constant 1 : i32
    %c0_i32_104 = arith.constant 0 : i32
    %c0_i32_105 = arith.constant 0 : i32
    %138 = tpu.memref_slice %arg8[%c1_i32_103, %c0_i32_104, %c0_i32_105] : memref<2x40x128xf32, #tpu.memory_space<vmem>> -> memref<1x40x128xf32, #tpu.memory_space<vmem>>
    %139 = tpu.memref_squeeze %138 : memref<1x40x128xf32, #tpu.memory_space<vmem>> -> memref<40x128xf32, #tpu.memory_space<vmem>>
    %c32_106 = arith.constant 32 : index
    %c0_107 = arith.constant 0 : index
    %140 = vector.load %139[%c32_106, %c0_107] : memref<40x128xf32, #tpu.memory_space<vmem>>, vector<8x128xf32>
    tpu.vector_store %139[%c32_106, %c0_107], %137 {strides = array<i32>} : memref<40x128xf32, #tpu.memory_space<vmem>>, vector<8x128xf32>,
    %c0_i32_108 = arith.constant 0 : i32
    %c0_i32_109 = arith.constant 0 : i32
    %c0_i32_110 = arith.constant 0 : i32
    %141 = tpu.memref_slice %arg9[%c0_i32_108, %c0_i32_109, %c0_i32_110] : memref<2x40x128xf32, #tpu.memory_space<vmem>> -> memref<1x40x128xf32, #tpu.memory_space<vmem>>
    %142 = tpu.memref_squeeze %141 : memref<1x40x128xf32, #tpu.memory_space<vmem>> -> memref<40x128xf32, #tpu.memory_space<vmem>>
    %c0_111 = arith.constant 0 : index
    %c0_112 = arith.constant 0 : index
    %143 = vector.load %142[%c0_111, %c0_112] : memref<40x128xf32, #tpu.memory_space<vmem>>, vector<8x128xf32>
    %cst_113 = arith.constant 0.899999976 : f32
    %144 = vector.broadcast %cst_113 : f32 to vector<8x128xf32>
    %145 = arith.mulf %144, %10 : vector<8x128xf32>
    %146 = arith.addf %145, %143 : vector<8x128xf32>
    %147 = arith.subf %146, %11 : vector<8x128xf32>
    %cst_114 = arith.constant 1.000000e+00 : f32
    %148 = vector.broadcast %cst_114 : f32 to vector<8x128xf32>
    %149 = arith.cmpf ogt, %147, %148 : vector<8x128xf32>
    %cst_115 = arith.constant 1.000000e+00 : f32
    %cst_116 = arith.constant 0.000000e+00 : f32
    %150 = vector.broadcast %cst_115 : f32 to vector<8x128xf32>
    %151 = vector.broadcast %cst_116 : f32 to vector<8x128xf32>
    %152 = arith.select %149, %150, %151 : vector<8x128xi1>, vector<8x128xf32>
    %c0_117 = arith.constant 0 : index
    %c0_118 = arith.constant 0 : index
    %c0_119 = arith.constant 0 : index
    %153 = vector.load %arg6[%c0_117, %c0_118, %c0_119] : memref<25x8x128xf32, #tpu.memory_space<vmem>>, vector<1x8x128xf32>
    %154 = vector.shape_cast %153 : vector<1x8x128xf32> to vector<8x128xf32>
    %155 = vector.shape_cast %152 : vector<8x128xf32> to vector<1x8x128xf32>
    tpu.vector_store %arg6[%c0_117, %c0_118, %c0_119], %155 {strides = array<i32>} : memref<25x8x128xf32, #tpu.memory_space<vmem>>, vector<1x8x128xf32>,
    %c0_120 = arith.constant 0 : index
    %c0_121 = arith.constant 0 : index
    %c0_122 = arith.constant 0 : index
    %156 = vector.load %arg7[%c0_120, %c0_121, %c0_122] : memref<25x8x128xf32, #tpu.memory_space<vmem>>, vector<1x8x128xf32>
    %157 = vector.shape_cast %156 : vector<1x8x128xf32> to vector<8x128xf32>
    %158 = vector.shape_cast %147 : vector<8x128xf32> to vector<1x8x128xf32>
    tpu.vector_store %arg7[%c0_120, %c0_121, %c0_122], %158 {strides = array<i32>} : memref<25x8x128xf32, #tpu.memory_space<vmem>>, vector<1x8x128xf32>,
    %c0_i32_123 = arith.constant 0 : i32
    %c0_i32_124 = arith.constant 0 : i32
    %c0_i32_125 = arith.constant 0 : i32
    %159 = tpu.memref_slice %arg9[%c0_i32_123, %c0_i32_124, %c0_i32_125] : memref<2x40x128xf32, #tpu.memory_space<vmem>> -> memref<1x40x128xf32, #tpu.memory_space<vmem>>
    %160 = tpu.memref_squeeze %159 : memref<1x40x128xf32, #tpu.memory_space<vmem>> -> memref<40x128xf32, #tpu.memory_space<vmem>>
    %c8_126 = arith.constant 8 : index
    %c0_127 = arith.constant 0 : index
    %161 = vector.load %160[%c8_126, %c0_127] : memref<40x128xf32, #tpu.memory_space<vmem>>, vector<8x128xf32>
    %cst_128 = arith.constant 0.899999976 : f32
    %162 = vector.broadcast %cst_128 : f32 to vector<8x128xf32>
    %163 = arith.mulf %162, %147 : vector<8x128xf32>
    %164 = arith.addf %163, %161 : vector<8x128xf32>
    %165 = arith.subf %164, %152 : vector<8x128xf32>
    %cst_129 = arith.constant 1.000000e+00 : f32
    %166 = vector.broadcast %cst_129 : f32 to vector<8x128xf32>
    %167 = arith.cmpf ogt, %165, %166 : vector<8x128xf32>
    %cst_130 = arith.constant 1.000000e+00 : f32
    %cst_131 = arith.constant 0.000000e+00 : f32
    %168 = vector.broadcast %cst_130 : f32 to vector<8x128xf32>
    %169 = vector.broadcast %cst_131 : f32 to vector<8x128xf32>
    %170 = arith.select %167, %168, %169 : vector<8x128xi1>, vector<8x128xf32>
    %c1 = arith.constant 1 : index
    %c0_132 = arith.constant 0 : index
    %c0_133 = arith.constant 0 : index
    %171 = vector.load %arg6[%c1, %c0_132, %c0_133] : memref<25x8x128xf32, #tpu.memory_space<vmem>>, vector<1x8x128xf32>
    %172 = vector.shape_cast %171 : vector<1x8x128xf32> to vector<8x128xf32>
    %173 = vector.shape_cast %170 : vector<8x128xf32> to vector<1x8x128xf32>
    tpu.vector_store %arg6[%c1, %c0_132, %c0_133], %173 {strides = array<i32>} : memref<25x8x128xf32, #tpu.memory_space<vmem>>, vector<1x8x128xf32>,
    %c1_134 = arith.constant 1 : index
    %c0_135 = arith.constant 0 : index
    %c0_136 = arith.constant 0 : index
    %174 = vector.load %arg7[%c1_134, %c0_135, %c0_136] : memref<25x8x128xf32, #tpu.memory_space<vmem>>, vector<1x8x128xf32>
    %175 = vector.shape_cast %174 : vector<1x8x128xf32> to vector<8x128xf32>
    %176 = vector.shape_cast %165 : vector<8x128xf32> to vector<1x8x128xf32>
    tpu.vector_store %arg7[%c1_134, %c0_135, %c0_136], %176 {strides = array<i32>} : memref<25x8x128xf32, #tpu.memory_space<vmem>>, vector<1x8x128xf32>,
    %c0_i32_137 = arith.constant 0 : i32
    %c0_i32_138 = arith.constant 0 : i32
    %c0_i32_139 = arith.constant 0 : i32
    %177 = tpu.memref_slice %arg9[%c0_i32_137, %c0_i32_138, %c0_i32_139] : memref<2x40x128xf32, #tpu.memory_space<vmem>> -> memref<1x40x128xf32, #tpu.memory_space<vmem>>
    %178 = tpu.memref_squeeze %177 : memref<1x40x128xf32, #tpu.memory_space<vmem>> -> memref<40x128xf32, #tpu.memory_space<vmem>>
    %c16_140 = arith.constant 16 : index
    %c0_141 = arith.constant 0 : index
    %179 = vector.load %178[%c16_140, %c0_141] : memref<40x128xf32, #tpu.memory_space<vmem>>, vector<8x128xf32>
    %cst_142 = arith.constant 0.899999976 : f32
    %180 = vector.broadcast %cst_142 : f32 to vector<8x128xf32>
    %181 = arith.mulf %180, %165 : vector<8x128xf32>
    %182 = arith.addf %181, %179 : vector<8x128xf32>
    %183 = arith.subf %182, %170 : vector<8x128xf32>
    %cst_143 = arith.constant 1.000000e+00 : f32
    %184 = vector.broadcast %cst_143 : f32 to vector<8x128xf32>
    %185 = arith.cmpf ogt, %183, %184 : vector<8x128xf32>
    %cst_144 = arith.constant 1.000000e+00 : f32
    %cst_145 = arith.constant 0.000000e+00 : f32
    %186 = vector.broadcast %cst_144 : f32 to vector<8x128xf32>
    %187 = vector.broadcast %cst_145 : f32 to vector<8x128xf32>
    %188 = arith.select %185, %186, %187 : vector<8x128xi1>, vector<8x128xf32>
    %c2 = arith.constant 2 : index
    %c0_146 = arith.constant 0 : index
    %c0_147 = arith.constant 0 : index
    %189 = vector.load %arg6[%c2, %c0_146, %c0_147] : memref<25x8x128xf32, #tpu.memory_space<vmem>>, vector<1x8x128xf32>
    %190 = vector.shape_cast %189 : vector<1x8x128xf32> to vector<8x128xf32>
    %191 = vector.shape_cast %188 : vector<8x128xf32> to vector<1x8x128xf32>
    tpu.vector_store %arg6[%c2, %c0_146, %c0_147], %191 {strides = array<i32>} : memref<25x8x128xf32, #tpu.memory_space<vmem>>, vector<1x8x128xf32>,
    %c2_148 = arith.constant 2 : index
    %c0_149 = arith.constant 0 : index
    %c0_150 = arith.constant 0 : index
    %192 = vector.load %arg7[%c2_148, %c0_149, %c0_150] : memref<25x8x128xf32, #tpu.memory_space<vmem>>, vector<1x8x128xf32>
    %193 = vector.shape_cast %192 : vector<1x8x128xf32> to vector<8x128xf32>
    %194 = vector.shape_cast %183 : vector<8x128xf32> to vector<1x8x128xf32>
    tpu.vector_store %arg7[%c2_148, %c0_149, %c0_150], %194 {strides = array<i32>} : memref<25x8x128xf32, #tpu.memory_space<vmem>>, vector<1x8x128xf32>,
    %c0_i32_151 = arith.constant 0 : i32
    %c0_i32_152 = arith.constant 0 : i32
    %c0_i32_153 = arith.constant 0 : i32
    %195 = tpu.memref_slice %arg9[%c0_i32_151, %c0_i32_152, %c0_i32_153] : memref<2x40x128xf32, #tpu.memory_space<vmem>> -> memref<1x40x128xf32, #tpu.memory_space<vmem>>
    %196 = tpu.memref_squeeze %195 : memref<1x40x128xf32, #tpu.memory_space<vmem>> -> memref<40x128xf32, #tpu.memory_space<vmem>>
    %c24_154 = arith.constant 24 : index
    %c0_155 = arith.constant 0 : index
    %197 = vector.load %196[%c24_154, %c0_155] : memref<40x128xf32, #tpu.memory_space<vmem>>, vector<8x128xf32>
    %cst_156 = arith.constant 0.899999976 : f32
    %198 = vector.broadcast %cst_156 : f32 to vector<8x128xf32>
    %199 = arith.mulf %198, %183 : vector<8x128xf32>
    %200 = arith.addf %199, %197 : vector<8x128xf32>
    %201 = arith.subf %200, %188 : vector<8x128xf32>
    %cst_157 = arith.constant 1.000000e+00 : f32
    %202 = vector.broadcast %cst_157 : f32 to vector<8x128xf32>
    %203 = arith.cmpf ogt, %201, %202 : vector<8x128xf32>
    %cst_158 = arith.constant 1.000000e+00 : f32
    %cst_159 = arith.constant 0.000000e+00 : f32
    %204 = vector.broadcast %cst_158 : f32 to vector<8x128xf32>
    %205 = vector.broadcast %cst_159 : f32 to vector<8x128xf32>
    %206 = arith.select %203, %204, %205 : vector<8x128xi1>, vector<8x128xf32>
    %c3 = arith.constant 3 : index
    %c0_160 = arith.constant 0 : index
    %c0_161 = arith.constant 0 : index
    %207 = vector.load %arg6[%c3, %c0_160, %c0_161] : memref<25x8x128xf32, #tpu.memory_space<vmem>>, vector<1x8x128xf32>
    %208 = vector.shape_cast %207 : vector<1x8x128xf32> to vector<8x128xf32>
    %209 = vector.shape_cast %206 : vector<8x128xf32> to vector<1x8x128xf32>
    tpu.vector_store %arg6[%c3, %c0_160, %c0_161], %209 {strides = array<i32>} : memref<25x8x128xf32, #tpu.memory_space<vmem>>, vector<1x8x128xf32>,
    %c3_162 = arith.constant 3 : index
    %c0_163 = arith.constant 0 : index
    %c0_164 = arith.constant 0 : index
    %210 = vector.load %arg7[%c3_162, %c0_163, %c0_164] : memref<25x8x128xf32, #tpu.memory_space<vmem>>, vector<1x8x128xf32>
    %211 = vector.shape_cast %210 : vector<1x8x128xf32> to vector<8x128xf32>
    %212 = vector.shape_cast %201 : vector<8x128xf32> to vector<1x8x128xf32>
    tpu.vector_store %arg7[%c3_162, %c0_163, %c0_164], %212 {strides = array<i32>} : memref<25x8x128xf32, #tpu.memory_space<vmem>>, vector<1x8x128xf32>,
    %c0_i32_165 = arith.constant 0 : i32
    %c0_i32_166 = arith.constant 0 : i32
    %c0_i32_167 = arith.constant 0 : i32
    %213 = tpu.memref_slice %arg9[%c0_i32_165, %c0_i32_166, %c0_i32_167] : memref<2x40x128xf32, #tpu.memory_space<vmem>> -> memref<1x40x128xf32, #tpu.memory_space<vmem>>
    %214 = tpu.memref_squeeze %213 : memref<1x40x128xf32, #tpu.memory_space<vmem>> -> memref<40x128xf32, #tpu.memory_space<vmem>>
    %c32_168 = arith.constant 32 : index
    %c0_169 = arith.constant 0 : index
    %215 = vector.load %214[%c32_168, %c0_169] : memref<40x128xf32, #tpu.memory_space<vmem>>, vector<8x128xf32>
    %cst_170 = arith.constant 0.899999976 : f32
    %216 = vector.broadcast %cst_170 : f32 to vector<8x128xf32>
    %217 = arith.mulf %216, %201 : vector<8x128xf32>
    %218 = arith.addf %217, %215 : vector<8x128xf32>
    %219 = arith.subf %218, %206 : vector<8x128xf32>
    %cst_171 = arith.constant 1.000000e+00 : f32
    %220 = vector.broadcast %cst_171 : f32 to vector<8x128xf32>
    %221 = arith.cmpf ogt, %219, %220 : vector<8x128xf32>
    %cst_172 = arith.constant 1.000000e+00 : f32
    %cst_173 = arith.constant 0.000000e+00 : f32
    %222 = vector.broadcast %cst_172 : f32 to vector<8x128xf32>
    %223 = vector.broadcast %cst_173 : f32 to vector<8x128xf32>
    %224 = arith.select %221, %222, %223 : vector<8x128xi1>, vector<8x128xf32>
    %c4 = arith.constant 4 : index
    %c0_174 = arith.constant 0 : index
    %c0_175 = arith.constant 0 : index
    %225 = vector.load %arg6[%c4, %c0_174, %c0_175] : memref<25x8x128xf32, #tpu.memory_space<vmem>>, vector<1x8x128xf32>
    %226 = vector.shape_cast %225 : vector<1x8x128xf32> to vector<8x128xf32>
    %227 = vector.shape_cast %224 : vector<8x128xf32> to vector<1x8x128xf32>
    tpu.vector_store %arg6[%c4, %c0_174, %c0_175], %227 {strides = array<i32>} : memref<25x8x128xf32, #tpu.memory_space<vmem>>, vector<1x8x128xf32>,
    %c4_176 = arith.constant 4 : index
    %c0_177 = arith.constant 0 : index
    %c0_178 = arith.constant 0 : index
    %228 = vector.load %arg7[%c4_176, %c0_177, %c0_178] : memref<25x8x128xf32, #tpu.memory_space<vmem>>, vector<1x8x128xf32>
    %229 = vector.shape_cast %228 : vector<1x8x128xf32> to vector<8x128xf32>
    %230 = vector.shape_cast %219 : vector<8x128xf32> to vector<1x8x128xf32>
    tpu.vector_store %arg7[%c4_176, %c0_177, %c0_178], %230 {strides = array<i32>} : memref<25x8x128xf32, #tpu.memory_space<vmem>>, vector<1x8x128xf32>,
    %c1_i32_179 = arith.constant 1 : i32
    %c0_i32_180 = arith.constant 0 : i32
    %c0_i32_181 = arith.constant 0 : i32
    %231 = tpu.memref_slice %arg8[%c1_i32_179, %c0_i32_180, %c0_i32_181] : memref<2x40x128xf32, #tpu.memory_space<vmem>> -> memref<1x40x128xf32, #tpu.memory_space<vmem>>
    %232 = tpu.memref_squeeze %231 : memref<1x40x128xf32, #tpu.memory_space<vmem>> -> memref<40x128xf32, #tpu.memory_space<vmem>>
    %c0_182 = arith.constant 0 : index
    %c0_183 = arith.constant 0 : index
    %233 = vector.load %232[%c0_182, %c0_183] : memref<40x128xf32, #tpu.memory_space<vmem>>, vector<40x128xf32>
    %cst_184 = arith.constant dense<0.000000e+00> : vector<40x128xf32>
    %234 = tpu.matmul %233, %3, %cst_184 {dimension_numbers = #tpu.dot_dimension_numbers<[1], [0], [0], [1], [0, 0, 1, 1], [], []>} : vector<40x128xf32>, vector<128x128xf32>, vector<40x128xf32> -> vector<40x128xf32>
    %235 = vector.broadcast %4 : vector<1x128xf32> to vector<40x128xf32>
    %236 = arith.addf %234, %235 : vector<40x128xf32>
    %c1_i32_185 = arith.constant 1 : i32
    %c0_i32_186 = arith.constant 0 : i32
    %c0_i32_187 = arith.constant 0 : i32
    %237 = tpu.memref_slice %arg9[%c1_i32_185, %c0_i32_186, %c0_i32_187] : memref<2x40x128xf32, #tpu.memory_space<vmem>> -> memref<1x40x128xf32, #tpu.memory_space<vmem>>
    %238 = tpu.memref_squeeze %237 : memref<1x40x128xf32, #tpu.memory_space<vmem>> -> memref<40x128xf32, #tpu.memory_space<vmem>>
    %c0_188 = arith.constant 0 : index
    %c0_189 = arith.constant 0 : index
    %239 = vector.load %238[%c0_188, %c0_189] : memref<40x128xf32, #tpu.memory_space<vmem>>, vector<40x128xf32>
    tpu.vector_store %238[%c0_188, %c0_189], %236 {strides = array<i32>} : memref<40x128xf32, #tpu.memory_space<vmem>>, vector<40x128xf32>,
    %cst_190 = arith.constant 0.899999976 : f32
    %240 = vector.broadcast %cst_190 : f32 to vector<8x128xf32>
    %241 = arith.mulf %240, %132 : vector<8x128xf32>
    %242 = arith.addf %241, %7 : vector<8x128xf32>
    %243 = arith.subf %242, %137 : vector<8x128xf32>
    %cst_191 = arith.constant 1.000000e+00 : f32
    %244 = vector.broadcast %cst_191 : f32 to vector<8x128xf32>
    %245 = arith.cmpf ogt, %243, %244 : vector<8x128xf32>
    %cst_192 = arith.constant 1.000000e+00 : f32
    %cst_193 = arith.constant 0.000000e+00 : f32
    %246 = vector.broadcast %cst_192 : f32 to vector<8x128xf32>
    %247 = vector.broadcast %cst_193 : f32 to vector<8x128xf32>
    %248 = arith.select %245, %246, %247 : vector<8x128xi1>, vector<8x128xf32>
    %c0_i32_194 = arith.constant 0 : i32
    %c0_i32_195 = arith.constant 0 : i32
    %c0_i32_196 = arith.constant 0 : i32
    %249 = tpu.memref_slice %arg8[%c0_i32_194, %c0_i32_195, %c0_i32_196] : memref<2x40x128xf32, #tpu.memory_space<vmem>> -> memref<1x40x128xf32, #tpu.memory_space<vmem>>
    %250 = tpu.memref_squeeze %249 : memref<1x40x128xf32, #tpu.memory_space<vmem>> -> memref<40x128xf32, #tpu.memory_space<vmem>>
    %c0_197 = arith.constant 0 : index
    %c0_198 = arith.constant 0 : index
    %251 = vector.load %250[%c0_197, %c0_198] : memref<40x128xf32, #tpu.memory_space<vmem>>, vector<8x128xf32>
    tpu.vector_store %250[%c0_197, %c0_198], %248 {strides = array<i32>} : memref<40x128xf32, #tpu.memory_space<vmem>>, vector<8x128xf32>,
    %cst_199 = arith.constant 0.899999976 : f32
    %252 = vector.broadcast %cst_199 : f32 to vector<8x128xf32>
    %253 = arith.mulf %252, %243 : vector<8x128xf32>
    %254 = arith.addf %253, %7 : vector<8x128xf32>
    %255 = arith.subf %254, %248 : vector<8x128xf32>
    %cst_200 = arith.constant 1.000000e+00 : f32
    %256 = vector.broadcast %cst_200 : f32 to vector<8x128xf32>
    %257 = arith.cmpf ogt, %255, %256 : vector<8x128xf32>
    %cst_201 = arith.constant 1.000000e+00 : f32
    %cst_202 = arith.constant 0.000000e+00 : f32
    %258 = vector.broadcast %cst_201 : f32 to vector<8x128xf32>
    %259 = vector.broadcast %cst_202 : f32 to vector<8x128xf32>
    %260 = arith.select %257, %258, %259 : vector<8x128xi1>, vector<8x128xf32>
    %c0_i32_203 = arith.constant 0 : i32
    %c0_i32_204 = arith.constant 0 : i32
    %c0_i32_205 = arith.constant 0 : i32
    %261 = tpu.memref_slice %arg8[%c0_i32_203, %c0_i32_204, %c0_i32_205] : memref<2x40x128xf32, #tpu.memory_space<vmem>> -> memref<1x40x128xf32, #tpu.memory_space<vmem>>
    %262 = tpu.memref_squeeze %261 : memref<1x40x128xf32, #tpu.memory_space<vmem>> -> memref<40x128xf32, #tpu.memory_space<vmem>>
    %c8_206 = arith.constant 8 : index
    %c0_207 = arith.constant 0 : index
    %263 = vector.load %262[%c8_206, %c0_207] : memref<40x128xf32, #tpu.memory_space<vmem>>, vector<8x128xf32>
    tpu.vector_store %262[%c8_206, %c0_207], %260 {strides = array<i32>} : memref<40x128xf32, #tpu.memory_space<vmem>>, vector<8x128xf32>,
    %cst_208 = arith.constant 0.899999976 : f32
    %264 = vector.broadcast %cst_208 : f32 to vector<8x128xf32>
    %265 = arith.mulf %264, %255 : vector<8x128xf32>
    %266 = arith.addf %265, %7 : vector<8x128xf32>
    %267 = arith.subf %266, %260 : vector<8x128xf32>
    %cst_209 = arith.constant 1.000000e+00 : f32
    %268 = vector.broadcast %cst_209 : f32 to vector<8x128xf32>
    %269 = arith.cmpf ogt, %267, %268 : vector<8x128xf32>
    %cst_210 = arith.constant 1.000000e+00 : f32
    %cst_211 = arith.constant 0.000000e+00 : f32
    %270 = vector.broadcast %cst_210 : f32 to vector<8x128xf32>
    %271 = vector.broadcast %cst_211 : f32 to vector<8x128xf32>
    %272 = arith.select %269, %270, %271 : vector<8x128xi1>, vector<8x128xf32>
    %c0_i32_212 = arith.constant 0 : i32
    %c0_i32_213 = arith.constant 0 : i32
    %c0_i32_214 = arith.constant 0 : i32
    %273 = tpu.memref_slice %arg8[%c0_i32_212, %c0_i32_213, %c0_i32_214] : memref<2x40x128xf32, #tpu.memory_space<vmem>> -> memref<1x40x128xf32, #tpu.memory_space<vmem>>
    %274 = tpu.memref_squeeze %273 : memref<1x40x128xf32, #tpu.memory_space<vmem>> -> memref<40x128xf32, #tpu.memory_space<vmem>>
    %c16_215 = arith.constant 16 : index
    %c0_216 = arith.constant 0 : index
    %275 = vector.load %274[%c16_215, %c0_216] : memref<40x128xf32, #tpu.memory_space<vmem>>, vector<8x128xf32>
    tpu.vector_store %274[%c16_215, %c0_216], %272 {strides = array<i32>} : memref<40x128xf32, #tpu.memory_space<vmem>>, vector<8x128xf32>,
    %cst_217 = arith.constant 0.899999976 : f32
    %276 = vector.broadcast %cst_217 : f32 to vector<8x128xf32>
    %277 = arith.mulf %276, %267 : vector<8x128xf32>
    %278 = arith.addf %277, %7 : vector<8x128xf32>
    %279 = arith.subf %278, %272 : vector<8x128xf32>
    %cst_218 = arith.constant 1.000000e+00 : f32
    %280 = vector.broadcast %cst_218 : f32 to vector<8x128xf32>
    %281 = arith.cmpf ogt, %279, %280 : vector<8x128xf32>
    %cst_219 = arith.constant 1.000000e+00 : f32
    %cst_220 = arith.constant 0.000000e+00 : f32
    %282 = vector.broadcast %cst_219 : f32 to vector<8x128xf32>
    %283 = vector.broadcast %cst_220 : f32 to vector<8x128xf32>
    %284 = arith.select %281, %282, %283 : vector<8x128xi1>, vector<8x128xf32>
    %c0_i32_221 = arith.constant 0 : i32
    %c0_i32_222 = arith.constant 0 : i32
    %c0_i32_223 = arith.constant 0 : i32
    %285 = tpu.memref_slice %arg8[%c0_i32_221, %c0_i32_222, %c0_i32_223] : memref<2x40x128xf32, #tpu.memory_space<vmem>> -> memref<1x40x128xf32, #tpu.memory_space<vmem>>
    %286 = tpu.memref_squeeze %285 : memref<1x40x128xf32, #tpu.memory_space<vmem>> -> memref<40x128xf32, #tpu.memory_space<vmem>>
    %c24_224 = arith.constant 24 : index
    %c0_225 = arith.constant 0 : index
    %287 = vector.load %286[%c24_224, %c0_225] : memref<40x128xf32, #tpu.memory_space<vmem>>, vector<8x128xf32>
    tpu.vector_store %286[%c24_224, %c0_225], %284 {strides = array<i32>} : memref<40x128xf32, #tpu.memory_space<vmem>>, vector<8x128xf32>,
    %cst_226 = arith.constant 0.899999976 : f32
    %288 = vector.broadcast %cst_226 : f32 to vector<8x128xf32>
    %289 = arith.mulf %288, %279 : vector<8x128xf32>
    %290 = arith.addf %289, %7 : vector<8x128xf32>
    %291 = arith.subf %290, %284 : vector<8x128xf32>
    %cst_227 = arith.constant 1.000000e+00 : f32
    %292 = vector.broadcast %cst_227 : f32 to vector<8x128xf32>
    %293 = arith.cmpf ogt, %291, %292 : vector<8x128xf32>
    %cst_228 = arith.constant 1.000000e+00 : f32
    %cst_229 = arith.constant 0.000000e+00 : f32
    %294 = vector.broadcast %cst_228 : f32 to vector<8x128xf32>
    %295 = vector.broadcast %cst_229 : f32 to vector<8x128xf32>
    %296 = arith.select %293, %294, %295 : vector<8x128xi1>, vector<8x128xf32>
    %c0_i32_230 = arith.constant 0 : i32
    %c0_i32_231 = arith.constant 0 : i32
    %c0_i32_232 = arith.constant 0 : i32
    %297 = tpu.memref_slice %arg8[%c0_i32_230, %c0_i32_231, %c0_i32_232] : memref<2x40x128xf32, #tpu.memory_space<vmem>> -> memref<1x40x128xf32, #tpu.memory_space<vmem>>
    %298 = tpu.memref_squeeze %297 : memref<1x40x128xf32, #tpu.memory_space<vmem>> -> memref<40x128xf32, #tpu.memory_space<vmem>>
    %c32_233 = arith.constant 32 : index
    %c0_234 = arith.constant 0 : index
    %299 = vector.load %298[%c32_233, %c0_234] : memref<40x128xf32, #tpu.memory_space<vmem>>, vector<8x128xf32>
    tpu.vector_store %298[%c32_233, %c0_234], %296 {strides = array<i32>} : memref<40x128xf32, #tpu.memory_space<vmem>>, vector<8x128xf32>,
    %c1_i32_235 = arith.constant 1 : i32
    %c0_i32_236 = arith.constant 0 : i32
    %c0_i32_237 = arith.constant 0 : i32
    %300 = tpu.memref_slice %arg9[%c1_i32_235, %c0_i32_236, %c0_i32_237] : memref<2x40x128xf32, #tpu.memory_space<vmem>> -> memref<1x40x128xf32, #tpu.memory_space<vmem>>
    %301 = tpu.memref_squeeze %300 : memref<1x40x128xf32, #tpu.memory_space<vmem>> -> memref<40x128xf32, #tpu.memory_space<vmem>>
    %c0_238 = arith.constant 0 : index
    %c0_239 = arith.constant 0 : index
    %302 = vector.load %301[%c0_238, %c0_239] : memref<40x128xf32, #tpu.memory_space<vmem>>, vector<8x128xf32>
    %cst_240 = arith.constant 0.899999976 : f32
    %303 = vector.broadcast %cst_240 : f32 to vector<8x128xf32>
    %304 = arith.mulf %303, %219 : vector<8x128xf32>
    %305 = arith.addf %304, %302 : vector<8x128xf32>
    %306 = arith.subf %305, %224 : vector<8x128xf32>
    %cst_241 = arith.constant 1.000000e+00 : f32
    %307 = vector.broadcast %cst_241 : f32 to vector<8x128xf32>
    %308 = arith.cmpf ogt, %306, %307 : vector<8x128xf32>
    %cst_242 = arith.constant 1.000000e+00 : f32
    %cst_243 = arith.constant 0.000000e+00 : f32
    %309 = vector.broadcast %cst_242 : f32 to vector<8x128xf32>
    %310 = vector.broadcast %cst_243 : f32 to vector<8x128xf32>
    %311 = arith.select %308, %309, %310 : vector<8x128xi1>, vector<8x128xf32>
    %c5 = arith.constant 5 : index
    %c0_244 = arith.constant 0 : index
    %c0_245 = arith.constant 0 : index
    %312 = vector.load %arg6[%c5, %c0_244, %c0_245] : memref<25x8x128xf32, #tpu.memory_space<vmem>>, vector<1x8x128xf32>
    %313 = vector.shape_cast %312 : vector<1x8x128xf32> to vector<8x128xf32>
    %314 = vector.shape_cast %311 : vector<8x128xf32> to vector<1x8x128xf32>
    tpu.vector_store %arg6[%c5, %c0_244, %c0_245], %314 {strides = array<i32>} : memref<25x8x128xf32, #tpu.memory_space<vmem>>, vector<1x8x128xf32>,
    %c5_246 = arith.constant 5 : index
    %c0_247 = arith.constant 0 : index
    %c0_248 = arith.constant 0 : index
    %315 = vector.load %arg7[%c5_246, %c0_247, %c0_248] : memref<25x8x128xf32, #tpu.memory_space<vmem>>, vector<1x8x128xf32>
    %316 = vector.shape_cast %315 : vector<1x8x128xf32> to vector<8x128xf32>
    %317 = vector.shape_cast %306 : vector<8x128xf32> to vector<1x8x128xf32>
    tpu.vector_store %arg7[%c5_246, %c0_247, %c0_248], %317 {strides = array<i32>} : memref<25x8x128xf32, #tpu.memory_space<vmem>>, vector<1x8x128xf32>,
    %c1_i32_249 = arith.constant 1 : i32
    %c0_i32_250 = arith.constant 0 : i32
    %c0_i32_251 = arith.constant 0 : i32
    %318 = tpu.memref_slice %arg9[%c1_i32_249, %c0_i32_250, %c0_i32_251] : memref<2x40x128xf32, #tpu.memory_space<vmem>> -> memref<1x40x128xf32, #tpu.memory_space<vmem>>
    %319 = tpu.memref_squeeze %318 : memref<1x40x128xf32, #tpu.memory_space<vmem>> -> memref<40x128xf32, #tpu.memory_space<vmem>>
    %c8_252 = arith.constant 8 : index
    %c0_253 = arith.constant 0 : index
    %320 = vector.load %319[%c8_252, %c0_253] : memref<40x128xf32, #tpu.memory_space<vmem>>, vector<8x128xf32>
    %cst_254 = arith.constant 0.899999976 : f32
    %321 = vector.broadcast %cst_254 : f32 to vector<8x128xf32>
    %322 = arith.mulf %321, %306 : vector<8x128xf32>
    %323 = arith.addf %322, %320 : vector<8x128xf32>
    %324 = arith.subf %323, %311 : vector<8x128xf32>
    %cst_255 = arith.constant 1.000000e+00 : f32
    %325 = vector.broadcast %cst_255 : f32 to vector<8x128xf32>
    %326 = arith.cmpf ogt, %324, %325 : vector<8x128xf32>
    %cst_256 = arith.constant 1.000000e+00 : f32
    %cst_257 = arith.constant 0.000000e+00 : f32
    %327 = vector.broadcast %cst_256 : f32 to vector<8x128xf32>
    %328 = vector.broadcast %cst_257 : f32 to vector<8x128xf32>
    %329 = arith.select %326, %327, %328 : vector<8x128xi1>, vector<8x128xf32>
    %c6 = arith.constant 6 : index
    %c0_258 = arith.constant 0 : index
    %c0_259 = arith.constant 0 : index
    %330 = vector.load %arg6[%c6, %c0_258, %c0_259] : memref<25x8x128xf32, #tpu.memory_space<vmem>>, vector<1x8x128xf32>
    %331 = vector.shape_cast %330 : vector<1x8x128xf32> to vector<8x128xf32>
    %332 = vector.shape_cast %329 : vector<8x128xf32> to vector<1x8x128xf32>
    tpu.vector_store %arg6[%c6, %c0_258, %c0_259], %332 {strides = array<i32>} : memref<25x8x128xf32, #tpu.memory_space<vmem>>, vector<1x8x128xf32>,
    %c6_260 = arith.constant 6 : index
    %c0_261 = arith.constant 0 : index
    %c0_262 = arith.constant 0 : index
    %333 = vector.load %arg7[%c6_260, %c0_261, %c0_262] : memref<25x8x128xf32, #tpu.memory_space<vmem>>, vector<1x8x128xf32>
    %334 = vector.shape_cast %333 : vector<1x8x128xf32> to vector<8x128xf32>
    %335 = vector.shape_cast %324 : vector<8x128xf32> to vector<1x8x128xf32>
    tpu.vector_store %arg7[%c6_260, %c0_261, %c0_262], %335 {strides = array<i32>} : memref<25x8x128xf32, #tpu.memory_space<vmem>>, vector<1x8x128xf32>,
    %c1_i32_263 = arith.constant 1 : i32
    %c0_i32_264 = arith.constant 0 : i32
    %c0_i32_265 = arith.constant 0 : i32
    %336 = tpu.memref_slice %arg9[%c1_i32_263, %c0_i32_264, %c0_i32_265] : memref<2x40x128xf32, #tpu.memory_space<vmem>> -> memref<1x40x128xf32, #tpu.memory_space<vmem>>
    %337 = tpu.memref_squeeze %336 : memref<1x40x128xf32, #tpu.memory_space<vmem>> -> memref<40x128xf32, #tpu.memory_space<vmem>>
    %c16_266 = arith.constant 16 : index
    %c0_267 = arith.constant 0 : index
    %338 = vector.load %337[%c16_266, %c0_267] : memref<40x128xf32, #tpu.memory_space<vmem>>, vector<8x128xf32>
    %cst_268 = arith.constant 0.899999976 : f32
    %339 = vector.broadcast %cst_268 : f32 to vector<8x128xf32>
    %340 = arith.mulf %339, %324 : vector<8x128xf32>
    %341 = arith.addf %340, %338 : vector<8x128xf32>
    %342 = arith.subf %341, %329 : vector<8x128xf32>
    %cst_269 = arith.constant 1.000000e+00 : f32
    %343 = vector.broadcast %cst_269 : f32 to vector<8x128xf32>
    %344 = arith.cmpf ogt, %342, %343 : vector<8x128xf32>
    %cst_270 = arith.constant 1.000000e+00 : f32
    %cst_271 = arith.constant 0.000000e+00 : f32
    %345 = vector.broadcast %cst_270 : f32 to vector<8x128xf32>
    %346 = vector.broadcast %cst_271 : f32 to vector<8x128xf32>
    %347 = arith.select %344, %345, %346 : vector<8x128xi1>, vector<8x128xf32>
    %c7 = arith.constant 7 : index
    %c0_272 = arith.constant 0 : index
    %c0_273 = arith.constant 0 : index
    %348 = vector.load %arg6[%c7, %c0_272, %c0_273] : memref<25x8x128xf32, #tpu.memory_space<vmem>>, vector<1x8x128xf32>
    %349 = vector.shape_cast %348 : vector<1x8x128xf32> to vector<8x128xf32>
    %350 = vector.shape_cast %347 : vector<8x128xf32> to vector<1x8x128xf32>
    tpu.vector_store %arg6[%c7, %c0_272, %c0_273], %350 {strides = array<i32>} : memref<25x8x128xf32, #tpu.memory_space<vmem>>, vector<1x8x128xf32>,
    %c7_274 = arith.constant 7 : index
    %c0_275 = arith.constant 0 : index
    %c0_276 = arith.constant 0 : index
    %351 = vector.load %arg7[%c7_274, %c0_275, %c0_276] : memref<25x8x128xf32, #tpu.memory_space<vmem>>, vector<1x8x128xf32>
    %352 = vector.shape_cast %351 : vector<1x8x128xf32> to vector<8x128xf32>
    %353 = vector.shape_cast %342 : vector<8x128xf32> to vector<1x8x128xf32>
    tpu.vector_store %arg7[%c7_274, %c0_275, %c0_276], %353 {strides = array<i32>} : memref<25x8x128xf32, #tpu.memory_space<vmem>>, vector<1x8x128xf32>,
    %c1_i32_277 = arith.constant 1 : i32
    %c0_i32_278 = arith.constant 0 : i32
    %c0_i32_279 = arith.constant 0 : i32
    %354 = tpu.memref_slice %arg9[%c1_i32_277, %c0_i32_278, %c0_i32_279] : memref<2x40x128xf32, #tpu.memory_space<vmem>> -> memref<1x40x128xf32, #tpu.memory_space<vmem>>
    %355 = tpu.memref_squeeze %354 : memref<1x40x128xf32, #tpu.memory_space<vmem>> -> memref<40x128xf32, #tpu.memory_space<vmem>>
    %c24_280 = arith.constant 24 : index
    %c0_281 = arith.constant 0 : index
    %356 = vector.load %355[%c24_280, %c0_281] : memref<40x128xf32, #tpu.memory_space<vmem>>, vector<8x128xf32>
    %cst_282 = arith.constant 0.899999976 : f32
    %357 = vector.broadcast %cst_282 : f32 to vector<8x128xf32>
    %358 = arith.mulf %357, %342 : vector<8x128xf32>
    %359 = arith.addf %358, %356 : vector<8x128xf32>
    %360 = arith.subf %359, %347 : vector<8x128xf32>
    %cst_283 = arith.constant 1.000000e+00 : f32
    %361 = vector.broadcast %cst_283 : f32 to vector<8x128xf32>
    %362 = arith.cmpf ogt, %360, %361 : vector<8x128xf32>
    %cst_284 = arith.constant 1.000000e+00 : f32
    %cst_285 = arith.constant 0.000000e+00 : f32
    %363 = vector.broadcast %cst_284 : f32 to vector<8x128xf32>
    %364 = vector.broadcast %cst_285 : f32 to vector<8x128xf32>
    %365 = arith.select %362, %363, %364 : vector<8x128xi1>, vector<8x128xf32>
    %c8_286 = arith.constant 8 : index
    %c0_287 = arith.constant 0 : index
    %c0_288 = arith.constant 0 : index
    %366 = vector.load %arg6[%c8_286, %c0_287, %c0_288] : memref<25x8x128xf32, #tpu.memory_space<vmem>>, vector<1x8x128xf32>
    %367 = vector.shape_cast %366 : vector<1x8x128xf32> to vector<8x128xf32>
    %368 = vector.shape_cast %365 : vector<8x128xf32> to vector<1x8x128xf32>
    tpu.vector_store %arg6[%c8_286, %c0_287, %c0_288], %368 {strides = array<i32>} : memref<25x8x128xf32, #tpu.memory_space<vmem>>, vector<1x8x128xf32>,
    %c8_289 = arith.constant 8 : index
    %c0_290 = arith.constant 0 : index
    %c0_291 = arith.constant 0 : index
    %369 = vector.load %arg7[%c8_289, %c0_290, %c0_291] : memref<25x8x128xf32, #tpu.memory_space<vmem>>, vector<1x8x128xf32>
    %370 = vector.shape_cast %369 : vector<1x8x128xf32> to vector<8x128xf32>
    %371 = vector.shape_cast %360 : vector<8x128xf32> to vector<1x8x128xf32>
    tpu.vector_store %arg7[%c8_289, %c0_290, %c0_291], %371 {strides = array<i32>} : memref<25x8x128xf32, #tpu.memory_space<vmem>>, vector<1x8x128xf32>,
    %c1_i32_292 = arith.constant 1 : i32
    %c0_i32_293 = arith.constant 0 : i32
    %c0_i32_294 = arith.constant 0 : i32
    %372 = tpu.memref_slice %arg9[%c1_i32_292, %c0_i32_293, %c0_i32_294] : memref<2x40x128xf32, #tpu.memory_space<vmem>> -> memref<1x40x128xf32, #tpu.memory_space<vmem>>
    %373 = tpu.memref_squeeze %372 : memref<1x40x128xf32, #tpu.memory_space<vmem>> -> memref<40x128xf32, #tpu.memory_space<vmem>>
    %c32_295 = arith.constant 32 : index
    %c0_296 = arith.constant 0 : index
    %374 = vector.load %373[%c32_295, %c0_296] : memref<40x128xf32, #tpu.memory_space<vmem>>, vector<8x128xf32>
    %cst_297 = arith.constant 0.899999976 : f32
    %375 = vector.broadcast %cst_297 : f32 to vector<8x128xf32>
    %376 = arith.mulf %375, %360 : vector<8x128xf32>
    %377 = arith.addf %376, %374 : vector<8x128xf32>
    %378 = arith.subf %377, %365 : vector<8x128xf32>
    %cst_298 = arith.constant 1.000000e+00 : f32
    %379 = vector.broadcast %cst_298 : f32 to vector<8x128xf32>
    %380 = arith.cmpf ogt, %378, %379 : vector<8x128xf32>
    %cst_299 = arith.constant 1.000000e+00 : f32
    %cst_300 = arith.constant 0.000000e+00 : f32
    %381 = vector.broadcast %cst_299 : f32 to vector<8x128xf32>
    %382 = vector.broadcast %cst_300 : f32 to vector<8x128xf32>
    %383 = arith.select %380, %381, %382 : vector<8x128xi1>, vector<8x128xf32>
    %c9 = arith.constant 9 : index
    %c0_301 = arith.constant 0 : index
    %c0_302 = arith.constant 0 : index
    %384 = vector.load %arg6[%c9, %c0_301, %c0_302] : memref<25x8x128xf32, #tpu.memory_space<vmem>>, vector<1x8x128xf32>
    %385 = vector.shape_cast %384 : vector<1x8x128xf32> to vector<8x128xf32>
    %386 = vector.shape_cast %383 : vector<8x128xf32> to vector<1x8x128xf32>
    tpu.vector_store %arg6[%c9, %c0_301, %c0_302], %386 {strides = array<i32>} : memref<25x8x128xf32, #tpu.memory_space<vmem>>, vector<1x8x128xf32>,
    %c9_303 = arith.constant 9 : index
    %c0_304 = arith.constant 0 : index
    %c0_305 = arith.constant 0 : index
    %387 = vector.load %arg7[%c9_303, %c0_304, %c0_305] : memref<25x8x128xf32, #tpu.memory_space<vmem>>, vector<1x8x128xf32>
    %388 = vector.shape_cast %387 : vector<1x8x128xf32> to vector<8x128xf32>
    %389 = vector.shape_cast %378 : vector<8x128xf32> to vector<1x8x128xf32>
    tpu.vector_store %arg7[%c9_303, %c0_304, %c0_305], %389 {strides = array<i32>} : memref<25x8x128xf32, #tpu.memory_space<vmem>>, vector<1x8x128xf32>,
    %c0_i32_306 = arith.constant 0 : i32
    %c0_i32_307 = arith.constant 0 : i32
    %c0_i32_308 = arith.constant 0 : i32
    %390 = tpu.memref_slice %arg8[%c0_i32_306, %c0_i32_307, %c0_i32_308] : memref<2x40x128xf32, #tpu.memory_space<vmem>> -> memref<1x40x128xf32, #tpu.memory_space<vmem>>
    %391 = tpu.memref_squeeze %390 : memref<1x40x128xf32, #tpu.memory_space<vmem>> -> memref<40x128xf32, #tpu.memory_space<vmem>>
    %c0_309 = arith.constant 0 : index
    %c0_310 = arith.constant 0 : index
    %392 = vector.load %391[%c0_309, %c0_310] : memref<40x128xf32, #tpu.memory_space<vmem>>, vector<40x128xf32>
    %cst_311 = arith.constant dense<0.000000e+00> : vector<40x128xf32>
    %393 = tpu.matmul %392, %3, %cst_311 {dimension_numbers = #tpu.dot_dimension_numbers<[1], [0], [0], [1], [0, 0, 1, 1], [], []>} : vector<40x128xf32>, vector<128x128xf32>, vector<40x128xf32> -> vector<40x128xf32>
    %394 = vector.broadcast %4 : vector<1x128xf32> to vector<40x128xf32>
    %395 = arith.addf %393, %394 : vector<40x128xf32>
    %c0_i32_312 = arith.constant 0 : i32
    %c0_i32_313 = arith.constant 0 : i32
    %c0_i32_314 = arith.constant 0 : i32
    %396 = tpu.memref_slice %arg9[%c0_i32_312, %c0_i32_313, %c0_i32_314] : memref<2x40x128xf32, #tpu.memory_space<vmem>> -> memref<1x40x128xf32, #tpu.memory_space<vmem>>
    %397 = tpu.memref_squeeze %396 : memref<1x40x128xf32, #tpu.memory_space<vmem>> -> memref<40x128xf32, #tpu.memory_space<vmem>>
    %c0_315 = arith.constant 0 : index
    %c0_316 = arith.constant 0 : index
    %398 = vector.load %397[%c0_315, %c0_316] : memref<40x128xf32, #tpu.memory_space<vmem>>, vector<40x128xf32>
    tpu.vector_store %397[%c0_315, %c0_316], %395 {strides = array<i32>} : memref<40x128xf32, #tpu.memory_space<vmem>>, vector<40x128xf32>,
    %cst_317 = arith.constant 0.899999976 : f32
    %399 = vector.broadcast %cst_317 : f32 to vector<8x128xf32>
    %400 = arith.mulf %399, %291 : vector<8x128xf32>
    %401 = arith.addf %400, %7 : vector<8x128xf32>
    %402 = arith.subf %401, %296 : vector<8x128xf32>
    %cst_318 = arith.constant 1.000000e+00 : f32
    %403 = vector.broadcast %cst_318 : f32 to vector<8x128xf32>
    %404 = arith.cmpf ogt, %402, %403 : vector<8x128xf32>
    %cst_319 = arith.constant 1.000000e+00 : f32
    %cst_320 = arith.constant 0.000000e+00 : f32
    %405 = vector.broadcast %cst_319 : f32 to vector<8x128xf32>
    %406 = vector.broadcast %cst_320 : f32 to vector<8x128xf32>
    %407 = arith.select %404, %405, %406 : vector<8x128xi1>, vector<8x128xf32>
    %c1_i32_321 = arith.constant 1 : i32
    %c0_i32_322 = arith.constant 0 : i32
    %c0_i32_323 = arith.constant 0 : i32
    %408 = tpu.memref_slice %arg8[%c1_i32_321, %c0_i32_322, %c0_i32_323] : memref<2x40x128xf32, #tpu.memory_space<vmem>> -> memref<1x40x128xf32, #tpu.memory_space<vmem>>
    %409 = tpu.memref_squeeze %408 : memref<1x40x128xf32, #tpu.memory_space<vmem>> -> memref<40x128xf32, #tpu.memory_space<vmem>>
    %c0_324 = arith.constant 0 : index
    %c0_325 = arith.constant 0 : index
    %410 = vector.load %409[%c0_324, %c0_325] : memref<40x128xf32, #tpu.memory_space<vmem>>, vector<8x128xf32>
    tpu.vector_store %409[%c0_324, %c0_325], %407 {strides = array<i32>} : memref<40x128xf32, #tpu.memory_space<vmem>>, vector<8x128xf32>,
    %cst_326 = arith.constant 0.899999976 : f32
    %411 = vector.broadcast %cst_326 : f32 to vector<8x128xf32>
    %412 = arith.mulf %411, %402 : vector<8x128xf32>
    %413 = arith.addf %412, %7 : vector<8x128xf32>
    %414 = arith.subf %413, %407 : vector<8x128xf32>
    %cst_327 = arith.constant 1.000000e+00 : f32
    %415 = vector.broadcast %cst_327 : f32 to vector<8x128xf32>
    %416 = arith.cmpf ogt, %414, %415 : vector<8x128xf32>
    %cst_328 = arith.constant 1.000000e+00 : f32
    %cst_329 = arith.constant 0.000000e+00 : f32
    %417 = vector.broadcast %cst_328 : f32 to vector<8x128xf32>
    %418 = vector.broadcast %cst_329 : f32 to vector<8x128xf32>
    %419 = arith.select %416, %417, %418 : vector<8x128xi1>, vector<8x128xf32>
    %c1_i32_330 = arith.constant 1 : i32
    %c0_i32_331 = arith.constant 0 : i32
    %c0_i32_332 = arith.constant 0 : i32
    %420 = tpu.memref_slice %arg8[%c1_i32_330, %c0_i32_331, %c0_i32_332] : memref<2x40x128xf32, #tpu.memory_space<vmem>> -> memref<1x40x128xf32, #tpu.memory_space<vmem>>
    %421 = tpu.memref_squeeze %420 : memref<1x40x128xf32, #tpu.memory_space<vmem>> -> memref<40x128xf32, #tpu.memory_space<vmem>>
    %c8_333 = arith.constant 8 : index
    %c0_334 = arith.constant 0 : index
    %422 = vector.load %421[%c8_333, %c0_334] : memref<40x128xf32, #tpu.memory_space<vmem>>, vector<8x128xf32>
    tpu.vector_store %421[%c8_333, %c0_334], %419 {strides = array<i32>} : memref<40x128xf32, #tpu.memory_space<vmem>>, vector<8x128xf32>,
    %cst_335 = arith.constant 0.899999976 : f32
    %423 = vector.broadcast %cst_335 : f32 to vector<8x128xf32>
    %424 = arith.mulf %423, %414 : vector<8x128xf32>
    %425 = arith.addf %424, %7 : vector<8x128xf32>
    %426 = arith.subf %425, %419 : vector<8x128xf32>
    %cst_336 = arith.constant 1.000000e+00 : f32
    %427 = vector.broadcast %cst_336 : f32 to vector<8x128xf32>
    %428 = arith.cmpf ogt, %426, %427 : vector<8x128xf32>
    %cst_337 = arith.constant 1.000000e+00 : f32
    %cst_338 = arith.constant 0.000000e+00 : f32
    %429 = vector.broadcast %cst_337 : f32 to vector<8x128xf32>
    %430 = vector.broadcast %cst_338 : f32 to vector<8x128xf32>
    %431 = arith.select %428, %429, %430 : vector<8x128xi1>, vector<8x128xf32>
    %c1_i32_339 = arith.constant 1 : i32
    %c0_i32_340 = arith.constant 0 : i32
    %c0_i32_341 = arith.constant 0 : i32
    %432 = tpu.memref_slice %arg8[%c1_i32_339, %c0_i32_340, %c0_i32_341] : memref<2x40x128xf32, #tpu.memory_space<vmem>> -> memref<1x40x128xf32, #tpu.memory_space<vmem>>
    %433 = tpu.memref_squeeze %432 : memref<1x40x128xf32, #tpu.memory_space<vmem>> -> memref<40x128xf32, #tpu.memory_space<vmem>>
    %c16_342 = arith.constant 16 : index
    %c0_343 = arith.constant 0 : index
    %434 = vector.load %433[%c16_342, %c0_343] : memref<40x128xf32, #tpu.memory_space<vmem>>, vector<8x128xf32>
    tpu.vector_store %433[%c16_342, %c0_343], %431 {strides = array<i32>} : memref<40x128xf32, #tpu.memory_space<vmem>>, vector<8x128xf32>,
    %cst_344 = arith.constant 0.899999976 : f32
    %435 = vector.broadcast %cst_344 : f32 to vector<8x128xf32>
    %436 = arith.mulf %435, %426 : vector<8x128xf32>
    %437 = arith.addf %436, %7 : vector<8x128xf32>
    %438 = arith.subf %437, %431 : vector<8x128xf32>
    %cst_345 = arith.constant 1.000000e+00 : f32
    %439 = vector.broadcast %cst_345 : f32 to vector<8x128xf32>
    %440 = arith.cmpf ogt, %438, %439 : vector<8x128xf32>
    %cst_346 = arith.constant 1.000000e+00 : f32
    %cst_347 = arith.constant 0.000000e+00 : f32
    %441 = vector.broadcast %cst_346 : f32 to vector<8x128xf32>
    %442 = vector.broadcast %cst_347 : f32 to vector<8x128xf32>
    %443 = arith.select %440, %441, %442 : vector<8x128xi1>, vector<8x128xf32>
    %c1_i32_348 = arith.constant 1 : i32
    %c0_i32_349 = arith.constant 0 : i32
    %c0_i32_350 = arith.constant 0 : i32
    %444 = tpu.memref_slice %arg8[%c1_i32_348, %c0_i32_349, %c0_i32_350] : memref<2x40x128xf32, #tpu.memory_space<vmem>> -> memref<1x40x128xf32, #tpu.memory_space<vmem>>
    %445 = tpu.memref_squeeze %444 : memref<1x40x128xf32, #tpu.memory_space<vmem>> -> memref<40x128xf32, #tpu.memory_space<vmem>>
    %c24_351 = arith.constant 24 : index
    %c0_352 = arith.constant 0 : index
    %446 = vector.load %445[%c24_351, %c0_352] : memref<40x128xf32, #tpu.memory_space<vmem>>, vector<8x128xf32>
    tpu.vector_store %445[%c24_351, %c0_352], %443 {strides = array<i32>} : memref<40x128xf32, #tpu.memory_space<vmem>>, vector<8x128xf32>,
    %cst_353 = arith.constant 0.899999976 : f32
    %447 = vector.broadcast %cst_353 : f32 to vector<8x128xf32>
    %448 = arith.mulf %447, %438 : vector<8x128xf32>
    %449 = arith.addf %448, %7 : vector<8x128xf32>
    %450 = arith.subf %449, %443 : vector<8x128xf32>
    %cst_354 = arith.constant 1.000000e+00 : f32
    %451 = vector.broadcast %cst_354 : f32 to vector<8x128xf32>
    %452 = arith.cmpf ogt, %450, %451 : vector<8x128xf32>
    %cst_355 = arith.constant 1.000000e+00 : f32
    %cst_356 = arith.constant 0.000000e+00 : f32
    %453 = vector.broadcast %cst_355 : f32 to vector<8x128xf32>
    %454 = vector.broadcast %cst_356 : f32 to vector<8x128xf32>
    %455 = arith.select %452, %453, %454 : vector<8x128xi1>, vector<8x128xf32>
    %c1_i32_357 = arith.constant 1 : i32
    %c0_i32_358 = arith.constant 0 : i32
    %c0_i32_359 = arith.constant 0 : i32
    %456 = tpu.memref_slice %arg8[%c1_i32_357, %c0_i32_358, %c0_i32_359] : memref<2x40x128xf32, #tpu.memory_space<vmem>> -> memref<1x40x128xf32, #tpu.memory_space<vmem>>
    %457 = tpu.memref_squeeze %456 : memref<1x40x128xf32, #tpu.memory_space<vmem>> -> memref<40x128xf32, #tpu.memory_space<vmem>>
    %c32_360 = arith.constant 32 : index
    %c0_361 = arith.constant 0 : index
    %458 = vector.load %457[%c32_360, %c0_361] : memref<40x128xf32, #tpu.memory_space<vmem>>, vector<8x128xf32>
    tpu.vector_store %457[%c32_360, %c0_361], %455 {strides = array<i32>} : memref<40x128xf32, #tpu.memory_space<vmem>>, vector<8x128xf32>,
    %c0_i32_362 = arith.constant 0 : i32
    %c0_i32_363 = arith.constant 0 : i32
    %c0_i32_364 = arith.constant 0 : i32
    %459 = tpu.memref_slice %arg9[%c0_i32_362, %c0_i32_363, %c0_i32_364] : memref<2x40x128xf32, #tpu.memory_space<vmem>> -> memref<1x40x128xf32, #tpu.memory_space<vmem>>
    %460 = tpu.memref_squeeze %459 : memref<1x40x128xf32, #tpu.memory_space<vmem>> -> memref<40x128xf32, #tpu.memory_space<vmem>>
    %c0_365 = arith.constant 0 : index
    %c0_366 = arith.constant 0 : index
    %461 = vector.load %460[%c0_365, %c0_366] : memref<40x128xf32, #tpu.memory_space<vmem>>, vector<8x128xf32>
    %cst_367 = arith.constant 0.899999976 : f32
    %462 = vector.broadcast %cst_367 : f32 to vector<8x128xf32>
    %463 = arith.mulf %462, %378 : vector<8x128xf32>
    %464 = arith.addf %463, %461 : vector<8x128xf32>
    %465 = arith.subf %464, %383 : vector<8x128xf32>
    %cst_368 = arith.constant 1.000000e+00 : f32
    %466 = vector.broadcast %cst_368 : f32 to vector<8x128xf32>
    %467 = arith.cmpf ogt, %465, %466 : vector<8x128xf32>
    %cst_369 = arith.constant 1.000000e+00 : f32
    %cst_370 = arith.constant 0.000000e+00 : f32
    %468 = vector.broadcast %cst_369 : f32 to vector<8x128xf32>
    %469 = vector.broadcast %cst_370 : f32 to vector<8x128xf32>
    %470 = arith.select %467, %468, %469 : vector<8x128xi1>, vector<8x128xf32>
    %c10 = arith.constant 10 : index
    %c0_371 = arith.constant 0 : index
    %c0_372 = arith.constant 0 : index
    %471 = vector.load %arg6[%c10, %c0_371, %c0_372] : memref<25x8x128xf32, #tpu.memory_space<vmem>>, vector<1x8x128xf32>
    %472 = vector.shape_cast %471 : vector<1x8x128xf32> to vector<8x128xf32>
    %473 = vector.shape_cast %470 : vector<8x128xf32> to vector<1x8x128xf32>
    tpu.vector_store %arg6[%c10, %c0_371, %c0_372], %473 {strides = array<i32>} : memref<25x8x128xf32, #tpu.memory_space<vmem>>, vector<1x8x128xf32>,
    %c10_373 = arith.constant 10 : index
    %c0_374 = arith.constant 0 : index
    %c0_375 = arith.constant 0 : index
    %474 = vector.load %arg7[%c10_373, %c0_374, %c0_375] : memref<25x8x128xf32, #tpu.memory_space<vmem>>, vector<1x8x128xf32>
    %475 = vector.shape_cast %474 : vector<1x8x128xf32> to vector<8x128xf32>
    %476 = vector.shape_cast %465 : vector<8x128xf32> to vector<1x8x128xf32>
    tpu.vector_store %arg7[%c10_373, %c0_374, %c0_375], %476 {strides = array<i32>} : memref<25x8x128xf32, #tpu.memory_space<vmem>>, vector<1x8x128xf32>,
    %c0_i32_376 = arith.constant 0 : i32
    %c0_i32_377 = arith.constant 0 : i32
    %c0_i32_378 = arith.constant 0 : i32
    %477 = tpu.memref_slice %arg9[%c0_i32_376, %c0_i32_377, %c0_i32_378] : memref<2x40x128xf32, #tpu.memory_space<vmem>> -> memref<1x40x128xf32, #tpu.memory_space<vmem>>
    %478 = tpu.memref_squeeze %477 : memref<1x40x128xf32, #tpu.memory_space<vmem>> -> memref<40x128xf32, #tpu.memory_space<vmem>>
    %c8_379 = arith.constant 8 : index
    %c0_380 = arith.constant 0 : index
    %479 = vector.load %478[%c8_379, %c0_380] : memref<40x128xf32, #tpu.memory_space<vmem>>, vector<8x128xf32>
    %cst_381 = arith.constant 0.899999976 : f32
    %480 = vector.broadcast %cst_381 : f32 to vector<8x128xf32>
    %481 = arith.mulf %480, %465 : vector<8x128xf32>
    %482 = arith.addf %481, %479 : vector<8x128xf32>
    %483 = arith.subf %482, %470 : vector<8x128xf32>
    %cst_382 = arith.constant 1.000000e+00 : f32
    %484 = vector.broadcast %cst_382 : f32 to vector<8x128xf32>
    %485 = arith.cmpf ogt, %483, %484 : vector<8x128xf32>
    %cst_383 = arith.constant 1.000000e+00 : f32
    %cst_384 = arith.constant 0.000000e+00 : f32
    %486 = vector.broadcast %cst_383 : f32 to vector<8x128xf32>
    %487 = vector.broadcast %cst_384 : f32 to vector<8x128xf32>
    %488 = arith.select %485, %486, %487 : vector<8x128xi1>, vector<8x128xf32>
    %c11 = arith.constant 11 : index
    %c0_385 = arith.constant 0 : index
    %c0_386 = arith.constant 0 : index
    %489 = vector.load %arg6[%c11, %c0_385, %c0_386] : memref<25x8x128xf32, #tpu.memory_space<vmem>>, vector<1x8x128xf32>
    %490 = vector.shape_cast %489 : vector<1x8x128xf32> to vector<8x128xf32>
    %491 = vector.shape_cast %488 : vector<8x128xf32> to vector<1x8x128xf32>
    tpu.vector_store %arg6[%c11, %c0_385, %c0_386], %491 {strides = array<i32>} : memref<25x8x128xf32, #tpu.memory_space<vmem>>, vector<1x8x128xf32>,
    %c11_387 = arith.constant 11 : index
    %c0_388 = arith.constant 0 : index
    %c0_389 = arith.constant 0 : index
    %492 = vector.load %arg7[%c11_387, %c0_388, %c0_389] : memref<25x8x128xf32, #tpu.memory_space<vmem>>, vector<1x8x128xf32>
    %493 = vector.shape_cast %492 : vector<1x8x128xf32> to vector<8x128xf32>
    %494 = vector.shape_cast %483 : vector<8x128xf32> to vector<1x8x128xf32>
    tpu.vector_store %arg7[%c11_387, %c0_388, %c0_389], %494 {strides = array<i32>} : memref<25x8x128xf32, #tpu.memory_space<vmem>>, vector<1x8x128xf32>,
    %c0_i32_390 = arith.constant 0 : i32
    %c0_i32_391 = arith.constant 0 : i32
    %c0_i32_392 = arith.constant 0 : i32
    %495 = tpu.memref_slice %arg9[%c0_i32_390, %c0_i32_391, %c0_i32_392] : memref<2x40x128xf32, #tpu.memory_space<vmem>> -> memref<1x40x128xf32, #tpu.memory_space<vmem>>
    %496 = tpu.memref_squeeze %495 : memref<1x40x128xf32, #tpu.memory_space<vmem>> -> memref<40x128xf32, #tpu.memory_space<vmem>>
    %c16_393 = arith.constant 16 : index
    %c0_394 = arith.constant 0 : index
    %497 = vector.load %496[%c16_393, %c0_394] : memref<40x128xf32, #tpu.memory_space<vmem>>, vector<8x128xf32>
    %cst_395 = arith.constant 0.899999976 : f32
    %498 = vector.broadcast %cst_395 : f32 to vector<8x128xf32>
    %499 = arith.mulf %498, %483 : vector<8x128xf32>
    %500 = arith.addf %499, %497 : vector<8x128xf32>
    %501 = arith.subf %500, %488 : vector<8x128xf32>
    %cst_396 = arith.constant 1.000000e+00 : f32
    %502 = vector.broadcast %cst_396 : f32 to vector<8x128xf32>
    %503 = arith.cmpf ogt, %501, %502 : vector<8x128xf32>
    %cst_397 = arith.constant 1.000000e+00 : f32
    %cst_398 = arith.constant 0.000000e+00 : f32
    %504 = vector.broadcast %cst_397 : f32 to vector<8x128xf32>
    %505 = vector.broadcast %cst_398 : f32 to vector<8x128xf32>
    %506 = arith.select %503, %504, %505 : vector<8x128xi1>, vector<8x128xf32>
    %c12 = arith.constant 12 : index
    %c0_399 = arith.constant 0 : index
    %c0_400 = arith.constant 0 : index
    %507 = vector.load %arg6[%c12, %c0_399, %c0_400] : memref<25x8x128xf32, #tpu.memory_space<vmem>>, vector<1x8x128xf32>
    %508 = vector.shape_cast %507 : vector<1x8x128xf32> to vector<8x128xf32>
    %509 = vector.shape_cast %506 : vector<8x128xf32> to vector<1x8x128xf32>
    tpu.vector_store %arg6[%c12, %c0_399, %c0_400], %509 {strides = array<i32>} : memref<25x8x128xf32, #tpu.memory_space<vmem>>, vector<1x8x128xf32>,
    %c12_401 = arith.constant 12 : index
    %c0_402 = arith.constant 0 : index
    %c0_403 = arith.constant 0 : index
    %510 = vector.load %arg7[%c12_401, %c0_402, %c0_403] : memref<25x8x128xf32, #tpu.memory_space<vmem>>, vector<1x8x128xf32>
    %511 = vector.shape_cast %510 : vector<1x8x128xf32> to vector<8x128xf32>
    %512 = vector.shape_cast %501 : vector<8x128xf32> to vector<1x8x128xf32>
    tpu.vector_store %arg7[%c12_401, %c0_402, %c0_403], %512 {strides = array<i32>} : memref<25x8x128xf32, #tpu.memory_space<vmem>>, vector<1x8x128xf32>,
    %c0_i32_404 = arith.constant 0 : i32
    %c0_i32_405 = arith.constant 0 : i32
    %c0_i32_406 = arith.constant 0 : i32
    %513 = tpu.memref_slice %arg9[%c0_i32_404, %c0_i32_405, %c0_i32_406] : memref<2x40x128xf32, #tpu.memory_space<vmem>> -> memref<1x40x128xf32, #tpu.memory_space<vmem>>
    %514 = tpu.memref_squeeze %513 : memref<1x40x128xf32, #tpu.memory_space<vmem>> -> memref<40x128xf32, #tpu.memory_space<vmem>>
    %c24_407 = arith.constant 24 : index
    %c0_408 = arith.constant 0 : index
    %515 = vector.load %514[%c24_407, %c0_408] : memref<40x128xf32, #tpu.memory_space<vmem>>, vector<8x128xf32>
    %cst_409 = arith.constant 0.899999976 : f32
    %516 = vector.broadcast %cst_409 : f32 to vector<8x128xf32>
    %517 = arith.mulf %516, %501 : vector<8x128xf32>
    %518 = arith.addf %517, %515 : vector<8x128xf32>
    %519 = arith.subf %518, %506 : vector<8x128xf32>
    %cst_410 = arith.constant 1.000000e+00 : f32
    %520 = vector.broadcast %cst_410 : f32 to vector<8x128xf32>
    %521 = arith.cmpf ogt, %519, %520 : vector<8x128xf32>
    %cst_411 = arith.constant 1.000000e+00 : f32
    %cst_412 = arith.constant 0.000000e+00 : f32
    %522 = vector.broadcast %cst_411 : f32 to vector<8x128xf32>
    %523 = vector.broadcast %cst_412 : f32 to vector<8x128xf32>
    %524 = arith.select %521, %522, %523 : vector<8x128xi1>, vector<8x128xf32>
    %c13 = arith.constant 13 : index
    %c0_413 = arith.constant 0 : index
    %c0_414 = arith.constant 0 : index
    %525 = vector.load %arg6[%c13, %c0_413, %c0_414] : memref<25x8x128xf32, #tpu.memory_space<vmem>>, vector<1x8x128xf32>
    %526 = vector.shape_cast %525 : vector<1x8x128xf32> to vector<8x128xf32>
    %527 = vector.shape_cast %524 : vector<8x128xf32> to vector<1x8x128xf32>
    tpu.vector_store %arg6[%c13, %c0_413, %c0_414], %527 {strides = array<i32>} : memref<25x8x128xf32, #tpu.memory_space<vmem>>, vector<1x8x128xf32>,
    %c13_415 = arith.constant 13 : index
    %c0_416 = arith.constant 0 : index
    %c0_417 = arith.constant 0 : index
    %528 = vector.load %arg7[%c13_415, %c0_416, %c0_417] : memref<25x8x128xf32, #tpu.memory_space<vmem>>, vector<1x8x128xf32>
    %529 = vector.shape_cast %528 : vector<1x8x128xf32> to vector<8x128xf32>
    %530 = vector.shape_cast %519 : vector<8x128xf32> to vector<1x8x128xf32>
    tpu.vector_store %arg7[%c13_415, %c0_416, %c0_417], %530 {strides = array<i32>} : memref<25x8x128xf32, #tpu.memory_space<vmem>>, vector<1x8x128xf32>,
    %c0_i32_418 = arith.constant 0 : i32
    %c0_i32_419 = arith.constant 0 : i32
    %c0_i32_420 = arith.constant 0 : i32
    %531 = tpu.memref_slice %arg9[%c0_i32_418, %c0_i32_419, %c0_i32_420] : memref<2x40x128xf32, #tpu.memory_space<vmem>> -> memref<1x40x128xf32, #tpu.memory_space<vmem>>
    %532 = tpu.memref_squeeze %531 : memref<1x40x128xf32, #tpu.memory_space<vmem>> -> memref<40x128xf32, #tpu.memory_space<vmem>>
    %c32_421 = arith.constant 32 : index
    %c0_422 = arith.constant 0 : index
    %533 = vector.load %532[%c32_421, %c0_422] : memref<40x128xf32, #tpu.memory_space<vmem>>, vector<8x128xf32>
    %cst_423 = arith.constant 0.899999976 : f32
    %534 = vector.broadcast %cst_423 : f32 to vector<8x128xf32>
    %535 = arith.mulf %534, %519 : vector<8x128xf32>
    %536 = arith.addf %535, %533 : vector<8x128xf32>
    %537 = arith.subf %536, %524 : vector<8x128xf32>
    %cst_424 = arith.constant 1.000000e+00 : f32
    %538 = vector.broadcast %cst_424 : f32 to vector<8x128xf32>
    %539 = arith.cmpf ogt, %537, %538 : vector<8x128xf32>
    %cst_425 = arith.constant 1.000000e+00 : f32
    %cst_426 = arith.constant 0.000000e+00 : f32
    %540 = vector.broadcast %cst_425 : f32 to vector<8x128xf32>
    %541 = vector.broadcast %cst_426 : f32 to vector<8x128xf32>
    %542 = arith.select %539, %540, %541 : vector<8x128xi1>, vector<8x128xf32>
    %c14 = arith.constant 14 : index
    %c0_427 = arith.constant 0 : index
    %c0_428 = arith.constant 0 : index
    %543 = vector.load %arg6[%c14, %c0_427, %c0_428] : memref<25x8x128xf32, #tpu.memory_space<vmem>>, vector<1x8x128xf32>
    %544 = vector.shape_cast %543 : vector<1x8x128xf32> to vector<8x128xf32>
    %545 = vector.shape_cast %542 : vector<8x128xf32> to vector<1x8x128xf32>
    tpu.vector_store %arg6[%c14, %c0_427, %c0_428], %545 {strides = array<i32>} : memref<25x8x128xf32, #tpu.memory_space<vmem>>, vector<1x8x128xf32>,
    %c14_429 = arith.constant 14 : index
    %c0_430 = arith.constant 0 : index
    %c0_431 = arith.constant 0 : index
    %546 = vector.load %arg7[%c14_429, %c0_430, %c0_431] : memref<25x8x128xf32, #tpu.memory_space<vmem>>, vector<1x8x128xf32>
    %547 = vector.shape_cast %546 : vector<1x8x128xf32> to vector<8x128xf32>
    %548 = vector.shape_cast %537 : vector<8x128xf32> to vector<1x8x128xf32>
    tpu.vector_store %arg7[%c14_429, %c0_430, %c0_431], %548 {strides = array<i32>} : memref<25x8x128xf32, #tpu.memory_space<vmem>>, vector<1x8x128xf32>,
    %c1_i32_432 = arith.constant 1 : i32
    %c0_i32_433 = arith.constant 0 : i32
    %c0_i32_434 = arith.constant 0 : i32
    %549 = tpu.memref_slice %arg8[%c1_i32_432, %c0_i32_433, %c0_i32_434] : memref<2x40x128xf32, #tpu.memory_space<vmem>> -> memref<1x40x128xf32, #tpu.memory_space<vmem>>
    %550 = tpu.memref_squeeze %549 : memref<1x40x128xf32, #tpu.memory_space<vmem>> -> memref<40x128xf32, #tpu.memory_space<vmem>>
    %c0_435 = arith.constant 0 : index
    %c0_436 = arith.constant 0 : index
    %551 = vector.load %550[%c0_435, %c0_436] : memref<40x128xf32, #tpu.memory_space<vmem>>, vector<40x128xf32>
    %cst_437 = arith.constant dense<0.000000e+00> : vector<40x128xf32>
    %552 = tpu.matmul %551, %3, %cst_437 {dimension_numbers = #tpu.dot_dimension_numbers<[1], [0], [0], [1], [0, 0, 1, 1], [], []>} : vector<40x128xf32>, vector<128x128xf32>, vector<40x128xf32> -> vector<40x128xf32>
    %553 = vector.broadcast %4 : vector<1x128xf32> to vector<40x128xf32>
    %554 = arith.addf %552, %553 : vector<40x128xf32>
    %c1_i32_438 = arith.constant 1 : i32
    %c0_i32_439 = arith.constant 0 : i32
    %c0_i32_440 = arith.constant 0 : i32
    %555 = tpu.memref_slice %arg9[%c1_i32_438, %c0_i32_439, %c0_i32_440] : memref<2x40x128xf32, #tpu.memory_space<vmem>> -> memref<1x40x128xf32, #tpu.memory_space<vmem>>
    %556 = tpu.memref_squeeze %555 : memref<1x40x128xf32, #tpu.memory_space<vmem>> -> memref<40x128xf32, #tpu.memory_space<vmem>>
    %c0_441 = arith.constant 0 : index
    %c0_442 = arith.constant 0 : index
    %557 = vector.load %556[%c0_441, %c0_442] : memref<40x128xf32, #tpu.memory_space<vmem>>, vector<40x128xf32>
    tpu.vector_store %556[%c0_441, %c0_442], %554 {strides = array<i32>} : memref<40x128xf32, #tpu.memory_space<vmem>>, vector<40x128xf32>,
    %cst_443 = arith.constant 0.899999976 : f32
    %558 = vector.broadcast %cst_443 : f32 to vector<8x128xf32>
    %559 = arith.mulf %558, %450 : vector<8x128xf32>
    %560 = arith.addf %559, %7 : vector<8x128xf32>
    %561 = arith.subf %560, %455 : vector<8x128xf32>
    %cst_444 = arith.constant 1.000000e+00 : f32
    %562 = vector.broadcast %cst_444 : f32 to vector<8x128xf32>
    %563 = arith.cmpf ogt, %561, %562 : vector<8x128xf32>
    %cst_445 = arith.constant 1.000000e+00 : f32
    %cst_446 = arith.constant 0.000000e+00 : f32
    %564 = vector.broadcast %cst_445 : f32 to vector<8x128xf32>
    %565 = vector.broadcast %cst_446 : f32 to vector<8x128xf32>
    %566 = arith.select %563, %564, %565 : vector<8x128xi1>, vector<8x128xf32>
    %c0_i32_447 = arith.constant 0 : i32
    %c0_i32_448 = arith.constant 0 : i32
    %c0_i32_449 = arith.constant 0 : i32
    %567 = tpu.memref_slice %arg8[%c0_i32_447, %c0_i32_448, %c0_i32_449] : memref<2x40x128xf32, #tpu.memory_space<vmem>> -> memref<1x40x128xf32, #tpu.memory_space<vmem>>
    %568 = tpu.memref_squeeze %567 : memref<1x40x128xf32, #tpu.memory_space<vmem>> -> memref<40x128xf32, #tpu.memory_space<vmem>>
    %c0_450 = arith.constant 0 : index
    %c0_451 = arith.constant 0 : index
    %569 = vector.load %568[%c0_450, %c0_451] : memref<40x128xf32, #tpu.memory_space<vmem>>, vector<8x128xf32>
    tpu.vector_store %568[%c0_450, %c0_451], %566 {strides = array<i32>} : memref<40x128xf32, #tpu.memory_space<vmem>>, vector<8x128xf32>,
    %cst_452 = arith.constant 0.899999976 : f32
    %570 = vector.broadcast %cst_452 : f32 to vector<8x128xf32>
    %571 = arith.mulf %570, %561 : vector<8x128xf32>
    %572 = arith.addf %571, %7 : vector<8x128xf32>
    %573 = arith.subf %572, %566 : vector<8x128xf32>
    %cst_453 = arith.constant 1.000000e+00 : f32
    %574 = vector.broadcast %cst_453 : f32 to vector<8x128xf32>
    %575 = arith.cmpf ogt, %573, %574 : vector<8x128xf32>
    %cst_454 = arith.constant 1.000000e+00 : f32
    %cst_455 = arith.constant 0.000000e+00 : f32
    %576 = vector.broadcast %cst_454 : f32 to vector<8x128xf32>
    %577 = vector.broadcast %cst_455 : f32 to vector<8x128xf32>
    %578 = arith.select %575, %576, %577 : vector<8x128xi1>, vector<8x128xf32>
    %c0_i32_456 = arith.constant 0 : i32
    %c0_i32_457 = arith.constant 0 : i32
    %c0_i32_458 = arith.constant 0 : i32
    %579 = tpu.memref_slice %arg8[%c0_i32_456, %c0_i32_457, %c0_i32_458] : memref<2x40x128xf32, #tpu.memory_space<vmem>> -> memref<1x40x128xf32, #tpu.memory_space<vmem>>
    %580 = tpu.memref_squeeze %579 : memref<1x40x128xf32, #tpu.memory_space<vmem>> -> memref<40x128xf32, #tpu.memory_space<vmem>>
    %c8_459 = arith.constant 8 : index
    %c0_460 = arith.constant 0 : index
    %581 = vector.load %580[%c8_459, %c0_460] : memref<40x128xf32, #tpu.memory_space<vmem>>, vector<8x128xf32>
    tpu.vector_store %580[%c8_459, %c0_460], %578 {strides = array<i32>} : memref<40x128xf32, #tpu.memory_space<vmem>>, vector<8x128xf32>,
    %cst_461 = arith.constant 0.899999976 : f32
    %582 = vector.broadcast %cst_461 : f32 to vector<8x128xf32>
    %583 = arith.mulf %582, %573 : vector<8x128xf32>
    %584 = arith.addf %583, %7 : vector<8x128xf32>
    %585 = arith.subf %584, %578 : vector<8x128xf32>
    %cst_462 = arith.constant 1.000000e+00 : f32
    %586 = vector.broadcast %cst_462 : f32 to vector<8x128xf32>
    %587 = arith.cmpf ogt, %585, %586 : vector<8x128xf32>
    %cst_463 = arith.constant 1.000000e+00 : f32
    %cst_464 = arith.constant 0.000000e+00 : f32
    %588 = vector.broadcast %cst_463 : f32 to vector<8x128xf32>
    %589 = vector.broadcast %cst_464 : f32 to vector<8x128xf32>
    %590 = arith.select %587, %588, %589 : vector<8x128xi1>, vector<8x128xf32>
    %c0_i32_465 = arith.constant 0 : i32
    %c0_i32_466 = arith.constant 0 : i32
    %c0_i32_467 = arith.constant 0 : i32
    %591 = tpu.memref_slice %arg8[%c0_i32_465, %c0_i32_466, %c0_i32_467] : memref<2x40x128xf32, #tpu.memory_space<vmem>> -> memref<1x40x128xf32, #tpu.memory_space<vmem>>
    %592 = tpu.memref_squeeze %591 : memref<1x40x128xf32, #tpu.memory_space<vmem>> -> memref<40x128xf32, #tpu.memory_space<vmem>>
    %c16_468 = arith.constant 16 : index
    %c0_469 = arith.constant 0 : index
    %593 = vector.load %592[%c16_468, %c0_469] : memref<40x128xf32, #tpu.memory_space<vmem>>, vector<8x128xf32>
    tpu.vector_store %592[%c16_468, %c0_469], %590 {strides = array<i32>} : memref<40x128xf32, #tpu.memory_space<vmem>>, vector<8x128xf32>,
    %cst_470 = arith.constant 0.899999976 : f32
    %594 = vector.broadcast %cst_470 : f32 to vector<8x128xf32>
    %595 = arith.mulf %594, %585 : vector<8x128xf32>
    %596 = arith.addf %595, %7 : vector<8x128xf32>
    %597 = arith.subf %596, %590 : vector<8x128xf32>
    %cst_471 = arith.constant 1.000000e+00 : f32
    %598 = vector.broadcast %cst_471 : f32 to vector<8x128xf32>
    %599 = arith.cmpf ogt, %597, %598 : vector<8x128xf32>
    %cst_472 = arith.constant 1.000000e+00 : f32
    %cst_473 = arith.constant 0.000000e+00 : f32
    %600 = vector.broadcast %cst_472 : f32 to vector<8x128xf32>
    %601 = vector.broadcast %cst_473 : f32 to vector<8x128xf32>
    %602 = arith.select %599, %600, %601 : vector<8x128xi1>, vector<8x128xf32>
    %c0_i32_474 = arith.constant 0 : i32
    %c0_i32_475 = arith.constant 0 : i32
    %c0_i32_476 = arith.constant 0 : i32
    %603 = tpu.memref_slice %arg8[%c0_i32_474, %c0_i32_475, %c0_i32_476] : memref<2x40x128xf32, #tpu.memory_space<vmem>> -> memref<1x40x128xf32, #tpu.memory_space<vmem>>
    %604 = tpu.memref_squeeze %603 : memref<1x40x128xf32, #tpu.memory_space<vmem>> -> memref<40x128xf32, #tpu.memory_space<vmem>>
    %c24_477 = arith.constant 24 : index
    %c0_478 = arith.constant 0 : index
    %605 = vector.load %604[%c24_477, %c0_478] : memref<40x128xf32, #tpu.memory_space<vmem>>, vector<8x128xf32>
    tpu.vector_store %604[%c24_477, %c0_478], %602 {strides = array<i32>} : memref<40x128xf32, #tpu.memory_space<vmem>>, vector<8x128xf32>,
    %cst_479 = arith.constant 0.899999976 : f32
    %606 = vector.broadcast %cst_479 : f32 to vector<8x128xf32>
    %607 = arith.mulf %606, %597 : vector<8x128xf32>
    %608 = arith.addf %607, %7 : vector<8x128xf32>
    %609 = arith.subf %608, %602 : vector<8x128xf32>
    %cst_480 = arith.constant 1.000000e+00 : f32
    %610 = vector.broadcast %cst_480 : f32 to vector<8x128xf32>
    %611 = arith.cmpf ogt, %609, %610 : vector<8x128xf32>
    %cst_481 = arith.constant 1.000000e+00 : f32
    %cst_482 = arith.constant 0.000000e+00 : f32
    %612 = vector.broadcast %cst_481 : f32 to vector<8x128xf32>
    %613 = vector.broadcast %cst_482 : f32 to vector<8x128xf32>
    %614 = arith.select %611, %612, %613 : vector<8x128xi1>, vector<8x128xf32>
    %c0_i32_483 = arith.constant 0 : i32
    %c0_i32_484 = arith.constant 0 : i32
    %c0_i32_485 = arith.constant 0 : i32
    %615 = tpu.memref_slice %arg8[%c0_i32_483, %c0_i32_484, %c0_i32_485] : memref<2x40x128xf32, #tpu.memory_space<vmem>> -> memref<1x40x128xf32, #tpu.memory_space<vmem>>
    %616 = tpu.memref_squeeze %615 : memref<1x40x128xf32, #tpu.memory_space<vmem>> -> memref<40x128xf32, #tpu.memory_space<vmem>>
    %c32_486 = arith.constant 32 : index
    %c0_487 = arith.constant 0 : index
    %617 = vector.load %616[%c32_486, %c0_487] : memref<40x128xf32, #tpu.memory_space<vmem>>, vector<8x128xf32>
    tpu.vector_store %616[%c32_486, %c0_487], %614 {strides = array<i32>} : memref<40x128xf32, #tpu.memory_space<vmem>>, vector<8x128xf32>,
    %c1_i32_488 = arith.constant 1 : i32
    %c0_i32_489 = arith.constant 0 : i32
    %c0_i32_490 = arith.constant 0 : i32
    %618 = tpu.memref_slice %arg9[%c1_i32_488, %c0_i32_489, %c0_i32_490] : memref<2x40x128xf32, #tpu.memory_space<vmem>> -> memref<1x40x128xf32, #tpu.memory_space<vmem>>
    %619 = tpu.memref_squeeze %618 : memref<1x40x128xf32, #tpu.memory_space<vmem>> -> memref<40x128xf32, #tpu.memory_space<vmem>>
    %c0_491 = arith.constant 0 : index
    %c0_492 = arith.constant 0 : index
    %620 = vector.load %619[%c0_491, %c0_492] : memref<40x128xf32, #tpu.memory_space<vmem>>, vector<8x128xf32>
    %cst_493 = arith.constant 0.899999976 : f32
    %621 = vector.broadcast %cst_493 : f32 to vector<8x128xf32>
    %622 = arith.mulf %621, %537 : vector<8x128xf32>
    %623 = arith.addf %622, %620 : vector<8x128xf32>
    %624 = arith.subf %623, %542 : vector<8x128xf32>
    %cst_494 = arith.constant 1.000000e+00 : f32
    %625 = vector.broadcast %cst_494 : f32 to vector<8x128xf32>
    %626 = arith.cmpf ogt, %624, %625 : vector<8x128xf32>
    %cst_495 = arith.constant 1.000000e+00 : f32
    %cst_496 = arith.constant 0.000000e+00 : f32
    %627 = vector.broadcast %cst_495 : f32 to vector<8x128xf32>
    %628 = vector.broadcast %cst_496 : f32 to vector<8x128xf32>
    %629 = arith.select %626, %627, %628 : vector<8x128xi1>, vector<8x128xf32>
    %c15 = arith.constant 15 : index
    %c0_497 = arith.constant 0 : index
    %c0_498 = arith.constant 0 : index
    %630 = vector.load %arg6[%c15, %c0_497, %c0_498] : memref<25x8x128xf32, #tpu.memory_space<vmem>>, vector<1x8x128xf32>
    %631 = vector.shape_cast %630 : vector<1x8x128xf32> to vector<8x128xf32>
    %632 = vector.shape_cast %629 : vector<8x128xf32> to vector<1x8x128xf32>
    tpu.vector_store %arg6[%c15, %c0_497, %c0_498], %632 {strides = array<i32>} : memref<25x8x128xf32, #tpu.memory_space<vmem>>, vector<1x8x128xf32>,
    %c15_499 = arith.constant 15 : index
    %c0_500 = arith.constant 0 : index
    %c0_501 = arith.constant 0 : index
    %633 = vector.load %arg7[%c15_499, %c0_500, %c0_501] : memref<25x8x128xf32, #tpu.memory_space<vmem>>, vector<1x8x128xf32>
    %634 = vector.shape_cast %633 : vector<1x8x128xf32> to vector<8x128xf32>
    %635 = vector.shape_cast %624 : vector<8x128xf32> to vector<1x8x128xf32>
    tpu.vector_store %arg7[%c15_499, %c0_500, %c0_501], %635 {strides = array<i32>} : memref<25x8x128xf32, #tpu.memory_space<vmem>>, vector<1x8x128xf32>,
    %c1_i32_502 = arith.constant 1 : i32
    %c0_i32_503 = arith.constant 0 : i32
    %c0_i32_504 = arith.constant 0 : i32
    %636 = tpu.memref_slice %arg9[%c1_i32_502, %c0_i32_503, %c0_i32_504] : memref<2x40x128xf32, #tpu.memory_space<vmem>> -> memref<1x40x128xf32, #tpu.memory_space<vmem>>
    %637 = tpu.memref_squeeze %636 : memref<1x40x128xf32, #tpu.memory_space<vmem>> -> memref<40x128xf32, #tpu.memory_space<vmem>>
    %c8_505 = arith.constant 8 : index
    %c0_506 = arith.constant 0 : index
    %638 = vector.load %637[%c8_505, %c0_506] : memref<40x128xf32, #tpu.memory_space<vmem>>, vector<8x128xf32>
    %cst_507 = arith.constant 0.899999976 : f32
    %639 = vector.broadcast %cst_507 : f32 to vector<8x128xf32>
    %640 = arith.mulf %639, %624 : vector<8x128xf32>
    %641 = arith.addf %640, %638 : vector<8x128xf32>
    %642 = arith.subf %641, %629 : vector<8x128xf32>
    %cst_508 = arith.constant 1.000000e+00 : f32
    %643 = vector.broadcast %cst_508 : f32 to vector<8x128xf32>
    %644 = arith.cmpf ogt, %642, %643 : vector<8x128xf32>
    %cst_509 = arith.constant 1.000000e+00 : f32
    %cst_510 = arith.constant 0.000000e+00 : f32
    %645 = vector.broadcast %cst_509 : f32 to vector<8x128xf32>
    %646 = vector.broadcast %cst_510 : f32 to vector<8x128xf32>
    %647 = arith.select %644, %645, %646 : vector<8x128xi1>, vector<8x128xf32>
    %c16_511 = arith.constant 16 : index
    %c0_512 = arith.constant 0 : index
    %c0_513 = arith.constant 0 : index
    %648 = vector.load %arg6[%c16_511, %c0_512, %c0_513] : memref<25x8x128xf32, #tpu.memory_space<vmem>>, vector<1x8x128xf32>
    %649 = vector.shape_cast %648 : vector<1x8x128xf32> to vector<8x128xf32>
    %650 = vector.shape_cast %647 : vector<8x128xf32> to vector<1x8x128xf32>
    tpu.vector_store %arg6[%c16_511, %c0_512, %c0_513], %650 {strides = array<i32>} : memref<25x8x128xf32, #tpu.memory_space<vmem>>, vector<1x8x128xf32>,
    %c16_514 = arith.constant 16 : index
    %c0_515 = arith.constant 0 : index
    %c0_516 = arith.constant 0 : index
    %651 = vector.load %arg7[%c16_514, %c0_515, %c0_516] : memref<25x8x128xf32, #tpu.memory_space<vmem>>, vector<1x8x128xf32>
    %652 = vector.shape_cast %651 : vector<1x8x128xf32> to vector<8x128xf32>
    %653 = vector.shape_cast %642 : vector<8x128xf32> to vector<1x8x128xf32>
    tpu.vector_store %arg7[%c16_514, %c0_515, %c0_516], %653 {strides = array<i32>} : memref<25x8x128xf32, #tpu.memory_space<vmem>>, vector<1x8x128xf32>,
    %c1_i32_517 = arith.constant 1 : i32
    %c0_i32_518 = arith.constant 0 : i32
    %c0_i32_519 = arith.constant 0 : i32
    %654 = tpu.memref_slice %arg9[%c1_i32_517, %c0_i32_518, %c0_i32_519] : memref<2x40x128xf32, #tpu.memory_space<vmem>> -> memref<1x40x128xf32, #tpu.memory_space<vmem>>
    %655 = tpu.memref_squeeze %654 : memref<1x40x128xf32, #tpu.memory_space<vmem>> -> memref<40x128xf32, #tpu.memory_space<vmem>>
    %c16_520 = arith.constant 16 : index
    %c0_521 = arith.constant 0 : index
    %656 = vector.load %655[%c16_520, %c0_521] : memref<40x128xf32, #tpu.memory_space<vmem>>, vector<8x128xf32>
    %cst_522 = arith.constant 0.899999976 : f32
    %657 = vector.broadcast %cst_522 : f32 to vector<8x128xf32>
    %658 = arith.mulf %657, %642 : vector<8x128xf32>
    %659 = arith.addf %658, %656 : vector<8x128xf32>
    %660 = arith.subf %659, %647 : vector<8x128xf32>
    %cst_523 = arith.constant 1.000000e+00 : f32
    %661 = vector.broadcast %cst_523 : f32 to vector<8x128xf32>
    %662 = arith.cmpf ogt, %660, %661 : vector<8x128xf32>
    %cst_524 = arith.constant 1.000000e+00 : f32
    %cst_525 = arith.constant 0.000000e+00 : f32
    %663 = vector.broadcast %cst_524 : f32 to vector<8x128xf32>
    %664 = vector.broadcast %cst_525 : f32 to vector<8x128xf32>
    %665 = arith.select %662, %663, %664 : vector<8x128xi1>, vector<8x128xf32>
    %c17 = arith.constant 17 : index
    %c0_526 = arith.constant 0 : index
    %c0_527 = arith.constant 0 : index
    %666 = vector.load %arg6[%c17, %c0_526, %c0_527] : memref<25x8x128xf32, #tpu.memory_space<vmem>>, vector<1x8x128xf32>
    %667 = vector.shape_cast %666 : vector<1x8x128xf32> to vector<8x128xf32>
    %668 = vector.shape_cast %665 : vector<8x128xf32> to vector<1x8x128xf32>
    tpu.vector_store %arg6[%c17, %c0_526, %c0_527], %668 {strides = array<i32>} : memref<25x8x128xf32, #tpu.memory_space<vmem>>, vector<1x8x128xf32>,
    %c17_528 = arith.constant 17 : index
    %c0_529 = arith.constant 0 : index
    %c0_530 = arith.constant 0 : index
    %669 = vector.load %arg7[%c17_528, %c0_529, %c0_530] : memref<25x8x128xf32, #tpu.memory_space<vmem>>, vector<1x8x128xf32>
    %670 = vector.shape_cast %669 : vector<1x8x128xf32> to vector<8x128xf32>
    %671 = vector.shape_cast %660 : vector<8x128xf32> to vector<1x8x128xf32>
    tpu.vector_store %arg7[%c17_528, %c0_529, %c0_530], %671 {strides = array<i32>} : memref<25x8x128xf32, #tpu.memory_space<vmem>>, vector<1x8x128xf32>,
    %c1_i32_531 = arith.constant 1 : i32
    %c0_i32_532 = arith.constant 0 : i32
    %c0_i32_533 = arith.constant 0 : i32
    %672 = tpu.memref_slice %arg9[%c1_i32_531, %c0_i32_532, %c0_i32_533] : memref<2x40x128xf32, #tpu.memory_space<vmem>> -> memref<1x40x128xf32, #tpu.memory_space<vmem>>
    %673 = tpu.memref_squeeze %672 : memref<1x40x128xf32, #tpu.memory_space<vmem>> -> memref<40x128xf32, #tpu.memory_space<vmem>>
    %c24_534 = arith.constant 24 : index
    %c0_535 = arith.constant 0 : index
    %674 = vector.load %673[%c24_534, %c0_535] : memref<40x128xf32, #tpu.memory_space<vmem>>, vector<8x128xf32>
    %cst_536 = arith.constant 0.899999976 : f32
    %675 = vector.broadcast %cst_536 : f32 to vector<8x128xf32>
    %676 = arith.mulf %675, %660 : vector<8x128xf32>
    %677 = arith.addf %676, %674 : vector<8x128xf32>
    %678 = arith.subf %677, %665 : vector<8x128xf32>
    %cst_537 = arith.constant 1.000000e+00 : f32
    %679 = vector.broadcast %cst_537 : f32 to vector<8x128xf32>
    %680 = arith.cmpf ogt, %678, %679 : vector<8x128xf32>
    %cst_538 = arith.constant 1.000000e+00 : f32
    %cst_539 = arith.constant 0.000000e+00 : f32
    %681 = vector.broadcast %cst_538 : f32 to vector<8x128xf32>
    %682 = vector.broadcast %cst_539 : f32 to vector<8x128xf32>
    %683 = arith.select %680, %681, %682 : vector<8x128xi1>, vector<8x128xf32>
    %c18 = arith.constant 18 : index
    %c0_540 = arith.constant 0 : index
    %c0_541 = arith.constant 0 : index
    %684 = vector.load %arg6[%c18, %c0_540, %c0_541] : memref<25x8x128xf32, #tpu.memory_space<vmem>>, vector<1x8x128xf32>
    %685 = vector.shape_cast %684 : vector<1x8x128xf32> to vector<8x128xf32>
    %686 = vector.shape_cast %683 : vector<8x128xf32> to vector<1x8x128xf32>
    tpu.vector_store %arg6[%c18, %c0_540, %c0_541], %686 {strides = array<i32>} : memref<25x8x128xf32, #tpu.memory_space<vmem>>, vector<1x8x128xf32>,
    %c18_542 = arith.constant 18 : index
    %c0_543 = arith.constant 0 : index
    %c0_544 = arith.constant 0 : index
    %687 = vector.load %arg7[%c18_542, %c0_543, %c0_544] : memref<25x8x128xf32, #tpu.memory_space<vmem>>, vector<1x8x128xf32>
    %688 = vector.shape_cast %687 : vector<1x8x128xf32> to vector<8x128xf32>
    %689 = vector.shape_cast %678 : vector<8x128xf32> to vector<1x8x128xf32>
    tpu.vector_store %arg7[%c18_542, %c0_543, %c0_544], %689 {strides = array<i32>} : memref<25x8x128xf32, #tpu.memory_space<vmem>>, vector<1x8x128xf32>,
    %c1_i32_545 = arith.constant 1 : i32
    %c0_i32_546 = arith.constant 0 : i32
    %c0_i32_547 = arith.constant 0 : i32
    %690 = tpu.memref_slice %arg9[%c1_i32_545, %c0_i32_546, %c0_i32_547] : memref<2x40x128xf32, #tpu.memory_space<vmem>> -> memref<1x40x128xf32, #tpu.memory_space<vmem>>
    %691 = tpu.memref_squeeze %690 : memref<1x40x128xf32, #tpu.memory_space<vmem>> -> memref<40x128xf32, #tpu.memory_space<vmem>>
    %c32_548 = arith.constant 32 : index
    %c0_549 = arith.constant 0 : index
    %692 = vector.load %691[%c32_548, %c0_549] : memref<40x128xf32, #tpu.memory_space<vmem>>, vector<8x128xf32>
    %cst_550 = arith.constant 0.899999976 : f32
    %693 = vector.broadcast %cst_550 : f32 to vector<8x128xf32>
    %694 = arith.mulf %693, %678 : vector<8x128xf32>
    %695 = arith.addf %694, %692 : vector<8x128xf32>
    %696 = arith.subf %695, %683 : vector<8x128xf32>
    %cst_551 = arith.constant 1.000000e+00 : f32
    %697 = vector.broadcast %cst_551 : f32 to vector<8x128xf32>
    %698 = arith.cmpf ogt, %696, %697 : vector<8x128xf32>
    %cst_552 = arith.constant 1.000000e+00 : f32
    %cst_553 = arith.constant 0.000000e+00 : f32
    %699 = vector.broadcast %cst_552 : f32 to vector<8x128xf32>
    %700 = vector.broadcast %cst_553 : f32 to vector<8x128xf32>
    %701 = arith.select %698, %699, %700 : vector<8x128xi1>, vector<8x128xf32>
    %c19 = arith.constant 19 : index
    %c0_554 = arith.constant 0 : index
    %c0_555 = arith.constant 0 : index
    %702 = vector.load %arg6[%c19, %c0_554, %c0_555] : memref<25x8x128xf32, #tpu.memory_space<vmem>>, vector<1x8x128xf32>
    %703 = vector.shape_cast %702 : vector<1x8x128xf32> to vector<8x128xf32>
    %704 = vector.shape_cast %701 : vector<8x128xf32> to vector<1x8x128xf32>
    tpu.vector_store %arg6[%c19, %c0_554, %c0_555], %704 {strides = array<i32>} : memref<25x8x128xf32, #tpu.memory_space<vmem>>, vector<1x8x128xf32>,
    %c19_556 = arith.constant 19 : index
    %c0_557 = arith.constant 0 : index
    %c0_558 = arith.constant 0 : index
    %705 = vector.load %arg7[%c19_556, %c0_557, %c0_558] : memref<25x8x128xf32, #tpu.memory_space<vmem>>, vector<1x8x128xf32>
    %706 = vector.shape_cast %705 : vector<1x8x128xf32> to vector<8x128xf32>
    %707 = vector.shape_cast %696 : vector<8x128xf32> to vector<1x8x128xf32>
    tpu.vector_store %arg7[%c19_556, %c0_557, %c0_558], %707 {strides = array<i32>} : memref<25x8x128xf32, #tpu.memory_space<vmem>>, vector<1x8x128xf32>,
    %c0_i32_559 = arith.constant 0 : i32
    %c0_i32_560 = arith.constant 0 : i32
    %c0_i32_561 = arith.constant 0 : i32
    %708 = tpu.memref_slice %arg8[%c0_i32_559, %c0_i32_560, %c0_i32_561] : memref<2x40x128xf32, #tpu.memory_space<vmem>> -> memref<1x40x128xf32, #tpu.memory_space<vmem>>
    %709 = tpu.memref_squeeze %708 : memref<1x40x128xf32, #tpu.memory_space<vmem>> -> memref<40x128xf32, #tpu.memory_space<vmem>>
    %c0_562 = arith.constant 0 : index
    %c0_563 = arith.constant 0 : index
    %710 = vector.load %709[%c0_562, %c0_563] : memref<40x128xf32, #tpu.memory_space<vmem>>, vector<40x128xf32>
    %cst_564 = arith.constant dense<0.000000e+00> : vector<40x128xf32>
    %711 = tpu.matmul %710, %3, %cst_564 {dimension_numbers = #tpu.dot_dimension_numbers<[1], [0], [0], [1], [0, 0, 1, 1], [], []>} : vector<40x128xf32>, vector<128x128xf32>, vector<40x128xf32> -> vector<40x128xf32>
    %712 = vector.broadcast %4 : vector<1x128xf32> to vector<40x128xf32>
    %713 = arith.addf %711, %712 : vector<40x128xf32>
    %c0_i32_565 = arith.constant 0 : i32
    %c0_i32_566 = arith.constant 0 : i32
    %c0_i32_567 = arith.constant 0 : i32
    %714 = tpu.memref_slice %arg9[%c0_i32_565, %c0_i32_566, %c0_i32_567] : memref<2x40x128xf32, #tpu.memory_space<vmem>> -> memref<1x40x128xf32, #tpu.memory_space<vmem>>
    %715 = tpu.memref_squeeze %714 : memref<1x40x128xf32, #tpu.memory_space<vmem>> -> memref<40x128xf32, #tpu.memory_space<vmem>>
    %c0_568 = arith.constant 0 : index
    %c0_569 = arith.constant 0 : index
    %716 = vector.load %715[%c0_568, %c0_569] : memref<40x128xf32, #tpu.memory_space<vmem>>, vector<40x128xf32>
    tpu.vector_store %715[%c0_568, %c0_569], %713 {strides = array<i32>} : memref<40x128xf32, #tpu.memory_space<vmem>>, vector<40x128xf32>,
    %c0_i32_570 = arith.constant 0 : i32
    %c0_i32_571 = arith.constant 0 : i32
    %c0_i32_572 = arith.constant 0 : i32
    %717 = tpu.memref_slice %arg9[%c0_i32_570, %c0_i32_571, %c0_i32_572] : memref<2x40x128xf32, #tpu.memory_space<vmem>> -> memref<1x40x128xf32, #tpu.memory_space<vmem>>
    %718 = tpu.memref_squeeze %717 : memref<1x40x128xf32, #tpu.memory_space<vmem>> -> memref<40x128xf32, #tpu.memory_space<vmem>>
    %c0_573 = arith.constant 0 : index
    %c0_574 = arith.constant 0 : index
    %719 = vector.load %718[%c0_573, %c0_574] : memref<40x128xf32, #tpu.memory_space<vmem>>, vector<8x128xf32>
    %cst_575 = arith.constant 0.899999976 : f32
    %720 = vector.broadcast %cst_575 : f32 to vector<8x128xf32>
    %721 = arith.mulf %720, %696 : vector<8x128xf32>
    %722 = arith.addf %721, %719 : vector<8x128xf32>
    %723 = arith.subf %722, %701 : vector<8x128xf32>
    %cst_576 = arith.constant 1.000000e+00 : f32
    %724 = vector.broadcast %cst_576 : f32 to vector<8x128xf32>
    %725 = arith.cmpf ogt, %723, %724 : vector<8x128xf32>
    %cst_577 = arith.constant 1.000000e+00 : f32
    %cst_578 = arith.constant 0.000000e+00 : f32
    %726 = vector.broadcast %cst_577 : f32 to vector<8x128xf32>
    %727 = vector.broadcast %cst_578 : f32 to vector<8x128xf32>
    %728 = arith.select %725, %726, %727 : vector<8x128xi1>, vector<8x128xf32>
    %c20 = arith.constant 20 : index
    %c0_579 = arith.constant 0 : index
    %c0_580 = arith.constant 0 : index
    %729 = vector.load %arg6[%c20, %c0_579, %c0_580] : memref<25x8x128xf32, #tpu.memory_space<vmem>>, vector<1x8x128xf32>
    %730 = vector.shape_cast %729 : vector<1x8x128xf32> to vector<8x128xf32>
    %731 = vector.shape_cast %728 : vector<8x128xf32> to vector<1x8x128xf32>
    tpu.vector_store %arg6[%c20, %c0_579, %c0_580], %731 {strides = array<i32>} : memref<25x8x128xf32, #tpu.memory_space<vmem>>, vector<1x8x128xf32>,
    %c20_581 = arith.constant 20 : index
    %c0_582 = arith.constant 0 : index
    %c0_583 = arith.constant 0 : index
    %732 = vector.load %arg7[%c20_581, %c0_582, %c0_583] : memref<25x8x128xf32, #tpu.memory_space<vmem>>, vector<1x8x128xf32>
    %733 = vector.shape_cast %732 : vector<1x8x128xf32> to vector<8x128xf32>
    %734 = vector.shape_cast %723 : vector<8x128xf32> to vector<1x8x128xf32>
    tpu.vector_store %arg7[%c20_581, %c0_582, %c0_583], %734 {strides = array<i32>} : memref<25x8x128xf32, #tpu.memory_space<vmem>>, vector<1x8x128xf32>,
    %c0_i32_584 = arith.constant 0 : i32
    %c0_i32_585 = arith.constant 0 : i32
    %c0_i32_586 = arith.constant 0 : i32
    %735 = tpu.memref_slice %arg9[%c0_i32_584, %c0_i32_585, %c0_i32_586] : memref<2x40x128xf32, #tpu.memory_space<vmem>> -> memref<1x40x128xf32, #tpu.memory_space<vmem>>
    %736 = tpu.memref_squeeze %735 : memref<1x40x128xf32, #tpu.memory_space<vmem>> -> memref<40x128xf32, #tpu.memory_space<vmem>>
    %c8_587 = arith.constant 8 : index
    %c0_588 = arith.constant 0 : index
    %737 = vector.load %736[%c8_587, %c0_588] : memref<40x128xf32, #tpu.memory_space<vmem>>, vector<8x128xf32>
    %cst_589 = arith.constant 0.899999976 : f32
    %738 = vector.broadcast %cst_589 : f32 to vector<8x128xf32>
    %739 = arith.mulf %738, %723 : vector<8x128xf32>
    %740 = arith.addf %739, %737 : vector<8x128xf32>
    %741 = arith.subf %740, %728 : vector<8x128xf32>
    %cst_590 = arith.constant 1.000000e+00 : f32
    %742 = vector.broadcast %cst_590 : f32 to vector<8x128xf32>
    %743 = arith.cmpf ogt, %741, %742 : vector<8x128xf32>
    %cst_591 = arith.constant 1.000000e+00 : f32
    %cst_592 = arith.constant 0.000000e+00 : f32
    %744 = vector.broadcast %cst_591 : f32 to vector<8x128xf32>
    %745 = vector.broadcast %cst_592 : f32 to vector<8x128xf32>
    %746 = arith.select %743, %744, %745 : vector<8x128xi1>, vector<8x128xf32>
    %c21 = arith.constant 21 : index
    %c0_593 = arith.constant 0 : index
    %c0_594 = arith.constant 0 : index
    %747 = vector.load %arg6[%c21, %c0_593, %c0_594] : memref<25x8x128xf32, #tpu.memory_space<vmem>>, vector<1x8x128xf32>
    %748 = vector.shape_cast %747 : vector<1x8x128xf32> to vector<8x128xf32>
    %749 = vector.shape_cast %746 : vector<8x128xf32> to vector<1x8x128xf32>
    tpu.vector_store %arg6[%c21, %c0_593, %c0_594], %749 {strides = array<i32>} : memref<25x8x128xf32, #tpu.memory_space<vmem>>, vector<1x8x128xf32>,
    %c21_595 = arith.constant 21 : index
    %c0_596 = arith.constant 0 : index
    %c0_597 = arith.constant 0 : index
    %750 = vector.load %arg7[%c21_595, %c0_596, %c0_597] : memref<25x8x128xf32, #tpu.memory_space<vmem>>, vector<1x8x128xf32>
    %751 = vector.shape_cast %750 : vector<1x8x128xf32> to vector<8x128xf32>
    %752 = vector.shape_cast %741 : vector<8x128xf32> to vector<1x8x128xf32>
    tpu.vector_store %arg7[%c21_595, %c0_596, %c0_597], %752 {strides = array<i32>} : memref<25x8x128xf32, #tpu.memory_space<vmem>>, vector<1x8x128xf32>,
    %c0_i32_598 = arith.constant 0 : i32
    %c0_i32_599 = arith.constant 0 : i32
    %c0_i32_600 = arith.constant 0 : i32
    %753 = tpu.memref_slice %arg9[%c0_i32_598, %c0_i32_599, %c0_i32_600] : memref<2x40x128xf32, #tpu.memory_space<vmem>> -> memref<1x40x128xf32, #tpu.memory_space<vmem>>
    %754 = tpu.memref_squeeze %753 : memref<1x40x128xf32, #tpu.memory_space<vmem>> -> memref<40x128xf32, #tpu.memory_space<vmem>>
    %c16_601 = arith.constant 16 : index
    %c0_602 = arith.constant 0 : index
    %755 = vector.load %754[%c16_601, %c0_602] : memref<40x128xf32, #tpu.memory_space<vmem>>, vector<8x128xf32>
    %cst_603 = arith.constant 0.899999976 : f32
    %756 = vector.broadcast %cst_603 : f32 to vector<8x128xf32>
    %757 = arith.mulf %756, %741 : vector<8x128xf32>
    %758 = arith.addf %757, %755 : vector<8x128xf32>
    %759 = arith.subf %758, %746 : vector<8x128xf32>
    %cst_604 = arith.constant 1.000000e+00 : f32
    %760 = vector.broadcast %cst_604 : f32 to vector<8x128xf32>
    %761 = arith.cmpf ogt, %759, %760 : vector<8x128xf32>
    %cst_605 = arith.constant 1.000000e+00 : f32
    %cst_606 = arith.constant 0.000000e+00 : f32
    %762 = vector.broadcast %cst_605 : f32 to vector<8x128xf32>
    %763 = vector.broadcast %cst_606 : f32 to vector<8x128xf32>
    %764 = arith.select %761, %762, %763 : vector<8x128xi1>, vector<8x128xf32>
    %c22 = arith.constant 22 : index
    %c0_607 = arith.constant 0 : index
    %c0_608 = arith.constant 0 : index
    %765 = vector.load %arg6[%c22, %c0_607, %c0_608] : memref<25x8x128xf32, #tpu.memory_space<vmem>>, vector<1x8x128xf32>
    %766 = vector.shape_cast %765 : vector<1x8x128xf32> to vector<8x128xf32>
    %767 = vector.shape_cast %764 : vector<8x128xf32> to vector<1x8x128xf32>
    tpu.vector_store %arg6[%c22, %c0_607, %c0_608], %767 {strides = array<i32>} : memref<25x8x128xf32, #tpu.memory_space<vmem>>, vector<1x8x128xf32>,
    %c22_609 = arith.constant 22 : index
    %c0_610 = arith.constant 0 : index
    %c0_611 = arith.constant 0 : index
    %768 = vector.load %arg7[%c22_609, %c0_610, %c0_611] : memref<25x8x128xf32, #tpu.memory_space<vmem>>, vector<1x8x128xf32>
    %769 = vector.shape_cast %768 : vector<1x8x128xf32> to vector<8x128xf32>
    %770 = vector.shape_cast %759 : vector<8x128xf32> to vector<1x8x128xf32>
    tpu.vector_store %arg7[%c22_609, %c0_610, %c0_611], %770 {strides = array<i32>} : memref<25x8x128xf32, #tpu.memory_space<vmem>>, vector<1x8x128xf32>,
    %c0_i32_612 = arith.constant 0 : i32
    %c0_i32_613 = arith.constant 0 : i32
    %c0_i32_614 = arith.constant 0 : i32
    %771 = tpu.memref_slice %arg9[%c0_i32_612, %c0_i32_613, %c0_i32_614] : memref<2x40x128xf32, #tpu.memory_space<vmem>> -> memref<1x40x128xf32, #tpu.memory_space<vmem>>
    %772 = tpu.memref_squeeze %771 : memref<1x40x128xf32, #tpu.memory_space<vmem>> -> memref<40x128xf32, #tpu.memory_space<vmem>>
    %c24_615 = arith.constant 24 : index
    %c0_616 = arith.constant 0 : index
    %773 = vector.load %772[%c24_615, %c0_616] : memref<40x128xf32, #tpu.memory_space<vmem>>, vector<8x128xf32>
    %cst_617 = arith.constant 0.899999976 : f32
    %774 = vector.broadcast %cst_617 : f32 to vector<8x128xf32>
    %775 = arith.mulf %774, %759 : vector<8x128xf32>
    %776 = arith.addf %775, %773 : vector<8x128xf32>
    %777 = arith.subf %776, %764 : vector<8x128xf32>
    %cst_618 = arith.constant 1.000000e+00 : f32
    %778 = vector.broadcast %cst_618 : f32 to vector<8x128xf32>
    %779 = arith.cmpf ogt, %777, %778 : vector<8x128xf32>
    %cst_619 = arith.constant 1.000000e+00 : f32
    %cst_620 = arith.constant 0.000000e+00 : f32
    %780 = vector.broadcast %cst_619 : f32 to vector<8x128xf32>
    %781 = vector.broadcast %cst_620 : f32 to vector<8x128xf32>
    %782 = arith.select %779, %780, %781 : vector<8x128xi1>, vector<8x128xf32>
    %c23 = arith.constant 23 : index
    %c0_621 = arith.constant 0 : index
    %c0_622 = arith.constant 0 : index
    %783 = vector.load %arg6[%c23, %c0_621, %c0_622] : memref<25x8x128xf32, #tpu.memory_space<vmem>>, vector<1x8x128xf32>
    %784 = vector.shape_cast %783 : vector<1x8x128xf32> to vector<8x128xf32>
    %785 = vector.shape_cast %782 : vector<8x128xf32> to vector<1x8x128xf32>
    tpu.vector_store %arg6[%c23, %c0_621, %c0_622], %785 {strides = array<i32>} : memref<25x8x128xf32, #tpu.memory_space<vmem>>, vector<1x8x128xf32>,
    %c23_623 = arith.constant 23 : index
    %c0_624 = arith.constant 0 : index
    %c0_625 = arith.constant 0 : index
    %786 = vector.load %arg7[%c23_623, %c0_624, %c0_625] : memref<25x8x128xf32, #tpu.memory_space<vmem>>, vector<1x8x128xf32>
    %787 = vector.shape_cast %786 : vector<1x8x128xf32> to vector<8x128xf32>
    %788 = vector.shape_cast %777 : vector<8x128xf32> to vector<1x8x128xf32>
    tpu.vector_store %arg7[%c23_623, %c0_624, %c0_625], %788 {strides = array<i32>} : memref<25x8x128xf32, #tpu.memory_space<vmem>>, vector<1x8x128xf32>,
    %c0_i32_626 = arith.constant 0 : i32
    %c0_i32_627 = arith.constant 0 : i32
    %c0_i32_628 = arith.constant 0 : i32
    %789 = tpu.memref_slice %arg9[%c0_i32_626, %c0_i32_627, %c0_i32_628] : memref<2x40x128xf32, #tpu.memory_space<vmem>> -> memref<1x40x128xf32, #tpu.memory_space<vmem>>
    %790 = tpu.memref_squeeze %789 : memref<1x40x128xf32, #tpu.memory_space<vmem>> -> memref<40x128xf32, #tpu.memory_space<vmem>>
    %c32_629 = arith.constant 32 : index
    %c0_630 = arith.constant 0 : index
    %791 = vector.load %790[%c32_629, %c0_630] : memref<40x128xf32, #tpu.memory_space<vmem>>, vector<8x128xf32>
    %cst_631 = arith.constant 0.899999976 : f32
    %792 = vector.broadcast %cst_631 : f32 to vector<8x128xf32>
    %793 = arith.mulf %792, %777 : vector<8x128xf32>
    %794 = arith.addf %793, %791 : vector<8x128xf32>
    %795 = arith.subf %794, %782 : vector<8x128xf32>
    %cst_632 = arith.constant 1.000000e+00 : f32
    %796 = vector.broadcast %cst_632 : f32 to vector<8x128xf32>
    %797 = arith.cmpf ogt, %795, %796 : vector<8x128xf32>
    %cst_633 = arith.constant 1.000000e+00 : f32
    %cst_634 = arith.constant 0.000000e+00 : f32
    %798 = vector.broadcast %cst_633 : f32 to vector<8x128xf32>
    %799 = vector.broadcast %cst_634 : f32 to vector<8x128xf32>
    %800 = arith.select %797, %798, %799 : vector<8x128xi1>, vector<8x128xf32>
    %c24_635 = arith.constant 24 : index
    %c0_636 = arith.constant 0 : index
    %c0_637 = arith.constant 0 : index
    %801 = vector.load %arg6[%c24_635, %c0_636, %c0_637] : memref<25x8x128xf32, #tpu.memory_space<vmem>>, vector<1x8x128xf32>
    %802 = vector.shape_cast %801 : vector<1x8x128xf32> to vector<8x128xf32>
    %803 = vector.shape_cast %800 : vector<8x128xf32> to vector<1x8x128xf32>
    tpu.vector_store %arg6[%c24_635, %c0_636, %c0_637], %803 {strides = array<i32>} : memref<25x8x128xf32, #tpu.memory_space<vmem>>, vector<1x8x128xf32>,
    %c24_638 = arith.constant 24 : index
    %c0_639 = arith.constant 0 : index
    %c0_640 = arith.constant 0 : index
    %804 = vector.load %arg7[%c24_638, %c0_639, %c0_640] : memref<25x8x128xf32, #tpu.memory_space<vmem>>, vector<1x8x128xf32>
    %805 = vector.shape_cast %804 : vector<1x8x128xf32> to vector<8x128xf32>
    %806 = vector.shape_cast %795 : vector<8x128xf32> to vector<1x8x128xf32>
    tpu.vector_store %arg7[%c24_638, %c0_639, %c0_640], %806 {strides = array<i32>} : memref<25x8x128xf32, #tpu.memory_space<vmem>>, vector<1x8x128xf32>,
    return
  }
  func.func @transform_0(%arg0: i32) -> (i32, i32) {
    %c0_i32 = arith.constant 0 : i32
    %c0_i32_0 = arith.constant 0 : i32
    return %arg0, %c0_i32 : i32, i32
  }
  func.func @transform_1(%arg0: i32) -> (i32, i32) {
    %c0_i32 = arith.constant 0 : i32
    %c0_i32_0 = arith.constant 0 : i32
    %c0_i32_1 = arith.constant 0 : i32
    return %c0_i32, %c0_i32_0 : i32, i32
  }
  func.func @transform_2(%arg0: i32) -> (i32, i32) {
    %c0_i32 = arith.constant 0 : i32
    %c0_i32_0 = arith.constant 0 : i32
    %c0_i32_1 = arith.constant 0 : i32
    return %c0_i32, %c0_i32_0 : i32, i32
  }
  func.func @transform_3(%arg0: i32) -> (i32, i32) {
    %c0_i32 = arith.constant 0 : i32
    %c0_i32_0 = arith.constant 0 : i32
    %c0_i32_1 = arith.constant 0 : i32
    return %c0_i32, %c0_i32_0 : i32, i32
  }
  func.func @transform_4(%arg0: i32) -> (i32, i32) {
    %c0_i32 = arith.constant 0 : i32
    %c0_i32_0 = arith.constant 0 : i32
    %c0_i32_1 = arith.constant 0 : i32
    return %c0_i32, %c0_i32_0 : i32, i32
  }
  func.func @transform_5(%arg0: i32) -> (i32, i32, i32) {
    %c0_i32 = arith.constant 0 : i32
    %c0_i32_0 = arith.constant 0 : i32
    %c0_i32_1 = arith.constant 0 : i32
    return %c0_i32, %arg0, %c0_i32_0 : i32, i32, i32
  }
  func.func @transform_6(%arg0: i32) -> (i32, i32, i32) {
    %c0_i32 = arith.constant 0 : i32
    %c0_i32_0 = arith.constant 0 : i32
    %c0_i32_1 = arith.constant 0 : i32
    return %c0_i32, %arg0, %c0_i32_0 : i32, i32, i32
  }
}

</mosaic_0001>

<llo_original>
// kernel: tpu_custom_call.1
$region0: #{tpu_custom_call.1}
  #allocation0 [shape = 'u32[]', space=smem, size = 0x4, offset = 0x4, fixed_abs, tag = 'smem constant byte address 0x4 - core index']
  #allocation1 [shape = 'u32[144,128]{1,0:T(1,128)}', space=vmem, size = 0x12000, scoped, tag = 'internal scratch']
  #allocation2 [shape = 'f32[2,40,128]{2,1,0:T(8,128)}', space=vmem, size = 0xa000, scoped, tag = 'scratch operand']
  #allocation3 [shape = 'f32[2,40,128]{2,1,0:T(8,128)}', space=vmem, size = 0xa000, scoped, tag = 'scratch operand']
  %s0 = inlined_call_operand.hbm [shape: f32[8,256], index: 0, kind: input, shape index: {}]
  %s1 = inlined_call_operand.hbm [shape: f32[256,128], index: 1, kind: input, shape index: {}]
  %s2 = inlined_call_operand.vmem [shape: f32[1,128], index: 2, kind: input, shape index: {}]
  %s3 = inlined_call_operand.hbm [shape: f32[128,128], index: 3, kind: input, shape index: {}]
  %s4 = inlined_call_operand.vmem [shape: f32[1,128], index: 4, kind: input, shape index: {}]
  %s5 = inlined_call_operand.hbm [shape: f32[25,8,128], index: 5, kind: output, shape index: {0}]
  %s6 = inlined_call_operand.hbm [shape: f32[25,8,128], index: 6, kind: output, shape index: {1}]
  %7 = xla_tuple %s5, %s6
  %s8 = sld [smem:[#allocation0]]
  $region50: #{tpu_custom_call.1} parent=0
    _
  %s10 = ssub.s32 1, %s8
  %s11 = scalar_select 0, %s10, %s8
  $region1: #{tpu_custom_call.1} parent=0
    #allocation4 [shape = 'u8[8192]{0}', space=vmem, size = 0x2000, scoped, tag = 'input window, operand 0, single buffered']
    #allocation5 [shape = 's32[1]{0}', space=sflag, size = 0x4, scoped, tag = 'scoped memory for tpu_custom_call.1']
    #allocation6 [shape = 's32[1]{0}', space=sflag, size = 0x4, scoped, tag = 'scoped memory for tpu_custom_call.1']
    #allocation7 [shape = 'u8[131072]{0}', space=vmem, size = 0x20000, scoped, tag = 'input window, operand 1, single buffered']
    #allocation8 [shape = 's32[1]{0}', space=sflag, size = 0x4, scoped, tag = 'scoped memory for tpu_custom_call.1']
    #allocation9 [shape = 'u8[65536]{0}', space=vmem, size = 0x10000, scoped, tag = 'input window, operand 3, single buffered']
    #allocation10 [shape = 'u8[102400]{0}', space=vmem, size = 0x19000, scoped, tag = 'output window, operand 0, single buffered']
    #allocation11 [shape = 'u8[102400]{0}', space=vmem, size = 0x19000, scoped, tag = 'output window, operand 1, single buffered']
    #allocation12 [shape = 's32[1]{0}', space=sflag, size = 0x4, scoped, tag = 'scoped memory for tpu_custom_call.1']
    %12 = vsyncpa [#allocation5], 0
    %13 = vsyncpa [#allocation8], 0
    %14 = vsyncpa [#allocation6], 0
    %15 = vsyncpa [#allocation12], 0
    // Predicated region
    $region2: #{tpu_custom_call.1} parent=1 // pred_check
      _
    $region3: #{tpu_custom_call.1} parent=1 // pred_check_branch
      %17 = sbr.rel (0) target = $region5
    $region4: #{tpu_custom_call.1} parent=1 // pred_region
      %s19 = ssub.s32 256, 256
      %20 = vsyncadd [#allocation5], %s19
      %s22 = sshll.u32 [#allocation4], 4
      %s23 = int_to_ptr.vmem [resolvable:$true] %s22
      %25 = dma.hbm_to_vmem [thread:$0]  %s0, 256, %s23, [#allocation5]
    $region5: #{tpu_custom_call.1} parent=1 // pred_fallthru
      _
    // Predicated region
    $region6: #{tpu_custom_call.1} parent=1 // pred_check
      _
    $region7: #{tpu_custom_call.1} parent=1 // pred_check_branch
      %27 = sbr.rel (0) target = $region9
    $region8: #{tpu_custom_call.1} parent=1 // pred_region
      %s29 = ssub.s32 4096, 4096
      %30 = vsyncadd [#allocation8], %s29
      %s31 = sshll.u32 [#allocation7], 4
      %s32 = int_to_ptr.vmem [resolvable:$true] %s31
      %37 = dma.hbm_to_vmem [thread:$0]  %s1, 4096, %s32, [#allocation8], 128, 128, 8
    $region9: #{tpu_custom_call.1} parent=1 // pred_fallthru
      _
    // Predicated region
    $region10: #{tpu_custom_call.1} parent=1 // pred_check
      _
    $region11: #{tpu_custom_call.1} parent=1 // pred_check_branch
      %39 = sbr.rel (0) target = $region13
    $region12: #{tpu_custom_call.1} parent=1 // pred_region
      _
    $region13: #{tpu_custom_call.1} parent=1 // pred_fallthru
      _
    // Predicated region
    $region14: #{tpu_custom_call.1} parent=1 // pred_check
      _
    $region15: #{tpu_custom_call.1} parent=1 // pred_check_branch
      %41 = sbr.rel (0) target = $region17
    $region16: #{tpu_custom_call.1} parent=1 // pred_region
      %s43 = ssub.s32 2048, 2048
      %44 = vsyncadd [#allocation8], %s43
      %s45 = sshll.u32 [#allocation9], 4
      %s46 = int_to_ptr.vmem [resolvable:$true] %s45
      %51 = dma.hbm_to_vmem [thread:$0]  %s3, 2048, %s46, [#allocation8], 128, 128, 8
    $region17: #{tpu_custom_call.1} parent=1 // pred_fallthru
      _
    // Predicated region
    $region18: #{tpu_custom_call.1} parent=1 // pred_check
      _
    $region19: #{tpu_custom_call.1} parent=1 // pred_check_branch
      %53 = sbr.rel (0) target = $region21
    $region20: #{tpu_custom_call.1} parent=1 // pred_region
      _
    $region21: #{tpu_custom_call.1} parent=1 // pred_fallthru
      _
    // Predicated region
    $region22: #{tpu_custom_call.1} parent=1 // pred_check
      _
    $region23: #{tpu_custom_call.1} parent=1 // pred_check_branch
      %55 = sbr.rel (0) target = $region25
    $region24: #{tpu_custom_call.1} parent=1 // pred_region
      %56 = dma.done [#allocation5], 256
    $region25: #{tpu_custom_call.1} parent=1 // pred_fallthru
      _
    // Predicated region
    $region26: #{tpu_custom_call.1} parent=1 // pred_check
      _
    $region27: #{tpu_custom_call.1} parent=1 // pred_check_branch
      %58 = sbr.rel (0) target = $region29
    $region28: #{tpu_custom_call.1} parent=1 // pred_region
      %59 = dma.done [#allocation8], 4096
    $region29: #{tpu_custom_call.1} parent=1 // pred_fallthru
      _
    // Predicated region
    $region30: #{tpu_custom_call.1} parent=1 // pred_check
      _
    $region31: #{tpu_custom_call.1} parent=1 // pred_check_branch
      %61 = sbr.rel (0) target = $region33
    $region32: #{tpu_custom_call.1} parent=1 // pred_region
      %62 = dma.done [#allocation8], 2048
    $region33: #{tpu_custom_call.1} parent=1 // pred_fallthru
      _
    %v63 = vld [vmem:[#allocation4] sm:$0xff]
    %v64 = vld [vmem:[#allocation4 + $0x8] sm:$0xff]
    %v65 = vld [vmem:[#allocation7] sm:$0xff]
    %v66 = vld [vmem:[#allocation7 + $0x8] sm:$0xff]
    %v67 = vld [vmem:[#allocation7 + $0x10] sm:$0xff]
    %v68 = vld [vmem:[#allocation7 + $0x18] sm:$0xff]
    %v69 = vld [vmem:[#allocation7 + $0x20] sm:$0xff]
    %v70 = vld [vmem:[#allocation7 + $0x28] sm:$0xff]
    %v71 = vld [vmem:[#allocation7 + $0x30] sm:$0xff]
    %v72 = vld [vmem:[#allocation7 + $0x38] sm:$0xff]
    %v73 = vld [vmem:[#allocation7 + $0x40] sm:$0xff]
    %v74 = vld [vmem:[#allocation7 + $0x48] sm:$0xff]
    %v75 = vld [vmem:[#allocation7 + $0x50] sm:$0xff]
    %v76 = vld [vmem:[#allocation7 + $0x58] sm:$0xff]
    %v77 = vld [vmem:[#allocation7 + $0x60] sm:$0xff]
    %v78 = vld [vmem:[#allocation7 + $0x68] sm:$0xff]
    %v79 = vld [vmem:[#allocation7 + $0x70] sm:$0xff]
    %v80 = vld [vmem:[#allocation7 + $0x78] sm:$0xff]
    %v81 = vld [vmem:[#allocation7 + $0x80] sm:$0xff]
    %v82 = vld [vmem:[#allocation7 + $0x88] sm:$0xff]
    %v83 = vld [vmem:[#allocation7 + $0x90] sm:$0xff]
    %v84 = vld [vmem:[#allocation7 + $0x98] sm:$0xff]
    %v85 = vld [vmem:[#allocation7 + $0xa0] sm:$0xff]
    %v86 = vld [vmem:[#allocation7 + $0xa8] sm:$0xff]
    %v87 = vld [vmem:[#allocation7 + $0xb0] sm:$0xff]
    %v88 = vld [vmem:[#allocation7 + $0xb8] sm:$0xff]
    %v89 = vld [vmem:[#allocation7 + $0xc0] sm:$0xff]
    %v90 = vld [vmem:[#allocation7 + $0xc8] sm:$0xff]
    %v91 = vld [vmem:[#allocation7 + $0xd0] sm:$0xff]
    %v92 = vld [vmem:[#allocation7 + $0xd8] sm:$0xff]
    %v93 = vld [vmem:[#allocation7 + $0xe0] sm:$0xff]
    %v94 = vld [vmem:[#allocation7 + $0xe8] sm:$0xff]
    %v95 = vld [vmem:[#allocation7 + $0xf0] sm:$0xff]
    %v96 = vld [vmem:[#allocation7 + $0xf8] sm:$0xff]
    %v97 = vld [vmem:[%s2] sm:$0x1]
    %v98 = vld [vmem:[#allocation9] sm:$0xff]
    %v99 = vld [vmem:[#allocation9 + $0x8] sm:$0xff]
    %v100 = vld [vmem:[#allocation9 + $0x10] sm:$0xff]
    %v101 = vld [vmem:[#allocation9 + $0x18] sm:$0xff]
    %v102 = vld [vmem:[#allocation9 + $0x20] sm:$0xff]
    %v103 = vld [vmem:[#allocation9 + $0x28] sm:$0xff]
    %v104 = vld [vmem:[#allocation9 + $0x30] sm:$0xff]
    %v105 = vld [vmem:[#allocation9 + $0x38] sm:$0xff]
    %v106 = vld [vmem:[#allocation9 + $0x40] sm:$0xff]
    %v107 = vld [vmem:[#allocation9 + $0x48] sm:$0xff]
    %v108 = vld [vmem:[#allocation9 + $0x50] sm:$0xff]
    %v109 = vld [vmem:[#allocation9 + $0x58] sm:$0xff]
    %v110 = vld [vmem:[#allocation9 + $0x60] sm:$0xff]
    %v111 = vld [vmem:[#allocation9 + $0x68] sm:$0xff]
    %v112 = vld [vmem:[#allocation9 + $0x70] sm:$0xff]
    %v113 = vld [vmem:[#allocation9 + $0x78] sm:$0xff]
    %v114 = vld [vmem:[%s4] sm:$0x1]
    %v116 = vlaneseq
    %v117 = vshrl.u32 %v116, 7
    %v118 = vsub.s32 0, %v117
    %v119 = vrot.slane %v97, %v118
    %121 = vmatprep.subr.mxu0 0.0
    %122 = vmatpush1.msra.mxu0 %v65
    %123 = vmatprep.subr.mxu0 0.0
    %124 = vmatpush1.msra.mxu0 %v66
    %125 = vmatprep.subr.mxu0 0.0
    %126 = vmatpush1.msra.mxu0 %v67
    %127 = vmatprep.subr.mxu0 0.0
    %128 = vmatpush1.msra.mxu0 %v68
    %129 = vmatprep.subr.mxu0 0.0
    %130 = vmatpush1.msra.mxu0 %v69
    %131 = vmatprep.subr.mxu0 0.0
    %132 = vmatpush1.msra.mxu0 %v70
    %133 = vmatprep.subr.mxu0 0.0
    %134 = vmatpush1.msra.mxu0 %v71
    %135 = vmatprep.subr.mxu0 0.0
    %136 = vmatpush1.msra.mxu0 %v72
    %137 = vmatprep.subr.mxu0 0.0
    %138 = vmatpush1.msra.mxu0 %v73
    %139 = vmatprep.subr.mxu0 0.0
    %140 = vmatpush1.msra.mxu0 %v74
    %141 = vmatprep.subr.mxu0 0.0
    %142 = vmatpush1.msra.mxu0 %v75
    %143 = vmatprep.subr.mxu0 0.0
    %144 = vmatpush1.msra.mxu0 %v76
    %145 = vmatprep.subr.mxu0 0.0
    %146 = vmatpush1.msra.mxu0 %v77
    %147 = vmatprep.subr.mxu0 0.0
    %148 = vmatpush1.msra.mxu0 %v78
    %149 = vmatprep.subr.mxu0 0.0
    %150 = vmatpush1.msra.mxu0 %v79
    %151 = vmatprep.subr.mxu0 0.0
    %152 = vmatpush1.msra.mxu0 %v80
    %153 = vmatprep.subr.mxu0 0.0
    %154 = vmatpush1.msra.mxu0 %v81
    %155 = vmatprep.subr.mxu0 0.0
    %156 = vmatpush1.msra.mxu0 %v82
    %157 = vmatprep.subr.mxu0 0.0
    %158 = vmatpush1.msra.mxu0 %v83
    %159 = vmatprep.subr.mxu0 0.0
    %160 = vmatpush1.msra.mxu0 %v84
    %161 = vmatprep.subr.mxu0 0.0
    %162 = vmatpush1.msra.mxu0 %v85
    %163 = vmatprep.subr.mxu0 0.0
    %164 = vmatpush1.msra.mxu0 %v86
    %165 = vmatprep.subr.mxu0 0.0
    %166 = vmatpush1.msra.mxu0 %v87
    %167 = vmatprep.subr.mxu0 0.0
    %168 = vmatpush1.msra.mxu0 %v88
    %169 = vmatprep.subr.mxu0 0.0
    %170 = vmatpush1.msra.mxu0 %v89
    %171 = vmatprep.subr.mxu0 0.0
    %172 = vmatpush1.msra.mxu0 %v90
    %173 = vmatprep.subr.mxu0 0.0
    %174 = vmatpush1.msra.mxu0 %v91
    %175 = vmatprep.subr.mxu0 0.0
    %176 = vmatpush1.msra.mxu0 %v92
    %177 = vmatprep.subr.mxu0 0.0
    %178 = vmatpush1.msra.mxu0 %v93
    %179 = vmatprep.subr.mxu0 0.0
    %180 = vmatpush1.msra.mxu0 %v94
    %181 = vmatprep.subr.mxu0 0.0
    %182 = vmatpush1.msra.mxu0 %v95
    %183 = vmatprep.subr.mxu0 0.0
    %184 = vmatpush1.msra.mxu0 %v96
    %185 = vmatprep.mubr.f32.mxu0 %v64
    %186 = vmatmul.mubr.f32.gmra.mrb[0].mxu0 %v63
    %v187 = vpop.f32.mrb[0].mxu0
    %v188 = vadd.f32 %v119, %v187
    %v189 = vpop.f32.mrb[0].mxu0
    %190 = vdwg.mxu0
    %v191 = vadd.f32 %v188, 0.0
    %vm192 = vcmp.gt.f32.partialorder %v191, 1.0
    %v193 = vsel %vm192, 1.0, 0.0
    %194 = vst [vmem:[#allocation2] sm:$0xff] %v193
    %v195 = vmul.f32 %v191, 0.9
    %v196 = vadd.f32 %v195, %v188
    %v197 = vsub.f32 %v196, %v193
    %vm198 = vcmp.gt.f32.partialorder %v197, 1.0
    %v199 = vsel %vm198, 1.0, 0.0
    %200 = vst [vmem:[#allocation2 + $0x8] sm:$0xff] %v199
    %v201 = vmul.f32 %v197, 0.9
    %v202 = vadd.f32 %v201, %v188
    %v203 = vsub.f32 %v202, %v199
    %vm204 = vcmp.gt.f32.partialorder %v203, 1.0
    %v205 = vsel %vm204, 1.0, 0.0
    %206 = vst [vmem:[#allocation2 + $0x10] sm:$0xff] %v205
    %v207 = vmul.f32 %v203, 0.9
    %v208 = vadd.f32 %v207, %v188
    %v209 = vsub.f32 %v208, %v205
    %vm210 = vcmp.gt.f32.partialorder %v209, 1.0
    %v211 = vsel %vm210, 1.0, 0.0
    %212 = vst [vmem:[#allocation2 + $0x18] sm:$0xff] %v211
    %v213 = vmul.f32 %v209, 0.9
    %v214 = vadd.f32 %v213, %v188
    %v215 = vsub.f32 %v214, %v211
    %vm216 = vcmp.gt.f32.partialorder %v215, 1.0
    %v217 = vsel %vm216, 1.0, 0.0
    %218 = vst [vmem:[#allocation2 + $0x20] sm:$0xff] %v217
    %v219 = vld [vmem:[#allocation2] sm:$0xff]
    %v220 = vld [vmem:[#allocation2 + $0x8] sm:$0xff]
    %v221 = vld [vmem:[#allocation2 + $0x10] sm:$0xff]
    %v222 = vld [vmem:[#allocation2 + $0x18] sm:$0xff]
    %v223 = vld [vmem:[#allocation2 + $0x20] sm:$0xff]
    %v225 = vlaneseq
    %v226 = vshrl.u32 %v225, 7
    %v227 = vsub.s32 0, %v226
    %v228 = vrot.slane %v114, %v227
    %230 = vmatprep.subr.mxu0 0.0
    %231 = vmatpush1.msra.mxu0 %v98
    %232 = vmatprep.subr.mxu0 0.0
    %233 = vmatpush1.msra.mxu0 %v99
    %234 = vmatprep.subr.mxu0 0.0
    %235 = vmatpush1.msra.mxu0 %v100
    %236 = vmatprep.subr.mxu0 0.0
    %237 = vmatpush1.msra.mxu0 %v101
    %238 = vmatprep.subr.mxu0 0.0
    %239 = vmatpush1.msra.mxu0 %v102
    %240 = vmatprep.subr.mxu0 0.0
    %241 = vmatpush1.msra.mxu0 %v103
    %242 = vmatprep.subr.mxu0 0.0
    %243 = vmatpush1.msra.mxu0 %v104
    %244 = vmatprep.subr.mxu0 0.0
    %245 = vmatpush1.msra.mxu0 %v105
    %246 = vmatprep.subr.mxu0 0.0
    %247 = vmatpush1.msra.mxu0 %v106
    %248 = vmatprep.subr.mxu0 0.0
    %249 = vmatpush1.msra.mxu0 %v107
    %250 = vmatprep.subr.mxu0 0.0
    %251 = vmatpush1.msra.mxu0 %v108
    %252 = vmatprep.subr.mxu0 0.0
    %253 = vmatpush1.msra.mxu0 %v109
    %254 = vmatprep.subr.mxu0 0.0
    %255 = vmatpush1.msra.mxu0 %v110
    %256 = vmatprep.subr.mxu0 0.0
    %257 = vmatpush1.msra.mxu0 %v111
    %258 = vmatprep.subr.mxu0 0.0
    %259 = vmatpush1.msra.mxu0 %v112
    %260 = vmatprep.subr.mxu0 0.0
    %261 = vmatpush1.msra.mxu0 %v113
    %262 = vmatprep.subr.mxu0 0.0
    %263 = vmatpush1.msra.mxu0 0.0
    %264 = vmatprep.subr.mxu0 0.0
    %265 = vmatpush1.msra.mxu0 0.0
    %266 = vmatprep.subr.mxu0 0.0
    %267 = vmatpush1.msra.mxu0 0.0
    %268 = vmatprep.subr.mxu0 0.0
    %269 = vmatpush1.msra.mxu0 0.0
    %270 = vmatprep.subr.mxu0 0.0
    %271 = vmatpush1.msra.mxu0 0.0
    %272 = vmatprep.subr.mxu0 0.0
    %273 = vmatpush1.msra.mxu0 0.0
    %274 = vmatprep.subr.mxu0 0.0
    %275 = vmatpush1.msra.mxu0 0.0
    %276 = vmatprep.subr.mxu0 0.0
    %277 = vmatpush1.msra.mxu0 0.0
    %278 = vmatprep.subr.mxu0 0.0
    %279 = vmatpush1.msra.mxu0 0.0
    %280 = vmatprep.subr.mxu0 0.0
    %281 = vmatpush1.msra.mxu0 0.0
    %282 = vmatprep.subr.mxu0 0.0
    %283 = vmatpush1.msra.mxu0 0.0
    %284 = vmatprep.subr.mxu0 0.0
    %285 = vmatpush1.msra.mxu0 0.0
    %286 = vmatprep.subr.mxu0 0.0
    %287 = vmatpush1.msra.mxu0 0.0
    %288 = vmatprep.subr.mxu0 0.0
    %289 = vmatpush1.msra.mxu0 0.0
    %290 = vmatprep.subr.mxu0 0.0
    %291 = vmatpush1.msra.mxu0 0.0
    %292 = vmatprep.subr.mxu0 0.0
    %293 = vmatpush1.msra.mxu0 0.0
    %294 = vmatprep.mubr.f32.mxu0 0.0
    %295 = vmatmul.mubr.f32.gmra.mrb[0].mxu0 %v219
    %v296 = vpop.f32.mrb[0].mxu0
    %v297 = vadd.f32 %v228, %v296
    %v298 = vpop.f32.mrb[0].mxu0
    %299 = vmatprep.mubr.f32.mxu0 0.0
    %300 = vmatmul.mubr.f32.gmra.mrb[0].mxu0 %v220
    %v301 = vpop.f32.mrb[0].mxu0
    %v302 = vadd.f32 %v228, %v301
    %v303 = vpop.f32.mrb[0].mxu0
    %304 = vmatprep.mubr.f32.mxu0 0.0
    %305 = vmatmul.mubr.f32.gmra.mrb[0].mxu0 %v221
    %v306 = vpop.f32.mrb[0].mxu0
    %v307 = vadd.f32 %v228, %v306
    %v308 = vpop.f32.mrb[0].mxu0
    %309 = vmatprep.mubr.f32.mxu0 0.0
    %310 = vmatmul.mubr.f32.gmra.mrb[0].mxu0 %v222
    %v311 = vpop.f32.mrb[0].mxu0
    %v312 = vadd.f32 %v228, %v311
    %v313 = vpop.f32.mrb[0].mxu0
    %314 = vmatprep.mubr.f32.mxu0 0.0
    %315 = vmatmul.mubr.f32.gmra.mrb[0].mxu0 %v223
    %v316 = vpop.f32.mrb[0].mxu0
    %v317 = vadd.f32 %v228, %v316
    %v318 = vpop.f32.mrb[0].mxu0
    %319 = vdwg.mxu0
    %320 = vst [vmem:[#allocation3] sm:$0xff] %v297
    %321 = vst [vmem:[#allocation3 + $0x8] sm:$0xff] %v302
    %322 = vst [vmem:[#allocation3 + $0x10] sm:$0xff] %v307
    %323 = vst [vmem:[#allocation3 + $0x18] sm:$0xff] %v312
    %324 = vst [vmem:[#allocation3 + $0x20] sm:$0xff] %v317
    %v325 = vmul.f32 %v215, 0.9
    %v326 = vadd.f32 %v325, %v188
    %v327 = vsub.f32 %v326, %v217
    %vm328 = vcmp.gt.f32.partialorder %v327, 1.0
    %v329 = vsel %vm328, 1.0, 0.0
    %s330 = scalar_lea.vmem [#allocation2], 40
    %331 = vst [vmem:[%s330] sm:$0xff] %v329
    %v332 = vmul.f32 %v327, 0.9
    %v333 = vadd.f32 %v332, %v188
    %v334 = vsub.f32 %v333, %v329
    %vm335 = vcmp.gt.f32.partialorder %v334, 1.0
    %v336 = vsel %vm335, 1.0, 0.0
    %337 = vst [vmem:[%s330 + $0x8] sm:$0xff] %v336
    %v338 = vmul.f32 %v334, 0.9
    %v339 = vadd.f32 %v338, %v188
    %v340 = vsub.f32 %v339, %v336
    %vm341 = vcmp.gt.f32.partialorder %v340, 1.0
    %v342 = vsel %vm341, 1.0, 0.0
    %343 = vst [vmem:[%s330 + $0x10] sm:$0xff] %v342
    %v344 = vmul.f32 %v340, 0.9
    %v345 = vadd.f32 %v344, %v188
    %v346 = vsub.f32 %v345, %v342
    %vm347 = vcmp.gt.f32.partialorder %v346, 1.0
    %v348 = vsel %vm347, 1.0, 0.0
    %349 = vst [vmem:[%s330 + $0x18] sm:$0xff] %v348
    %v350 = vmul.f32 %v346, 0.9
    %v351 = vadd.f32 %v350, %v188
    %v352 = vsub.f32 %v351, %v348
    %vm353 = vcmp.gt.f32.partialorder %v352, 1.0
    %v354 = vsel %vm353, 1.0, 0.0
    %355 = vst [vmem:[%s330 + $0x20] sm:$0xff] %v354
    %v356 = vld [vmem:[#allocation3] sm:$0xff]
    %v357 = vadd.f32 %v356, 0.0
    %vm358 = vcmp.gt.f32.partialorder %v357, 1.0
    %v359 = vsel %vm358, 1.0, 0.0
    %360 = vst [vmem:[#allocation10] sm:$0xff] %v359
    %361 = vst [vmem:[#allocation11] sm:$0xff] %v357
    %v362 = vld [vmem:[#allocation3 + $0x8] sm:$0xff]
    %v363 = vmul.f32 %v357, 0.9
    %v364 = vadd.f32 %v363, %v362
    %v365 = vsub.f32 %v364, %v359
    %vm366 = vcmp.gt.f32.partialorder %v365, 1.0
    %v367 = vsel %vm366, 1.0, 0.0
    %s368 = scalar_lea.vmem [#allocation10], 8
    %369 = vst [vmem:[%s368] sm:$0xff] %v367
    %s370 = scalar_lea.vmem [#allocation11], 8
    %371 = vst [vmem:[%s370] sm:$0xff] %v365
    %v372 = vld [vmem:[#allocation3 + $0x10] sm:$0xff]
    %v373 = vmul.f32 %v365, 0.9
    %v374 = vadd.f32 %v373, %v372
    %v375 = vsub.f32 %v374, %v367
    %vm376 = vcmp.gt.f32.partialorder %v375, 1.0
    %v377 = vsel %vm376, 1.0, 0.0
    %s378 = scalar_lea.vmem [#allocation10], 16
    %379 = vst [vmem:[%s378] sm:$0xff] %v377
    %s380 = scalar_lea.vmem [#allocation11], 16
    %381 = vst [vmem:[%s380] sm:$0xff] %v375
    %v382 = vld [vmem:[#allocation3 + $0x18] sm:$0xff]
    %v383 = vmul.f32 %v375, 0.9
    %v384 = vadd.f32 %v383, %v382
    %v385 = vsub.f32 %v384, %v377
    %vm386 = vcmp.gt.f32.partialorder %v385, 1.0
    %v387 = vsel %vm386, 1.0, 0.0
    %s388 = scalar_lea.vmem [#allocation10], 24
    %389 = vst [vmem:[%s388] sm:$0xff] %v387
    %s390 = scalar_lea.vmem [#allocation11], 24
    %391 = vst [vmem:[%s390] sm:$0xff] %v385
    %v392 = vld [vmem:[#allocation3 + $0x20] sm:$0xff]
    %v393 = vmul.f32 %v385, 0.9
    %v394 = vadd.f32 %v393, %v392
    %v395 = vsub.f32 %v394, %v387
    %vm396 = vcmp.gt.f32.partialorder %v395, 1.0
    %v397 = vsel %vm396, 1.0, 0.0
    %s398 = scalar_lea.vmem [#allocation10], 32
    %399 = vst [vmem:[%s398] sm:$0xff] %v397
    %s400 = scalar_lea.vmem [#allocation11], 32
    %401 = vst [vmem:[%s400] sm:$0xff] %v395
    %v402 = vld [vmem:[%s330] sm:$0xff]
    %v403 = vld [vmem:[%s330 + $0x8] sm:$0xff]
    %v404 = vld [vmem:[%s330 + $0x10] sm:$0xff]
    %v405 = vld [vmem:[%s330 + $0x18] sm:$0xff]
    %v406 = vld [vmem:[%s330 + $0x20] sm:$0xff]
    %407 = vmatprep.subr.mxu0 0.0
    %408 = vmatpush1.msra.mxu0 %v98
    %409 = vmatprep.subr.mxu0 0.0
    %410 = vmatpush1.msra.mxu0 %v99
    %411 = vmatprep.subr.mxu0 0.0
    %412 = vmatpush1.msra.mxu0 %v100
    %413 = vmatprep.subr.mxu0 0.0
    %414 = vmatpush1.msra.mxu0 %v101
    %415 = vmatprep.subr.mxu0 0.0
    %416 = vmatpush1.msra.mxu0 %v102
    %417 = vmatprep.subr.mxu0 0.0
    %418 = vmatpush1.msra.mxu0 %v103
    %419 = vmatprep.subr.mxu0 0.0
    %420 = vmatpush1.msra.mxu0 %v104
    %421 = vmatprep.subr.mxu0 0.0
    %422 = vmatpush1.msra.mxu0 %v105
    %423 = vmatprep.subr.mxu0 0.0
    %424 = vmatpush1.msra.mxu0 %v106
    %425 = vmatprep.subr.mxu0 0.0
    %426 = vmatpush1.msra.mxu0 %v107
    %427 = vmatprep.subr.mxu0 0.0
    %428 = vmatpush1.msra.mxu0 %v108
    %429 = vmatprep.subr.mxu0 0.0
    %430 = vmatpush1.msra.mxu0 %v109
    %431 = vmatprep.subr.mxu0 0.0
    %432 = vmatpush1.msra.mxu0 %v110
    %433 = vmatprep.subr.mxu0 0.0
    %434 = vmatpush1.msra.mxu0 %v111
    %435 = vmatprep.subr.mxu0 0.0
    %436 = vmatpush1.msra.mxu0 %v112
    %437 = vmatprep.subr.mxu0 0.0
    %438 = vmatpush1.msra.mxu0 %v113
    %439 = vmatprep.subr.mxu0 0.0
    %440 = vmatpush1.msra.mxu0 0.0
    %441 = vmatprep.subr.mxu0 0.0
    %442 = vmatpush1.msra.mxu0 0.0
    %443 = vmatprep.subr.mxu0 0.0
    %444 = vmatpush1.msra.mxu0 0.0
    %445 = vmatprep.subr.mxu0 0.0
    %446 = vmatpush1.msra.mxu0 0.0
    %447 = vmatprep.subr.mxu0 0.0
    %448 = vmatpush1.msra.mxu0 0.0
    %449 = vmatprep.subr.mxu0 0.0
    %450 = vmatpush1.msra.mxu0 0.0
    %451 = vmatprep.subr.mxu0 0.0
    %452 = vmatpush1.msra.mxu0 0.0
    %453 = vmatprep.subr.mxu0 0.0
    %454 = vmatpush1.msra.mxu0 0.0
    %455 = vmatprep.subr.mxu0 0.0
    %456 = vmatpush1.msra.mxu0 0.0
    %457 = vmatprep.subr.mxu0 0.0
    %458 = vmatpush1.msra.mxu0 0.0
    %459 = vmatprep.subr.mxu0 0.0
    %460 = vmatpush1.msra.mxu0 0.0
    %461 = vmatprep.subr.mxu0 0.0
    %462 = vmatpush1.msra.mxu0 0.0
    %463 = vmatprep.subr.mxu0 0.0
    %464 = vmatpush1.msra.mxu0 0.0
    %465 = vmatprep.subr.mxu0 0.0
    %466 = vmatpush1.msra.mxu0 0.0
    %467 = vmatprep.subr.mxu0 0.0
    %468 = vmatpush1.msra.mxu0 0.0
    %469 = vmatprep.subr.mxu0 0.0
    %470 = vmatpush1.msra.mxu0 0.0
    %471 = vmatprep.mubr.f32.mxu0 0.0
    %472 = vmatmul.mubr.f32.gmra.mrb[0].mxu0 %v402
    %v473 = vpop.f32.mrb[0].mxu0
    %v474 = vadd.f32 %v228, %v473
    %v475 = vpop.f32.mrb[0].mxu0
    %476 = vmatprep.mubr.f32.mxu0 0.0
    %477 = vmatmul.mubr.f32.gmra.mrb[0].mxu0 %v403
    %v478 = vpop.f32.mrb[0].mxu0
    %v479 = vadd.f32 %v228, %v478
    %v480 = vpop.f32.mrb[0].mxu0
    %481 = vmatprep.mubr.f32.mxu0 0.0
    %482 = vmatmul.mubr.f32.gmra.mrb[0].mxu0 %v404
    %v483 = vpop.f32.mrb[0].mxu0
    %v484 = vadd.f32 %v228, %v483
    %v485 = vpop.f32.mrb[0].mxu0
    %486 = vmatprep.mubr.f32.mxu0 0.0
    %487 = vmatmul.mubr.f32.gmra.mrb[0].mxu0 %v405
    %v488 = vpop.f32.mrb[0].mxu0
    %v489 = vadd.f32 %v228, %v488
    %v490 = vpop.f32.mrb[0].mxu0
    %491 = vmatprep.mubr.f32.mxu0 0.0
    %492 = vmatmul.mubr.f32.gmra.mrb[0].mxu0 %v406
    %v493 = vpop.f32.mrb[0].mxu0
    %v494 = vadd.f32 %v228, %v493
    %v495 = vpop.f32.mrb[0].mxu0
    %496 = vdwg.mxu0
    %s497 = scalar_lea.vmem [#allocation3], 40
    %498 = vst [vmem:[%s497] sm:$0xff] %v474
    %499 = vst [vmem:[%s497 + $0x8] sm:$0xff] %v479
    %500 = vst [vmem:[%s497 + $0x10] sm:$0xff] %v484
    %501 = vst [vmem:[%s497 + $0x18] sm:$0xff] %v489
    %502 = vst [vmem:[%s497 + $0x20] sm:$0xff] %v494
    %v503 = vmul.f32 %v352, 0.9
    %v504 = vadd.f32 %v503, %v188
    %v505 = vsub.f32 %v504, %v354
    %vm506 = vcmp.gt.f32.partialorder %v505, 1.0
    %v507 = vsel %vm506, 1.0, 0.0
    %508 = vst [vmem:[#allocation2] sm:$0xff] %v507
    %v509 = vmul.f32 %v505, 0.9
    %v510 = vadd.f32 %v509, %v188
    %v511 = vsub.f32 %v510, %v507
    %vm512 = vcmp.gt.f32.partialorder %v511, 1.0
    %v513 = vsel %vm512, 1.0, 0.0
    %514 = vst [vmem:[#allocation2 + $0x8] sm:$0xff] %v513
    %v515 = vmul.f32 %v511, 0.9
    %v516 = vadd.f32 %v515, %v188
    %v517 = vsub.f32 %v516, %v513
    %vm518 = vcmp.gt.f32.partialorder %v517, 1.0
    %v519 = vsel %vm518, 1.0, 0.0
    %520 = vst [vmem:[#allocation2 + $0x10] sm:$0xff] %v519
    %v521 = vmul.f32 %v517, 0.9
    %v522 = vadd.f32 %v521, %v188
    %v523 = vsub.f32 %v522, %v519
    %vm524 = vcmp.gt.f32.partialorder %v523, 1.0
    %v525 = vsel %vm524, 1.0, 0.0
    %526 = vst [vmem:[#allocation2 + $0x18] sm:$0xff] %v525
    %v527 = vmul.f32 %v523, 0.9
    %v528 = vadd.f32 %v527, %v188
    %v529 = vsub.f32 %v528, %v525
    %vm530 = vcmp.gt.f32.partialorder %v529, 1.0
    %v531 = vsel %vm530, 1.0, 0.0
    %532 = vst [vmem:[#allocation2 + $0x20] sm:$0xff] %v531
    %v533 = vld [vmem:[%s497] sm:$0xff]
    %v534 = vmul.f32 %v395, 0.9
    %v535 = vadd.f32 %v534, %v533
    %v536 = vsub.f32 %v535, %v397
    %vm537 = vcmp.gt.f32.partialorder %v536, 1.0
    %v538 = vsel %vm537, 1.0, 0.0
    %s539 = scalar_lea.vmem [#allocation10], 40
    %540 = vst [vmem:[%s539] sm:$0xff] %v538
    %s541 = scalar_lea.vmem [#allocation11], 40
    %542 = vst [vmem:[%s541] sm:$0xff] %v536
    %v543 = vld [vmem:[%s497 + $0x8] sm:$0xff]
    %v544 = vmul.f32 %v536, 0.9
    %v545 = vadd.f32 %v544, %v543
    %v546 = vsub.f32 %v545, %v538
    %vm547 = vcmp.gt.f32.partialorder %v546, 1.0
    %v548 = vsel %vm547, 1.0, 0.0
    %s549 = scalar_lea.vmem [#allocation10], 48
    %550 = vst [vmem:[%s549] sm:$0xff] %v548
    %s551 = scalar_lea.vmem [#allocation11], 48
    %552 = vst [vmem:[%s551] sm:$0xff] %v546
    %v553 = vld [vmem:[%s497 + $0x10] sm:$0xff]
    %v554 = vmul.f32 %v546, 0.9
    %v555 = vadd.f32 %v554, %v553
    %v556 = vsub.f32 %v555, %v548
    %vm557 = vcmp.gt.f32.partialorder %v556, 1.0
    %v558 = vsel %vm557, 1.0, 0.0
    %s559 = scalar_lea.vmem [#allocation10], 56
    %560 = vst [vmem:[%s559] sm:$0xff] %v558
    %s561 = scalar_lea.vmem [#allocation11], 56
    %562 = vst [vmem:[%s561] sm:$0xff] %v556
    %v563 = vld [vmem:[%s497 + $0x18] sm:$0xff]
    %v564 = vmul.f32 %v556, 0.9
    %v565 = vadd.f32 %v564, %v563
    %v566 = vsub.f32 %v565, %v558
    %vm567 = vcmp.gt.f32.partialorder %v566, 1.0
    %v568 = vsel %vm567, 1.0, 0.0
    %s569 = scalar_lea.vmem [#allocation10], 64
    %570 = vst [vmem:[%s569] sm:$0xff] %v568
    %s571 = scalar_lea.vmem [#allocation11], 64
    %572 = vst [vmem:[%s571] sm:$0xff] %v566
    %v573 = vld [vmem:[%s497 + $0x20] sm:$0xff]
    %v574 = vmul.f32 %v566, 0.9
    %v575 = vadd.f32 %v574, %v573
    %v576 = vsub.f32 %v575, %v568
    %vm577 = vcmp.gt.f32.partialorder %v576, 1.0
    %v578 = vsel %vm577, 1.0, 0.0
    %s579 = scalar_lea.vmem [#allocation10], 72
    %580 = vst [vmem:[%s579] sm:$0xff] %v578
    %s581 = scalar_lea.vmem [#allocation11], 72
    %582 = vst [vmem:[%s581] sm:$0xff] %v576
    %v583 = vld [vmem:[#allocation2] sm:$0xff]
    %v584 = vld [vmem:[#allocation2 + $0x8] sm:$0xff]
    %v585 = vld [vmem:[#allocation2 + $0x10] sm:$0xff]
    %v586 = vld [vmem:[#allocation2 + $0x18] sm:$0xff]
    %v587 = vld [vmem:[#allocation2 + $0x20] sm:$0xff]
    %588 = vmatprep.subr.mxu0 0.0
    %589 = vmatpush1.msra.mxu0 %v98
    %590 = vmatprep.subr.mxu0 0.0
    %591 = vmatpush1.msra.mxu0 %v99
    %592 = vmatprep.subr.mxu0 0.0
    %593 = vmatpush1.msra.mxu0 %v100
    %594 = vmatprep.subr.mxu0 0.0
    %595 = vmatpush1.msra.mxu0 %v101
    %596 = vmatprep.subr.mxu0 0.0
    %597 = vmatpush1.msra.mxu0 %v102
    %598 = vmatprep.subr.mxu0 0.0
    %599 = vmatpush1.msra.mxu0 %v103
    %600 = vmatprep.subr.mxu0 0.0
    %601 = vmatpush1.msra.mxu0 %v104
    %602 = vmatprep.subr.mxu0 0.0
    %603 = vmatpush1.msra.mxu0 %v105
    %604 = vmatprep.subr.mxu0 0.0
    %605 = vmatpush1.msra.mxu0 %v106
    %606 = vmatprep.subr.mxu0 0.0
    %607 = vmatpush1.msra.mxu0 %v107
    %608 = vmatprep.subr.mxu0 0.0
    %609 = vmatpush1.msra.mxu0 %v108
    %610 = vmatprep.subr.mxu0 0.0
    %611 = vmatpush1.msra.mxu0 %v109
    %612 = vmatprep.subr.mxu0 0.0
    %613 = vmatpush1.msra.mxu0 %v110
    %614 = vmatprep.subr.mxu0 0.0
    %615 = vmatpush1.msra.mxu0 %v111
    %616 = vmatprep.subr.mxu0 0.0
    %617 = vmatpush1.msra.mxu0 %v112
    %618 = vmatprep.subr.mxu0 0.0
    %619 = vmatpush1.msra.mxu0 %v113
    %620 = vmatprep.subr.mxu0 0.0
    %621 = vmatpush1.msra.mxu0 0.0
    %622 = vmatprep.subr.mxu0 0.0
    %623 = vmatpush1.msra.mxu0 0.0
    %624 = vmatprep.subr.mxu0 0.0
    %625 = vmatpush1.msra.mxu0 0.0
    %626 = vmatprep.subr.mxu0 0.0
    %627 = vmatpush1.msra.mxu0 0.0
    %628 = vmatprep.subr.mxu0 0.0
    %629 = vmatpush1.msra.mxu0 0.0
    %630 = vmatprep.subr.mxu0 0.0
    %631 = vmatpush1.msra.mxu0 0.0
    %632 = vmatprep.subr.mxu0 0.0
    %633 = vmatpush1.msra.mxu0 0.0
    %634 = vmatprep.subr.mxu0 0.0
    %635 = vmatpush1.msra.mxu0 0.0
    %636 = vmatprep.subr.mxu0 0.0
    %637 = vmatpush1.msra.mxu0 0.0
    %638 = vmatprep.subr.mxu0 0.0
    %639 = vmatpush1.msra.mxu0 0.0
    %640 = vmatprep.subr.mxu0 0.0
    %641 = vmatpush1.msra.mxu0 0.0
    %642 = vmatprep.subr.mxu0 0.0
    %643 = vmatpush1.msra.mxu0 0.0
    %644 = vmatprep.subr.mxu0 0.0
    %645 = vmatpush1.msra.mxu0 0.0
    %646 = vmatprep.subr.mxu0 0.0
    %647 = vmatpush1.msra.mxu0 0.0
    %648 = vmatprep.subr.mxu0 0.0
    %649 = vmatpush1.msra.mxu0 0.0
    %650 = vmatprep.subr.mxu0 0.0
    %651 = vmatpush1.msra.mxu0 0.0
    %652 = vmatprep.mubr.f32.mxu0 0.0
    %653 = vmatmul.mubr.f32.gmra.mrb[0].mxu0 %v583
    %v654 = vpop.f32.mrb[0].mxu0
    %v655 = vadd.f32 %v228, %v654
    %v656 = vpop.f32.mrb[0].mxu0
    %657 = vmatprep.mubr.f32.mxu0 0.0
    %658 = vmatmul.mubr.f32.gmra.mrb[0].mxu0 %v584
    %v659 = vpop.f32.mrb[0].mxu0
    %v660 = vadd.f32 %v228, %v659
    %v661 = vpop.f32.mrb[0].mxu0
    %662 = vmatprep.mubr.f32.mxu0 0.0
    %663 = vmatmul.mubr.f32.gmra.mrb[0].mxu0 %v585
    %v664 = vpop.f32.mrb[0].mxu0
    %v665 = vadd.f32 %v228, %v664
    %v666 = vpop.f32.mrb[0].mxu0
    %667 = vmatprep.mubr.f32.mxu0 0.0
    %668 = vmatmul.mubr.f32.gmra.mrb[0].mxu0 %v586
    %v669 = vpop.f32.mrb[0].mxu0
    %v670 = vadd.f32 %v228, %v669
    %v671 = vpop.f32.mrb[0].mxu0
    %672 = vmatprep.mubr.f32.mxu0 0.0
    %673 = vmatmul.mubr.f32.gmra.mrb[0].mxu0 %v587
    %v674 = vpop.f32.mrb[0].mxu0
    %v675 = vadd.f32 %v228, %v674
    %v676 = vpop.f32.mrb[0].mxu0
    %677 = vdwg.mxu0
    %678 = vst [vmem:[#allocation3] sm:$0xff] %v655
    %679 = vst [vmem:[#allocation3 + $0x8] sm:$0xff] %v660
    %680 = vst [vmem:[#allocation3 + $0x10] sm:$0xff] %v665
    %681 = vst [vmem:[#allocation3 + $0x18] sm:$0xff] %v670
    %682 = vst [vmem:[#allocation3 + $0x20] sm:$0xff] %v675
    %v683 = vmul.f32 %v529, 0.9
    %v684 = vadd.f32 %v683, %v188
    %v685 = vsub.f32 %v684, %v531
    %vm686 = vcmp.gt.f32.partialorder %v685, 1.0
    %v687 = vsel %vm686, 1.0, 0.0
    %688 = vst [vmem:[%s330] sm:$0xff] %v687
    %v689 = vmul.f32 %v685, 0.9
    %v690 = vadd.f32 %v689, %v188
    %v691 = vsub.f32 %v690, %v687
    %vm692 = vcmp.gt.f32.partialorder %v691, 1.0
    %v693 = vsel %vm692, 1.0, 0.0
    %694 = vst [vmem:[%s330 + $0x8] sm:$0xff] %v693
    %v695 = vmul.f32 %v691, 0.9
    %v696 = vadd.f32 %v695, %v188
    %v697 = vsub.f32 %v696, %v693
    %vm698 = vcmp.gt.f32.partialorder %v697, 1.0
    %v699 = vsel %vm698, 1.0, 0.0
    %700 = vst [vmem:[%s330 + $0x10] sm:$0xff] %v699
    %v701 = vmul.f32 %v697, 0.9
    %v702 = vadd.f32 %v701, %v188
    %v703 = vsub.f32 %v702, %v699
    %vm704 = vcmp.gt.f32.partialorder %v703, 1.0
    %v705 = vsel %vm704, 1.0, 0.0
    %706 = vst [vmem:[%s330 + $0x18] sm:$0xff] %v705
    %v707 = vmul.f32 %v703, 0.9
    %v708 = vadd.f32 %v707, %v188
    %v709 = vsub.f32 %v708, %v705
    %vm710 = vcmp.gt.f32.partialorder %v709, 1.0
    %v711 = vsel %vm710, 1.0, 0.0
    %712 = vst [vmem:[%s330 + $0x20] sm:$0xff] %v711
    %v713 = vld [vmem:[#allocation3] sm:$0xff]
    %v714 = vmul.f32 %v576, 0.9
    %v715 = vadd.f32 %v714, %v713
    %v716 = vsub.f32 %v715, %v578
    %vm717 = vcmp.gt.f32.partialorder %v716, 1.0
    %v718 = vsel %vm717, 1.0, 0.0
    %s719 = scalar_lea.vmem [#allocation10], 80
    %720 = vst [vmem:[%s719] sm:$0xff] %v718
    %s721 = scalar_lea.vmem [#allocation11], 80
    %722 = vst [vmem:[%s721] sm:$0xff] %v716
    %v723 = vld [vmem:[#allocation3 + $0x8] sm:$0xff]
    %v724 = vmul.f32 %v716, 0.9
    %v725 = vadd.f32 %v724, %v723
    %v726 = vsub.f32 %v725, %v718
    %vm727 = vcmp.gt.f32.partialorder %v726, 1.0
    %v728 = vsel %vm727, 1.0, 0.0
    %s729 = scalar_lea.vmem [#allocation10], 88
    %730 = vst [vmem:[%s729] sm:$0xff] %v728
    %s731 = scalar_lea.vmem [#allocation11], 88
    %732 = vst [vmem:[%s731] sm:$0xff] %v726
    %v733 = vld [vmem:[#allocation3 + $0x10] sm:$0xff]
    %v734 = vmul.f32 %v726, 0.9
    %v735 = vadd.f32 %v734, %v733
    %v736 = vsub.f32 %v735, %v728
    %vm737 = vcmp.gt.f32.partialorder %v736, 1.0
    %v738 = vsel %vm737, 1.0, 0.0
    %s739 = scalar_lea.vmem [#allocation10], 96
    %740 = vst [vmem:[%s739] sm:$0xff] %v738
    %s741 = scalar_lea.vmem [#allocation11], 96
    %742 = vst [vmem:[%s741] sm:$0xff] %v736
    %v743 = vld [vmem:[#allocation3 + $0x18] sm:$0xff]
    %v744 = vmul.f32 %v736, 0.9
    %v745 = vadd.f32 %v744, %v743
    %v746 = vsub.f32 %v745, %v738
    %vm747 = vcmp.gt.f32.partialorder %v746, 1.0
    %v748 = vsel %vm747, 1.0, 0.0
    %s749 = scalar_lea.vmem [#allocation10], 104
    %750 = vst [vmem:[%s749] sm:$0xff] %v748
    %s751 = scalar_lea.vmem [#allocation11], 104
    %752 = vst [vmem:[%s751] sm:$0xff] %v746
    %v753 = vld [vmem:[#allocation3 + $0x20] sm:$0xff]
    %v754 = vmul.f32 %v746, 0.9
    %v755 = vadd.f32 %v754, %v753
    %v756 = vsub.f32 %v755, %v748
    %vm757 = vcmp.gt.f32.partialorder %v756, 1.0
    %v758 = vsel %vm757, 1.0, 0.0
    %s759 = scalar_lea.vmem [#allocation10], 112
    %760 = vst [vmem:[%s759] sm:$0xff] %v758
    %s761 = scalar_lea.vmem [#allocation11], 112
    %762 = vst [vmem:[%s761] sm:$0xff] %v756
    %v763 = vld [vmem:[%s330] sm:$0xff]
    %v764 = vld [vmem:[%s330 + $0x8] sm:$0xff]
    %v765 = vld [vmem:[%s330 + $0x10] sm:$0xff]
    %v766 = vld [vmem:[%s330 + $0x18] sm:$0xff]
    %v767 = vld [vmem:[%s330 + $0x20] sm:$0xff]
    %768 = vmatprep.subr.mxu0 0.0
    %769 = vmatpush1.msra.mxu0 %v98
    %770 = vmatprep.subr.mxu0 0.0
    %771 = vmatpush1.msra.mxu0 %v99
    %772 = vmatprep.subr.mxu0 0.0
    %773 = vmatpush1.msra.mxu0 %v100
    %774 = vmatprep.subr.mxu0 0.0
    %775 = vmatpush1.msra.mxu0 %v101
    %776 = vmatprep.subr.mxu0 0.0
    %777 = vmatpush1.msra.mxu0 %v102
    %778 = vmatprep.subr.mxu0 0.0
    %779 = vmatpush1.msra.mxu0 %v103
    %780 = vmatprep.subr.mxu0 0.0
    %781 = vmatpush1.msra.mxu0 %v104
    %782 = vmatprep.subr.mxu0 0.0
    %783 = vmatpush1.msra.mxu0 %v105
    %784 = vmatprep.subr.mxu0 0.0
    %785 = vmatpush1.msra.mxu0 %v106
    %786 = vmatprep.subr.mxu0 0.0
    %787 = vmatpush1.msra.mxu0 %v107
    %788 = vmatprep.subr.mxu0 0.0
    %789 = vmatpush1.msra.mxu0 %v108
    %790 = vmatprep.subr.mxu0 0.0
    %791 = vmatpush1.msra.mxu0 %v109
    %792 = vmatprep.subr.mxu0 0.0
    %793 = vmatpush1.msra.mxu0 %v110
    %794 = vmatprep.subr.mxu0 0.0
    %795 = vmatpush1.msra.mxu0 %v111
    %796 = vmatprep.subr.mxu0 0.0
    %797 = vmatpush1.msra.mxu0 %v112
    %798 = vmatprep.subr.mxu0 0.0
    %799 = vmatpush1.msra.mxu0 %v113
    %800 = vmatprep.subr.mxu0 0.0
    %801 = vmatpush1.msra.mxu0 0.0
    %802 = vmatprep.subr.mxu0 0.0
    %803 = vmatpush1.msra.mxu0 0.0
    %804 = vmatprep.subr.mxu0 0.0
    %805 = vmatpush1.msra.mxu0 0.0
    %806 = vmatprep.subr.mxu0 0.0
    %807 = vmatpush1.msra.mxu0 0.0
    %808 = vmatprep.subr.mxu0 0.0
    %809 = vmatpush1.msra.mxu0 0.0
    %810 = vmatprep.subr.mxu0 0.0
    %811 = vmatpush1.msra.mxu0 0.0
    %812 = vmatprep.subr.mxu0 0.0
    %813 = vmatpush1.msra.mxu0 0.0
    %814 = vmatprep.subr.mxu0 0.0
    %815 = vmatpush1.msra.mxu0 0.0
    %816 = vmatprep.subr.mxu0 0.0
    %817 = vmatpush1.msra.mxu0 0.0
    %818 = vmatprep.subr.mxu0 0.0
    %819 = vmatpush1.msra.mxu0 0.0
    %820 = vmatprep.subr.mxu0 0.0
    %821 = vmatpush1.msra.mxu0 0.0
    %822 = vmatprep.subr.mxu0 0.0
    %823 = vmatpush1.msra.mxu0 0.0
    %824 = vmatprep.subr.mxu0 0.0
    %825 = vmatpush1.msra.mxu0 0.0
    %826 = vmatprep.subr.mxu0 0.0
    %827 = vmatpush1.msra.mxu0 0.0
    %828 = vmatprep.subr.mxu0 0.0
    %829 = vmatpush1.msra.mxu0 0.0
    %830 = vmatprep.subr.mxu0 0.0
    %831 = vmatpush1.msra.mxu0 0.0
    %832 = vmatprep.mubr.f32.mxu0 0.0
    %833 = vmatmul.mubr.f32.gmra.mrb[0].mxu0 %v763
    %v834 = vpop.f32.mrb[0].mxu0
    %v835 = vadd.f32 %v228, %v834
    %v836 = vpop.f32.mrb[0].mxu0
    %837 = vmatprep.mubr.f32.mxu0 0.0
    %838 = vmatmul.mubr.f32.gmra.mrb[0].mxu0 %v764
    %v839 = vpop.f32.mrb[0].mxu0
    %v840 = vadd.f32 %v228, %v839
    %v841 = vpop.f32.mrb[0].mxu0
    %842 = vmatprep.mubr.f32.mxu0 0.0
    %843 = vmatmul.mubr.f32.gmra.mrb[0].mxu0 %v765
    %v844 = vpop.f32.mrb[0].mxu0
    %v845 = vadd.f32 %v228, %v844
    %v846 = vpop.f32.mrb[0].mxu0
    %847 = vmatprep.mubr.f32.mxu0 0.0
    %848 = vmatmul.mubr.f32.gmra.mrb[0].mxu0 %v766
    %v849 = vpop.f32.mrb[0].mxu0
    %v850 = vadd.f32 %v228, %v849
    %v851 = vpop.f32.mrb[0].mxu0
    %852 = vmatprep.mubr.f32.mxu0 0.0
    %853 = vmatmul.mubr.f32.gmra.mrb[0].mxu0 %v767
    %v854 = vpop.f32.mrb[0].mxu0
    %v855 = vadd.f32 %v228, %v854
    %v856 = vpop.f32.mrb[0].mxu0
    %857 = vdwg.mxu0
    %858 = vst [vmem:[%s497] sm:$0xff] %v835
    %859 = vst [vmem:[%s497 + $0x8] sm:$0xff] %v840
    %860 = vst [vmem:[%s497 + $0x10] sm:$0xff] %v845
    %861 = vst [vmem:[%s497 + $0x18] sm:$0xff] %v850
    %862 = vst [vmem:[%s497 + $0x20] sm:$0xff] %v855
    %v863 = vmul.f32 %v709, 0.9
    %v864 = vadd.f32 %v863, %v188
    %v865 = vsub.f32 %v864, %v711
    %vm866 = vcmp.gt.f32.partialorder %v865, 1.0
    %v867 = vsel %vm866, 1.0, 0.0
    %868 = vst [vmem:[#allocation2] sm:$0xff] %v867
    %v869 = vmul.f32 %v865, 0.9
    %v870 = vadd.f32 %v869, %v188
    %v871 = vsub.f32 %v870, %v867
    %vm872 = vcmp.gt.f32.partialorder %v871, 1.0
    %v873 = vsel %vm872, 1.0, 0.0
    %874 = vst [vmem:[#allocation2 + $0x8] sm:$0xff] %v873
    %v875 = vmul.f32 %v871, 0.9
    %v876 = vadd.f32 %v875, %v188
    %v877 = vsub.f32 %v876, %v873
    %vm878 = vcmp.gt.f32.partialorder %v877, 1.0
    %v879 = vsel %vm878, 1.0, 0.0
    %880 = vst [vmem:[#allocation2 + $0x10] sm:$0xff] %v879
    %v881 = vmul.f32 %v877, 0.9
    %v882 = vadd.f32 %v881, %v188
    %v883 = vsub.f32 %v882, %v879
    %vm884 = vcmp.gt.f32.partialorder %v883, 1.0
    %v885 = vsel %vm884, 1.0, 0.0
    %886 = vst [vmem:[#allocation2 + $0x18] sm:$0xff] %v885
    %v887 = vmul.f32 %v883, 0.9
    %v888 = vadd.f32 %v887, %v188
    %v889 = vsub.f32 %v888, %v885
    %vm890 = vcmp.gt.f32.partialorder %v889, 1.0
    %v891 = vsel %vm890, 1.0, 0.0
    %892 = vst [vmem:[#allocation2 + $0x20] sm:$0xff] %v891
    %v893 = vld [vmem:[%s497] sm:$0xff]
    %v894 = vmul.f32 %v756, 0.9
    %v895 = vadd.f32 %v894, %v893
    %v896 = vsub.f32 %v895, %v758
    %vm897 = vcmp.gt.f32.partialorder %v896, 1.0
    %v898 = vsel %vm897, 1.0, 0.0
    %s899 = scalar_lea.vmem [#allocation10], 120
    %900 = vst [vmem:[%s899] sm:$0xff] %v898
    %s901 = scalar_lea.vmem [#allocation11], 120
    %902 = vst [vmem:[%s901] sm:$0xff] %v896
    %v903 = vld [vmem:[%s497 + $0x8] sm:$0xff]
    %v904 = vmul.f32 %v896, 0.9
    %v905 = vadd.f32 %v904, %v903
    %v906 = vsub.f32 %v905, %v898
    %vm907 = vcmp.gt.f32.partialorder %v906, 1.0
    %v908 = vsel %vm907, 1.0, 0.0
    %s909 = scalar_lea.vmem [#allocation10], 128
    %910 = vst [vmem:[%s909] sm:$0xff] %v908
    %s911 = scalar_lea.vmem [#allocation11], 128
    %912 = vst [vmem:[%s911] sm:$0xff] %v906
    %v913 = vld [vmem:[%s497 + $0x10] sm:$0xff]
    %v914 = vmul.f32 %v906, 0.9
    %v915 = vadd.f32 %v914, %v913
    %v916 = vsub.f32 %v915, %v908
    %vm917 = vcmp.gt.f32.partialorder %v916, 1.0
    %v918 = vsel %vm917, 1.0, 0.0
    %s919 = scalar_lea.vmem [#allocation10], 136
    %920 = vst [vmem:[%s919] sm:$0xff] %v918
    %s921 = scalar_lea.vmem [#allocation11], 136
    %922 = vst [vmem:[%s921] sm:$0xff] %v916
    %v923 = vld [vmem:[%s497 + $0x18] sm:$0xff]
    %v924 = vmul.f32 %v916, 0.9
    %v925 = vadd.f32 %v924, %v923
    %v926 = vsub.f32 %v925, %v918
    %vm927 = vcmp.gt.f32.partialorder %v926, 1.0
    %v928 = vsel %vm927, 1.0, 0.0
    %s929 = scalar_lea.vmem [#allocation10], 144
    %930 = vst [vmem:[%s929] sm:$0xff] %v928
    %s931 = scalar_lea.vmem [#allocation11], 144
    %932 = vst [vmem:[%s931] sm:$0xff] %v926
    %v933 = vld [vmem:[%s497 + $0x20] sm:$0xff]
    %v934 = vmul.f32 %v926, 0.9
    %v935 = vadd.f32 %v934, %v933
    %v936 = vsub.f32 %v935, %v928
    %vm937 = vcmp.gt.f32.partialorder %v936, 1.0
    %v938 = vsel %vm937, 1.0, 0.0
    %s939 = scalar_lea.vmem [#allocation10], 152
    %940 = vst [vmem:[%s939] sm:$0xff] %v938
    %s941 = scalar_lea.vmem [#allocation11], 152
    %942 = vst [vmem:[%s941] sm:$0xff] %v936
    %v943 = vld [vmem:[#allocation2] sm:$0xff]
    %v944 = vld [vmem:[#allocation2 + $0x8] sm:$0xff]
    %v945 = vld [vmem:[#allocation2 + $0x10] sm:$0xff]
    %v946 = vld [vmem:[#allocation2 + $0x18] sm:$0xff]
    %v947 = vld [vmem:[#allocation2 + $0x20] sm:$0xff]
    %948 = vmatprep.subr.mxu0 0.0
    %949 = vmatpush1.msra.mxu0 %v98
    %950 = vmatprep.subr.mxu0 0.0
    %951 = vmatpush1.msra.mxu0 %v99
    %952 = vmatprep.subr.mxu0 0.0
    %953 = vmatpush1.msra.mxu0 %v100
    %954 = vmatprep.subr.mxu0 0.0
    %955 = vmatpush1.msra.mxu0 %v101
    %956 = vmatprep.subr.mxu0 0.0
    %957 = vmatpush1.msra.mxu0 %v102
    %958 = vmatprep.subr.mxu0 0.0
    %959 = vmatpush1.msra.mxu0 %v103
    %960 = vmatprep.subr.mxu0 0.0
    %961 = vmatpush1.msra.mxu0 %v104
    %962 = vmatprep.subr.mxu0 0.0
    %963 = vmatpush1.msra.mxu0 %v105
    %964 = vmatprep.subr.mxu0 0.0
    %965 = vmatpush1.msra.mxu0 %v106
    %966 = vmatprep.subr.mxu0 0.0
    %967 = vmatpush1.msra.mxu0 %v107
    %968 = vmatprep.subr.mxu0 0.0
    %969 = vmatpush1.msra.mxu0 %v108
    %970 = vmatprep.subr.mxu0 0.0
    %971 = vmatpush1.msra.mxu0 %v109
    %972 = vmatprep.subr.mxu0 0.0
    %973 = vmatpush1.msra.mxu0 %v110
    %974 = vmatprep.subr.mxu0 0.0
    %975 = vmatpush1.msra.mxu0 %v111
    %976 = vmatprep.subr.mxu0 0.0
    %977 = vmatpush1.msra.mxu0 %v112
    %978 = vmatprep.subr.mxu0 0.0
    %979 = vmatpush1.msra.mxu0 %v113
    %980 = vmatprep.subr.mxu0 0.0
    %981 = vmatpush1.msra.mxu0 0.0
    %982 = vmatprep.subr.mxu0 0.0
    %983 = vmatpush1.msra.mxu0 0.0
    %984 = vmatprep.subr.mxu0 0.0
    %985 = vmatpush1.msra.mxu0 0.0
    %986 = vmatprep.subr.mxu0 0.0
    %987 = vmatpush1.msra.mxu0 0.0
    %988 = vmatprep.subr.mxu0 0.0
    %989 = vmatpush1.msra.mxu0 0.0
    %990 = vmatprep.subr.mxu0 0.0
    %991 = vmatpush1.msra.mxu0 0.0
    %992 = vmatprep.subr.mxu0 0.0
    %993 = vmatpush1.msra.mxu0 0.0
    %994 = vmatprep.subr.mxu0 0.0
    %995 = vmatpush1.msra.mxu0 0.0
    %996 = vmatprep.subr.mxu0 0.0
    %997 = vmatpush1.msra.mxu0 0.0
    %998 = vmatprep.subr.mxu0 0.0
    %999 = vmatpush1.msra.mxu0 0.0
    %1000 = vmatprep.subr.mxu0 0.0
    %1001 = vmatpush1.msra.mxu0 0.0
    %1002 = vmatprep.subr.mxu0 0.0
    %1003 = vmatpush1.msra.mxu0 0.0
    %1004 = vmatprep.subr.mxu0 0.0
    %1005 = vmatpush1.msra.mxu0 0.0
    %1006 = vmatprep.subr.mxu0 0.0
    %1007 = vmatpush1.msra.mxu0 0.0
    %1008 = vmatprep.subr.mxu0 0.0
    %1009 = vmatpush1.msra.mxu0 0.0
    %1010 = vmatprep.subr.mxu0 0.0
    %1011 = vmatpush1.msra.mxu0 0.0
    %1012 = vmatprep.mubr.f32.mxu0 0.0
    %1013 = vmatmul.mubr.f32.gmra.mrb[0].mxu0 %v943
    %v1014 = vpop.f32.mrb[0].mxu0
    %v1015 = vadd.f32 %v228, %v1014
    %v1016 = vpop.f32.mrb[0].mxu0
    %1017 = vmatprep.mubr.f32.mxu0 0.0
    %1018 = vmatmul.mubr.f32.gmra.mrb[0].mxu0 %v944
    %v1019 = vpop.f32.mrb[0].mxu0
    %v1020 = vadd.f32 %v228, %v1019
    %v1021 = vpop.f32.mrb[0].mxu0
    %1022 = vmatprep.mubr.f32.mxu0 0.0
    %1023 = vmatmul.mubr.f32.gmra.mrb[0].mxu0 %v945
    %v1024 = vpop.f32.mrb[0].mxu0
    %v1025 = vadd.f32 %v228, %v1024
    %v1026 = vpop.f32.mrb[0].mxu0
    %1027 = vmatprep.mubr.f32.mxu0 0.0
    %1028 = vmatmul.mubr.f32.gmra.mrb[0].mxu0 %v946
    %v1029 = vpop.f32.mrb[0].mxu0
    %v1030 = vadd.f32 %v228, %v1029
    %v1031 = vpop.f32.mrb[0].mxu0
    %1032 = vmatprep.mubr.f32.mxu0 0.0
    %1033 = vmatmul.mubr.f32.gmra.mrb[0].mxu0 %v947
    %v1034 = vpop.f32.mrb[0].mxu0
    %v1035 = vadd.f32 %v228, %v1034
    %v1036 = vpop.f32.mrb[0].mxu0
    %1037 = vdwg.mxu0
    %1038 = vst [vmem:[#allocation3] sm:$0xff] %v1015
    %1039 = vst [vmem:[#allocation3 + $0x8] sm:$0xff] %v1020
    %1040 = vst [vmem:[#allocation3 + $0x10] sm:$0xff] %v1025
    %1041 = vst [vmem:[#allocation3 + $0x18] sm:$0xff] %v1030
    %1042 = vst [vmem:[#allocation3 + $0x20] sm:$0xff] %v1035
    %v1043 = vld [vmem:[#allocation3] sm:$0xff]
    %v1044 = vmul.f32 %v936, 0.9
    %v1045 = vadd.f32 %v1044, %v1043
    %v1046 = vsub.f32 %v1045, %v938
    %vm1047 = vcmp.gt.f32.partialorder %v1046, 1.0
    %v1048 = vsel %vm1047, 1.0, 0.0
    %s1049 = scalar_lea.vmem [#allocation10], 160
    %1050 = vst [vmem:[%s1049] sm:$0xff] %v1048
    %s1051 = scalar_lea.vmem [#allocation11], 160
    %1052 = vst [vmem:[%s1051] sm:$0xff] %v1046
    %v1053 = vld [vmem:[#allocation3 + $0x8] sm:$0xff]
    %v1054 = vmul.f32 %v1046, 0.9
    %v1055 = vadd.f32 %v1054, %v1053
    %v1056 = vsub.f32 %v1055, %v1048
    %vm1057 = vcmp.gt.f32.partialorder %v1056, 1.0
    %v1058 = vsel %vm1057, 1.0, 0.0
    %s1059 = scalar_lea.vmem [#allocation10], 168
    %1060 = vst [vmem:[%s1059] sm:$0xff] %v1058
    %s1061 = scalar_lea.vmem [#allocation11], 168
    %1062 = vst [vmem:[%s1061] sm:$0xff] %v1056
    %v1063 = vld [vmem:[#allocation3 + $0x10] sm:$0xff]
    %v1064 = vmul.f32 %v1056, 0.9
    %v1065 = vadd.f32 %v1064, %v1063
    %v1066 = vsub.f32 %v1065, %v1058
    %vm1067 = vcmp.gt.f32.partialorder %v1066, 1.0
    %v1068 = vsel %vm1067, 1.0, 0.0
    %s1069 = scalar_lea.vmem [#allocation10], 176
    %1070 = vst [vmem:[%s1069] sm:$0xff] %v1068
    %s1071 = scalar_lea.vmem [#allocation11], 176
    %1072 = vst [vmem:[%s1071] sm:$0xff] %v1066
    %v1073 = vld [vmem:[#allocation3 + $0x18] sm:$0xff]
    %v1074 = vmul.f32 %v1066, 0.9
    %v1075 = vadd.f32 %v1074, %v1073
    %v1076 = vsub.f32 %v1075, %v1068
    %vm1077 = vcmp.gt.f32.partialorder %v1076, 1.0
    %v1078 = vsel %vm1077, 1.0, 0.0
    %s1079 = scalar_lea.vmem [#allocation10], 184
    %1080 = vst [vmem:[%s1079] sm:$0xff] %v1078
    %s1081 = scalar_lea.vmem [#allocation11], 184
    %1082 = vst [vmem:[%s1081] sm:$0xff] %v1076
    %v1083 = vld [vmem:[#allocation3 + $0x20] sm:$0xff]
    %v1084 = vmul.f32 %v1076, 0.9
    %v1085 = vadd.f32 %v1084, %v1083
    %v1086 = vsub.f32 %v1085, %v1078
    %vm1087 = vcmp.gt.f32.partialorder %v1086, 1.0
    %v1088 = vsel %vm1087, 1.0, 0.0
    %s1089 = scalar_lea.vmem [#allocation10], 192
    %1090 = vst [vmem:[%s1089] sm:$0xff] %v1088
    %s1091 = scalar_lea.vmem [#allocation11], 192
    %1092 = vst [vmem:[%s1091] sm:$0xff] %v1086
    // Predicated region
    $region34: #{tpu_custom_call.1} parent=1 // pred_check
      _
    $region35: #{tpu_custom_call.1} parent=1 // pred_check_branch
      %1094 = sbr.rel (0) target = $region37
    $region36: #{tpu_custom_call.1} parent=1 // pred_region
      %s1096 = ssub.s32 3200, 3200
      %1097 = vsyncadd [#allocation6], %s1096
      %s1098 = sshll.u32 [#allocation10], 4
      %s1099 = int_to_ptr.vmem [resolvable:$true] %s1098
      %1104 = dma.vmem_to_hbm [thread:$0]  %s1099, 3200, %s5, [#allocation6], 128, 128, 8
    $region37: #{tpu_custom_call.1} parent=1 // pred_fallthru
      _
    // Predicated region
    $region38: #{tpu_custom_call.1} parent=1 // pred_check
      _
    $region39: #{tpu_custom_call.1} parent=1 // pred_check_branch
      %1106 = sbr.rel (0) target = $region41
    $region40: #{tpu_custom_call.1} parent=1 // pred_region
      %s1108 = ssub.s32 3200, 3200
      %1109 = vsyncadd [#allocation12], %s1108
      %s1110 = sshll.u32 [#allocation11], 4
      %s1111 = int_to_ptr.vmem [resolvable:$true] %s1110
      %1116 = dma.vmem_to_hbm [thread:$0]  %s1111, 3200, %s6, [#allocation12], 128, 128, 8
    $region41: #{tpu_custom_call.1} parent=1 // pred_fallthru
      _
    // Predicated region
    $region42: #{tpu_custom_call.1} parent=1 // pred_check
      _
    $region43: #{tpu_custom_call.1} parent=1 // pred_check_branch
      %1118 = sbr.rel (0) target = $region45
    $region44: #{tpu_custom_call.1} parent=1 // pred_region
      %1119 = dma.done [#allocation6], 3200
    $region45: #{tpu_custom_call.1} parent=1 // pred_fallthru
      _
    // Predicated region
    $region46: #{tpu_custom_call.1} parent=1 // pred_check
      _
    $region47: #{tpu_custom_call.1} parent=1 // pred_check_branch
      %1121 = sbr.rel (0) target = $region49
    $region48: #{tpu_custom_call.1} parent=1 // pred_region
      %1122 = dma.done [#allocation12], 3200
    $region49: #{tpu_custom_call.1} parent=1 // pred_fallthru
      _
    %1123 = vsyncpa [#allocation5], 1
    %1124 = vsyncpa [#allocation8], 1
    %1125 = vsyncpa [#allocation6], 1
    %1126 = vsyncpa [#allocation12], 1

</llo_original>
